<compile_context>
chip_gen: v6e
topology: v6e:2x2x1
jax: 0.10.0
libtpu: 0.0.40
codegen_flags: <defaults>
</compile_context>

<pallas_src>
import functools

import jax
import jax.numpy as jnp
from jax.experimental import pallas as pl
from jax.experimental.pallas import tpu as pltpu

_K, _STRIDE, _PAD = 3, 2, 1

# (kind, cin, hi, wi, cout, ho, wo, activation)
_LAYERS = (
    ("conv",    4, 16, 16,  8,  8,  8, "relu"),
    ("conv",    8,  8,  8, 16,  4,  4, "relu"),
    ("deconv", 16,  4,  4,  8,  8,  8, "relu"),
    ("deconv",  8,  8,  8,  4, 16, 16, "sigmoid"),
)

_DN = ("NCHW", "OIHW", "NCHW")
_PREC = jax.lax.Precision.HIGHEST


# ----------------------------------------------------------------------------
# torch-semantics conv / conv-transpose (used both for the host-side weight fold
# and for the pure-JAX reference, so the fold is exact by construction).
# ----------------------------------------------------------------------------
def _conv2d(x, w):            # Conv2d(k=3, s=2, p=1), no bias
    return jax.lax.conv_general_dilated(
        x, w, window_strides=(_STRIDE, _STRIDE),
        padding=((_PAD, _PAD), (_PAD, _PAD)),
        dimension_numbers=_DN, precision=_PREC)


def _deconv2d(x, w):          # ConvTranspose2d(k=3, s=2, p=1, op=1), no bias
    # == input-dilated conv with flipped kernel, swapped in/out channels, pad (1, 2)
    w_conv = jnp.transpose(w[:, :, ::-1, ::-1], (1, 0, 2, 3))
    return jax.lax.conv_general_dilated(
        x, w_conv, window_strides=(1, 1), padding=((1, 2), (1, 2)),
        lhs_dilation=(_STRIDE, _STRIDE), dimension_numbers=_DN, precision=_PREC)


# ----------------------------------------------------------------------------
# Host-side, one-time fold of weights + spatial connectivity into dense matrices.
# Each A entry is a single weight (or 0), so the bf16 cast only rounds weights.
# ----------------------------------------------------------------------------
def _dense_matrix(apply_one, cin, hi, wi):
    """Return A^T of shape (n_in, n_out) for a linear map on a (cin,hi,wi) image."""
    n_in = cin * hi * wi
    eye = jnp.eye(n_in, dtype=jnp.float32).reshape(n_in, cin, hi, wi)
    cols = jax.vmap(apply_one)(eye)                 # (n_in, cout, ho, wo) = rows of A^T
    return cols.reshape(n_in, -1)


def pack_dense_params(params):
    """Fold the 4 conv/deconv layers into (A^T bf16, bias-row f32) pairs (runs once)."""
    raw = (
        ("conv",   params["e1_w"], params["e1_b"]),
        ("conv",   params["e2_w"], params["e2_b"]),
        ("deconv", params["d1_w"], params["d1_b"]),
        ("deconv", params["d2_w"], params["d2_b"]),
    )
    packed = []
    for (kind, cin, hi, wi, cout, ho, wo, _), (k2, w, b) in zip(_LAYERS, raw):
        assert kind == k2
        op = _conv2d if kind == "conv" else _deconv2d
        apply_one = lambda img, w=w, op=op: op(img[None], w)[0]
        a_t = _dense_matrix(apply_one, cin, hi, wi)                       # (n_in, n_out)
        b_row = jnp.repeat(b.astype(jnp.float32), ho * wo).reshape(1, cout * ho * wo)
        packed.append(a_t.astype(jnp.bfloat16))                          # MXU operand
        packed.append(b_row)                                             # f32 VPU add
    return tuple(packed)


# ----------------------------------------------------------------------------
# Kernel: 4 matmuls (bf16 MXU, f32 accumulate) + bias + relu / exact sigmoid.
# ----------------------------------------------------------------------------
def _cae_kernel(x_ref, a1, b1, a2, b2, a3, b3, a4, b4, o_ref):
    h = x_ref[...]                                                        # (Bb, 1024) f32
    for a_ref, b_ref, act in ((a1, b1, "relu"), (a2, b2, "relu"),
                              (a3, b3, "relu"), (a4, b4, "sigmoid")):
        z = jnp.dot(h.astype(jnp.bfloat16), a_ref[...],
                    preferred_element_type=jnp.float32)                   # lane-dense out
        z = z + b_ref[...]                                                # (1, n_out) bcast
        if act == "relu":
            h = jnp.maximum(z, 0.0)
        else:
            h = 1.0 / (1.0 + jnp.exp(-z))                                 # exact sigmoid
    o_ref[...] = h                                                        # (Bb, 1024) f32


# ----------------------------------------------------------------------------
# Wrapper: batch-blocked grid, constant-index_map resident weights.
# ----------------------------------------------------------------------------
@functools.partial(jax.jit, static_argnames=("batch_block", "core_parallel"))
def conv_autoencoder_forward(packed, x_nchw, *, batch_block=128, core_parallel=False):
    n, c, h, w = x_nchw.shape
    n_in = c * h * w
    cout, ho, wo = _LAYERS[-1][4], _LAYERS[-1][5], _LAYERS[-1][6]
    n_out = cout * ho * wo

    # Batch block: full batch if small (block == full dim is always legal), otherwise a
    # sublane-aligned tile; pad the batch up to a multiple of the block.
    bb = min(batch_block, n)
    if bb < n:
        bb = max(8, (bb // 8) * 8)
    n_pad = pl.cdiv(n, bb) * bb

    x_flat = x_nchw.reshape(n, n_in)                  # NCHW -> (N, C*H*W): free reshape
    if n_pad != n:
        x_flat = jnp.pad(x_flat, ((0, n_pad - n), (0, 0)))

    def const_spec(a):                                # resident in VMEM across the grid
        nd = a.ndim
        return pl.BlockSpec(a.shape, lambda i: (0,) * nd)

    a1, b1, a2, b2, a3, b3, a4, b4 = packed
    sem = (pltpu.CORE_PARALLEL,) if core_parallel else ("parallel",)

    out = pl.pallas_call(
        _cae_kernel,
        out_shape=jax.ShapeDtypeStruct((n_pad, n_out), jnp.float32),
        grid=(n_pad // bb,),
        in_specs=[
            pl.BlockSpec((bb, n_in), lambda i: (i, 0)),
            const_spec(a1), const_spec(b1),
            const_spec(a2), const_spec(b2),
            const_spec(a3), const_spec(b3),
            const_spec(a4), const_spec(b4),
        ],
        out_specs=pl.BlockSpec((bb, n_out), lambda i: (i, 0)),
        compiler_params=pltpu.CompilerParams(dimension_semantics=sem),
    )(x_flat, a1, b1, a2, b2, a3, b3, a4, b4)

    return out[:n].reshape(n, cout, ho, wo)           # back to NCHW


# ----------------------------------------------------------------------------
# Deterministic parameter init (PyTorch-style U(-1/sqrt(fan_in), +1/sqrt(fan_in)))
# ----------------------------------------------------------------------------
def _uniform(key, shape, fan_in):
    bound = 1.0 / jnp.sqrt(float(fan_in))
    return jax.random.uniform(key, shape, jnp.float32, -bound, bound)


def init_params(key):
    ks = jax.random.split(key, 8)
    k = _K
    return {
        # encoder (Conv2d weights: (Cout, Cin, kH, kW))
        "e1_w": _uniform(ks[0], (8, 4, k, k), 4 * k * k),
        "e1_b": _uniform(ks[1], (8,), 4 * k * k),
        "e2_w": _uniform(ks[2], (16, 8, k, k), 8 * k * k),
        "e2_b": _uniform(ks[3], (16,), 8 * k * k),
        # decoder (ConvTranspose2d weights: (Cin, Cout, kH, kW))
        "d1_w": _uniform(ks[4], (16, 8, k, k), 16 * k * k),
        "d1_b": _uniform(ks[5], (8,), 16 * k * k),
        "d2_w": _uniform(ks[6], (8, 4, k, k), 8 * k * k),
        "d2_b": _uniform(ks[7], (4,), 8 * k * k),
    }


# ----------------------------------------------------------------------------
# Pure-JAX reference (torch Conv2d / ConvTranspose2d semantics) for validation.
# ----------------------------------------------------------------------------
def _reference_forward(params, x):
    h = jax.nn.relu(_conv2d(x, params["e1_w"]) + params["e1_b"].reshape(1, -1, 1, 1))
    h = jax.nn.relu(_conv2d(h, params["e2_w"]) + params["e2_b"].reshape(1, -1, 1, 1))
    h = jax.nn.relu(_deconv2d(h, params["d1_w"]) + params["d1_b"].reshape(1, -1, 1, 1))
    h = jax.nn.sigmoid(_deconv2d(h, params["d2_w"]) + params["d2_b"].reshape(1, -1, 1, 1))
    return h


if __name__ == "__main__":
    x = jax.random.normal(jax.random.PRNGKey(0), (2, 4, 16, 16), dtype=jnp.float32)  # NCHW
    params = init_params(jax.random.PRNGKey(1))

    packed = pack_dense_params(params)            # one-time host-side weight fold

    y = conv_autoencoder_forward(packed, x)
    y = jax.block_until_ready(y)

    assert y.shape == (2, 4, 16, 16), y.shape
    assert bool(jnp.all(jnp.isfinite(y)))

    y_ref = _reference_forward(params, x)
    err = float(jnp.max(jnp.abs(y - y_ref)))
    assert err < 1e-2, f"max abs err vs reference = {err}"

    print("KERNEL_OK")
</pallas_src>

<mosaic_0001>
module attributes {stable_mosaic.version = 11 : i64} {
  func.func @_cae_kernel(%arg0: i32, %arg1: memref<2x1024xf32, #tpu.memory_space<vmem>>, %arg2: memref<1024x512xbf16, #tpu.memory_space<vmem>>, %arg3: memref<1x512xf32, #tpu.memory_space<vmem>>, %arg4: memref<512x256xbf16, #tpu.memory_space<vmem>>, %arg5: memref<1x256xf32, #tpu.memory_space<vmem>>, %arg6: memref<256x512xbf16, #tpu.memory_space<vmem>>, %arg7: memref<1x512xf32, #tpu.memory_space<vmem>>, %arg8: memref<512x1024xbf16, #tpu.memory_space<vmem>>, %arg9: memref<1x1024xf32, #tpu.memory_space<vmem>>, %arg10: memref<2x1024xf32, #tpu.memory_space<vmem>>) attributes {dimension_semantics = [#tpu.dimension_semantics<parallel>], iteration_bounds = array<i64: 1>, scalar_prefetch = 0 : i64, scratch_operands = 0 : i64, tpu.core_type = #tpu.core_type<tc>, window_params = [{transform_indices = @transform_0, window_bounds = array<i64: 2, 1024>}, {pipeline_mode = #tpu.pipeline_mode<synchronous>, transform_indices = @transform_1, window_bounds = array<i64: 1024, 512>}, {pipeline_mode = #tpu.pipeline_mode<synchronous>, transform_indices = @transform_2, window_bounds = array<i64: 1, 512>}, {pipeline_mode = #tpu.pipeline_mode<synchronous>, transform_indices = @transform_3, window_bounds = array<i64: 512, 256>}, {pipeline_mode = #tpu.pipeline_mode<synchronous>, transform_indices = @transform_4, window_bounds = array<i64: 1, 256>}, {pipeline_mode = #tpu.pipeline_mode<synchronous>, transform_indices = @transform_5, window_bounds = array<i64: 256, 512>}, {pipeline_mode = #tpu.pipeline_mode<synchronous>, transform_indices = @transform_6, window_bounds = array<i64: 1, 512>}, {pipeline_mode = #tpu.pipeline_mode<synchronous>, transform_indices = @transform_7, window_bounds = array<i64: 512, 1024>}, {pipeline_mode = #tpu.pipeline_mode<synchronous>, transform_indices = @transform_8, window_bounds = array<i64: 1, 1024>}, {transform_indices = @transform_9, window_bounds = array<i64: 2, 1024>}]} {
    %c0 = arith.constant 0 : index
    %c0_0 = arith.constant 0 : index
    %0 = vector.load %arg1[%c0, %c0_0] : memref<2x1024xf32, #tpu.memory_space<vmem>>, vector<2x1024xf32>
    %1 = arith.truncf %0 : vector<2x1024xf32> to vector<2x1024xbf16>
    %c0_1 = arith.constant 0 : index
    %c0_2 = arith.constant 0 : index
    %2 = vector.load %arg2[%c0_1, %c0_2] : memref<1024x512xbf16, #tpu.memory_space<vmem>>, vector<1024x512xbf16>
    %cst = arith.constant dense<0.000000e+00> : vector<2x512xf32>
    %3 = tpu.matmul %1, %2, %cst {dimension_numbers = #tpu.dot_dimension_numbers<[1], [0], [0], [1], [0, 0, 1, 1], [], []>} : vector<2x1024xbf16>, vector<1024x512xbf16>, vector<2x512xf32> -> vector<2x512xf32>
    %c0_3 = arith.constant 0 : index
    %c0_4 = arith.constant 0 : index
    %4 = vector.load %arg3[%c0_3, %c0_4] : memref<1x512xf32, #tpu.memory_space<vmem>>, vector<1x512xf32>
    %5 = vector.broadcast %4 : vector<1x512xf32> to vector<2x512xf32>
    %6 = arith.addf %3, %5 : vector<2x512xf32>
    %cst_5 = arith.constant 0.000000e+00 : f32
    %7 = vector.broadcast %cst_5 : f32 to vector<2x512xf32>
    %8 = arith.maximumf %6, %7 : vector<2x512xf32>
    %9 = arith.truncf %8 : vector<2x512xf32> to vector<2x512xbf16>
    %c0_6 = arith.constant 0 : index
    %c0_7 = arith.constant 0 : index
    %10 = vector.load %arg4[%c0_6, %c0_7] : memref<512x256xbf16, #tpu.memory_space<vmem>>, vector<512x256xbf16>
    %cst_8 = arith.constant dense<0.000000e+00> : vector<2x256xf32>
    %11 = tpu.matmul %9, %10, %cst_8 {dimension_numbers = #tpu.dot_dimension_numbers<[1], [0], [0], [1], [0, 0, 1, 1], [], []>} : vector<2x512xbf16>, vector<512x256xbf16>, vector<2x256xf32> -> vector<2x256xf32>
    %c0_9 = arith.constant 0 : index
    %c0_10 = arith.constant 0 : index
    %12 = vector.load %arg5[%c0_9, %c0_10] : memref<1x256xf32, #tpu.memory_space<vmem>>, vector<1x256xf32>
    %13 = vector.broadcast %12 : vector<1x256xf32> to vector<2x256xf32>
    %14 = arith.addf %11, %13 : vector<2x256xf32>
    %cst_11 = arith.constant 0.000000e+00 : f32
    %15 = vector.broadcast %cst_11 : f32 to vector<2x256xf32>
    %16 = arith.maximumf %14, %15 : vector<2x256xf32>
    %17 = arith.truncf %16 : vector<2x256xf32> to vector<2x256xbf16>
    %c0_12 = arith.constant 0 : index
    %c0_13 = arith.constant 0 : index
    %18 = vector.load %arg6[%c0_12, %c0_13] : memref<256x512xbf16, #tpu.memory_space<vmem>>, vector<256x512xbf16>
    %cst_14 = arith.constant dense<0.000000e+00> : vector<2x512xf32>
    %19 = tpu.matmul %17, %18, %cst_14 {dimension_numbers = #tpu.dot_dimension_numbers<[1], [0], [0], [1], [0, 0, 1, 1], [], []>} : vector<2x256xbf16>, vector<256x512xbf16>, vector<2x512xf32> -> vector<2x512xf32>
    %c0_15 = arith.constant 0 : index
    %c0_16 = arith.constant 0 : index
    %20 = vector.load %arg7[%c0_15, %c0_16] : memref<1x512xf32, #tpu.memory_space<vmem>>, vector<1x512xf32>
    %21 = vector.broadcast %20 : vector<1x512xf32> to vector<2x512xf32>
    %22 = arith.addf %19, %21 : vector<2x512xf32>
    %cst_17 = arith.constant 0.000000e+00 : f32
    %23 = vector.broadcast %cst_17 : f32 to vector<2x512xf32>
    %24 = arith.maximumf %22, %23 : vector<2x512xf32>
    %25 = arith.truncf %24 : vector<2x512xf32> to vector<2x512xbf16>
    %c0_18 = arith.constant 0 : index
    %c0_19 = arith.constant 0 : index
    %26 = vector.load %arg8[%c0_18, %c0_19] : memref<512x1024xbf16, #tpu.memory_space<vmem>>, vector<512x1024xbf16>
    %cst_20 = arith.constant dense<0.000000e+00> : vector<2x1024xf32>
    %27 = tpu.matmul %25, %26, %cst_20 {dimension_numbers = #tpu.dot_dimension_numbers<[1], [0], [0], [1], [0, 0, 1, 1], [], []>} : vector<2x512xbf16>, vector<512x1024xbf16>, vector<2x1024xf32> -> vector<2x1024xf32>
    %c0_21 = arith.constant 0 : index
    %c0_22 = arith.constant 0 : index
    %28 = vector.load %arg9[%c0_21, %c0_22] : memref<1x1024xf32, #tpu.memory_space<vmem>>, vector<1x1024xf32>
    %29 = vector.broadcast %28 : vector<1x1024xf32> to vector<2x1024xf32>
    %30 = arith.addf %27, %29 : vector<2x1024xf32>
    %cst_23 = arith.constant 0.000000e+00 : f32
    %31 = vector.broadcast %cst_23 : f32 to vector<2x1024xf32>
    %32 = arith.subf %31, %30 : vector<2x1024xf32>
    %33 = math.exp %32 : vector<2x1024xf32>
    %cst_24 = arith.constant 1.000000e+00 : f32
    %34 = vector.broadcast %cst_24 : f32 to vector<2x1024xf32>
    %35 = arith.addf %34, %33 : vector<2x1024xf32>
    %cst_25 = arith.constant 1.000000e+00 : f32
    %36 = vector.broadcast %cst_25 : f32 to vector<2x1024xf32>
    %37 = arith.divf %36, %35 : vector<2x1024xf32>
    %c0_26 = arith.constant 0 : index
    %c0_27 = arith.constant 0 : index
    %38 = vector.load %arg10[%c0_26, %c0_27] : memref<2x1024xf32, #tpu.memory_space<vmem>>, vector<2x1024xf32>
    tpu.vector_store %arg10[%c0_26, %c0_27], %37 {strides = array<i32>} : memref<2x1024xf32, #tpu.memory_space<vmem>>, vector<2x1024xf32>,
    return
  }
  func.func @transform_0(%arg0: i32) -> (i32, i32) {
    %c0_i32 = arith.constant 0 : i32
    %c0_i32_0 = arith.constant 0 : i32
    return %arg0, %c0_i32 : i32, i32
  }
  func.func @transform_1(%arg0: i32) -> (i32, i32) {
    %c0_i32 = arith.constant 0 : i32
    %c0_i32_0 = arith.constant 0 : i32
    %c0_i32_1 = arith.constant 0 : i32
    return %c0_i32, %c0_i32_0 : i32, i32
  }
  func.func @transform_2(%arg0: i32) -> (i32, i32) {
    %c0_i32 = arith.constant 0 : i32
    %c0_i32_0 = arith.constant 0 : i32
    %c0_i32_1 = arith.constant 0 : i32
    return %c0_i32, %c0_i32_0 : i32, i32
  }
  func.func @transform_3(%arg0: i32) -> (i32, i32) {
    %c0_i32 = arith.constant 0 : i32
    %c0_i32_0 = arith.constant 0 : i32
    %c0_i32_1 = arith.constant 0 : i32
    return %c0_i32, %c0_i32_0 : i32, i32
  }
  func.func @transform_4(%arg0: i32) -> (i32, i32) {
    %c0_i32 = arith.constant 0 : i32
    %c0_i32_0 = arith.constant 0 : i32
    %c0_i32_1 = arith.constant 0 : i32
    return %c0_i32, %c0_i32_0 : i32, i32
  }
  func.func @transform_5(%arg0: i32) -> (i32, i32) {
    %c0_i32 = arith.constant 0 : i32
    %c0_i32_0 = arith.constant 0 : i32
    %c0_i32_1 = arith.constant 0 : i32
    return %c0_i32, %c0_i32_0 : i32, i32
  }
  func.func @transform_6(%arg0: i32) -> (i32, i32) {
    %c0_i32 = arith.constant 0 : i32
    %c0_i32_0 = arith.constant 0 : i32
    %c0_i32_1 = arith.constant 0 : i32
    return %c0_i32, %c0_i32_0 : i32, i32
  }
  func.func @transform_7(%arg0: i32) -> (i32, i32) {
    %c0_i32 = arith.constant 0 : i32
    %c0_i32_0 = arith.constant 0 : i32
    %c0_i32_1 = arith.constant 0 : i32
    return %c0_i32, %c0_i32_0 : i32, i32
  }
  func.func @transform_8(%arg0: i32) -> (i32, i32) {
    %c0_i32 = arith.constant 0 : i32
    %c0_i32_0 = arith.constant 0 : i32
    %c0_i32_1 = arith.constant 0 : i32
    return %c0_i32, %c0_i32_0 : i32, i32
  }
  func.func @transform_9(%arg0: i32) -> (i32, i32) {
    %c0_i32 = arith.constant 0 : i32
    %c0_i32_0 = arith.constant 0 : i32
    return %arg0, %c0_i32 : i32, i32
  }
}

</mosaic_0001>

<llo_original>
// kernel: conv_autoencoder_forward.1
$region0: #{conv_autoencoder_forward.1}
  #allocation0 [shape = 'u32[]', space=smem, size = 0x4, offset = 0x4, fixed_abs, tag = 'smem constant byte address 0x4 - core index']
  #allocation1 [shape = 'u32[144,128]{1,0:T(1,128)}', space=vmem, size = 0x12000, scoped, tag = 'internal scratch']
  %s0 = inlined_call_operand.vmem [shape: f32[2,1024], index: 0, kind: input, shape index: {}]
  %s1 = inlined_call_operand.hbm [shape: bf16[1024,512], index: 1, kind: input, shape index: {}]
  %s2 = inlined_call_operand.vmem [shape: f32[1,512], index: 2, kind: input, shape index: {}]
  %s3 = inlined_call_operand.hbm [shape: bf16[512,256], index: 3, kind: input, shape index: {}]
  %s4 = inlined_call_operand.vmem [shape: f32[1,256], index: 4, kind: input, shape index: {}]
  %s5 = inlined_call_operand.hbm [shape: bf16[256,512], index: 5, kind: input, shape index: {}]
  %s6 = inlined_call_operand.vmem [shape: f32[1,512], index: 6, kind: input, shape index: {}]
  %s7 = inlined_call_operand.hbm [shape: bf16[512,1024], index: 7, kind: input, shape index: {}]
  %s8 = inlined_call_operand.vmem [shape: f32[1,1024], index: 8, kind: input, shape index: {}]
  %s9 = inlined_call_operand.vmem [shape: f32[2,1024], index: 9, kind: output, shape index: {}]
  %s10 = sld [smem:[#allocation0]]
  $region62: #{conv_autoencoder_forward.1} parent=0
    _
  %s12 = ssub.s32 1, %s10
  %s13 = scalar_select 0, %s12, %s10
  $region1: #{conv_autoencoder_forward.1} parent=0
    #allocation2 [shape = 'u8[1048576]{0}', space=vmem, size = 0x100000, scoped, tag = 'input window, operand 1, single buffered']
    #allocation3 [shape = 's32[1]{0}', space=sflag, size = 0x4, scoped, tag = 'scoped memory for conv_autoencoder_forward.1']
    #allocation4 [shape = 'u8[262144]{0}', space=vmem, size = 0x40000, scoped, tag = 'input window, operand 3, single buffered']
    #allocation5 [shape = 's32[1]{0}', space=sflag, size = 0x4, scoped, tag = 'scoped memory for conv_autoencoder_forward.1']
    #allocation6 [shape = 'u8[262144]{0}', space=vmem, size = 0x40000, scoped, tag = 'input window, operand 5, single buffered']
    #allocation7 [shape = 'u8[1048576]{0}', space=vmem, size = 0x100000, scoped, tag = 'input window, operand 7, single buffered']
    #allocation8 [shape = 's32[1]{0}', space=sflag, size = 0x4, scoped, tag = 'scoped memory for conv_autoencoder_forward.1']
    %14 = vsyncpa [#allocation3], 0
    %15 = vsyncpa [#allocation5], 0
    %16 = vsyncpa [#allocation8], 0
    // Predicated region
    $region2: #{conv_autoencoder_forward.1} parent=1 // pred_check
      _
    $region3: #{conv_autoencoder_forward.1} parent=1 // pred_check_branch
      %18 = sbr.rel (0) target = $region5
    $region4: #{conv_autoencoder_forward.1} parent=1 // pred_region
      _
    $region5: #{conv_autoencoder_forward.1} parent=1 // pred_fallthru
      _
    // Predicated region
    $region6: #{conv_autoencoder_forward.1} parent=1 // pred_check
      _
    $region7: #{conv_autoencoder_forward.1} parent=1 // pred_check_branch
      %20 = sbr.rel (0) target = $region9
    $region8: #{conv_autoencoder_forward.1} parent=1 // pred_region
      %s22 = ssub.s32 32768, 32768
      %23 = vsyncadd [#allocation3], %s22
      %s24 = sshll.u32 [#allocation2], 4
      %s25 = int_to_ptr.vmem [resolvable:$true] %s24
      %30 = dma.hbm_to_vmem [thread:$0]  %s1, 32768, %s25, [#allocation3], 256, 256, 16
    $region9: #{conv_autoencoder_forward.1} parent=1 // pred_fallthru
      _
    // Predicated region
    $region10: #{conv_autoencoder_forward.1} parent=1 // pred_check
      _
    $region11: #{conv_autoencoder_forward.1} parent=1 // pred_check_branch
      %32 = sbr.rel (0) target = $region13
    $region12: #{conv_autoencoder_forward.1} parent=1 // pred_region
      _
    $region13: #{conv_autoencoder_forward.1} parent=1 // pred_fallthru
      _
    // Predicated region
    $region14: #{conv_autoencoder_forward.1} parent=1 // pred_check
      _
    $region15: #{conv_autoencoder_forward.1} parent=1 // pred_check_branch
      %34 = sbr.rel (0) target = $region17
    $region16: #{conv_autoencoder_forward.1} parent=1 // pred_region
      %s36 = ssub.s32 8192, 8192
      %37 = vsyncadd [#allocation5], %s36
      %s38 = sshll.u32 [#allocation4], 4
      %s39 = int_to_ptr.vmem [resolvable:$true] %s38
      %44 = dma.hbm_to_vmem [thread:$0]  %s3, 8192, %s39, [#allocation5], 128, 128, 8
    $region17: #{conv_autoencoder_forward.1} parent=1 // pred_fallthru
      _
    // Predicated region
    $region18: #{conv_autoencoder_forward.1} parent=1 // pred_check
      _
    $region19: #{conv_autoencoder_forward.1} parent=1 // pred_check_branch
      %46 = sbr.rel (0) target = $region21
    $region20: #{conv_autoencoder_forward.1} parent=1 // pred_region
      _
    $region21: #{conv_autoencoder_forward.1} parent=1 // pred_fallthru
      _
    // Predicated region
    $region22: #{conv_autoencoder_forward.1} parent=1 // pred_check
      _
    $region23: #{conv_autoencoder_forward.1} parent=1 // pred_check_branch
      %48 = sbr.rel (0) target = $region25
    $region24: #{conv_autoencoder_forward.1} parent=1 // pred_region
      %s50 = ssub.s32 8192, 8192
      %51 = vsyncadd [#allocation5], %s50
      %s52 = sshll.u32 [#allocation6], 4
      %s53 = int_to_ptr.vmem [resolvable:$true] %s52
      %58 = dma.hbm_to_vmem [thread:$0]  %s5, 8192, %s53, [#allocation5], 256, 256, 16
    $region25: #{conv_autoencoder_forward.1} parent=1 // pred_fallthru
      _
    // Predicated region
    $region26: #{conv_autoencoder_forward.1} parent=1 // pred_check
      _
    $region27: #{conv_autoencoder_forward.1} parent=1 // pred_check_branch
      %60 = sbr.rel (0) target = $region29
    $region28: #{conv_autoencoder_forward.1} parent=1 // pred_region
      _
    $region29: #{conv_autoencoder_forward.1} parent=1 // pred_fallthru
      _
    // Predicated region
    $region30: #{conv_autoencoder_forward.1} parent=1 // pred_check
      _
    $region31: #{conv_autoencoder_forward.1} parent=1 // pred_check_branch
      %62 = sbr.rel (0) target = $region33
    $region32: #{conv_autoencoder_forward.1} parent=1 // pred_region
      %s64 = ssub.s32 32768, 32768
      %65 = vsyncadd [#allocation8], %s64
      %s66 = sshll.u32 [#allocation7], 4
      %s67 = int_to_ptr.vmem [resolvable:$true] %s66
      %72 = dma.hbm_to_vmem [thread:$0]  %s7, 32768, %s67, [#allocation8], 512, 512, 32
    $region33: #{conv_autoencoder_forward.1} parent=1 // pred_fallthru
      _
    // Predicated region
    $region34: #{conv_autoencoder_forward.1} parent=1 // pred_check
      _
    $region35: #{conv_autoencoder_forward.1} parent=1 // pred_check_branch
      %74 = sbr.rel (0) target = $region37
    $region36: #{conv_autoencoder_forward.1} parent=1 // pred_region
      _
    $region37: #{conv_autoencoder_forward.1} parent=1 // pred_fallthru
      _
    // Predicated region
    $region38: #{conv_autoencoder_forward.1} parent=1 // pred_check
      _
    $region39: #{conv_autoencoder_forward.1} parent=1 // pred_check_branch
      %76 = sbr.rel (0) target = $region41
    $region40: #{conv_autoencoder_forward.1} parent=1 // pred_region
      %77 = dma.done [#allocation3], 32768
    $region41: #{conv_autoencoder_forward.1} parent=1 // pred_fallthru
      _
    // Predicated region
    $region42: #{conv_autoencoder_forward.1} parent=1 // pred_check
      _
    $region43: #{conv_autoencoder_forward.1} parent=1 // pred_check_branch
      %79 = sbr.rel (0) target = $region45
    $region44: #{conv_autoencoder_forward.1} parent=1 // pred_region
      %80 = dma.done [#allocation5], 8192
    $region45: #{conv_autoencoder_forward.1} parent=1 // pred_fallthru
      _
    // Predicated region
    $region46: #{conv_autoencoder_forward.1} parent=1 // pred_check
      _
    $region47: #{conv_autoencoder_forward.1} parent=1 // pred_check_branch
      %82 = sbr.rel (0) target = $region49
    $region48: #{conv_autoencoder_forward.1} parent=1 // pred_region
      %83 = dma.done [#allocation5], 8192
    $region49: #{conv_autoencoder_forward.1} parent=1 // pred_fallthru
      _
    // Predicated region
    $region50: #{conv_autoencoder_forward.1} parent=1 // pred_check
      _
    $region51: #{conv_autoencoder_forward.1} parent=1 // pred_check_branch
      %85 = sbr.rel (0) target = $region53
    $region52: #{conv_autoencoder_forward.1} parent=1 // pred_region
      %86 = dma.done [#allocation8], 32768
    $region53: #{conv_autoencoder_forward.1} parent=1 // pred_fallthru
      _
    %v87 = vld [vmem:[%s0] sm:$0xff]
    %v88 = vld [vmem:[%s0 + $0x8] sm:$0xff]
    %v91 = vcombine.high %v87, %v87
    %v93 = vunpack.c.l.s4 1983009808
    %v94 = vunpack.c.0.s8 %v93
    %v95 = vlaneseq
    %v96 = vshrl.u32 %v95, 7
    %v97 = vsub.s32 %v94, %v96
    %v98 = vrot.slane %v87, %v97
    %v100 = vunpack.c.l.s4 1983009808
    %v101 = vunpack.c.0.s8 %v100
    %v102 = vlaneseq
    %v103 = vshrl.u32 %v102, 7
    %v104 = vsub.s32 %v101, %v103
    %v105 = vrot.slane %v91, %v104
    %v106 = vcombine.high %v98, %v98
    %v107 = vcombine.high %v105, %v105
    %v108 = vcombine.high %v88, %v88
    %v110 = vunpack.c.l.s4 1983009808
    %v111 = vunpack.c.0.s8 %v110
    %v112 = vlaneseq
    %v113 = vshrl.u32 %v112, 7
    %v114 = vsub.s32 %v111, %v113
    %v115 = vrot.slane %v88, %v114
    %v117 = vunpack.c.l.s4 1983009808
    %v118 = vunpack.c.0.s8 %v117
    %v119 = vlaneseq
    %v120 = vshrl.u32 %v119, 7
    %v121 = vsub.s32 %v118, %v120
    %v122 = vrot.slane %v108, %v121
    %v123 = vcombine.high %v115, %v115
    %v124 = vcombine.high %v122, %v122
    %v133 = vpack.c.bf16 %v98, %v98
    %v134 = vpack.c.bf16 %v106, %v106
    %v135 = vpack.c.bf16 %v105, %v105
    %v136 = vpack.c.bf16 %v107, %v107
    %v137 = vpack.c.bf16 %v115, %v115
    %v138 = vpack.c.bf16 %v123, %v123
    %v139 = vpack.c.bf16 %v122, %v122
    %v140 = vpack.c.bf16 %v124, %v124
    %v141 = vld [vmem:[#allocation2] sm:$0xff]
    %v142 = vld [vmem:[#allocation2 + $0x8] sm:$0xff]
    %v143 = vld [vmem:[#allocation2 + $0x10] sm:$0xff]
    %v144 = vld [vmem:[#allocation2 + $0x18] sm:$0xff]
    %v145 = vld [vmem:[#allocation2 + $0x20] sm:$0xff]
    %v146 = vld [vmem:[#allocation2 + $0x28] sm:$0xff]
    %v147 = vld [vmem:[#allocation2 + $0x30] sm:$0xff]
    %v148 = vld [vmem:[#allocation2 + $0x38] sm:$0xff]
    %v149 = vld [vmem:[#allocation2 + $0x40] sm:$0xff]
    %v150 = vld [vmem:[#allocation2 + $0x48] sm:$0xff]
    %v151 = vld [vmem:[#allocation2 + $0x50] sm:$0xff]
    %v152 = vld [vmem:[#allocation2 + $0x58] sm:$0xff]
    %v153 = vld [vmem:[#allocation2 + $0x60] sm:$0xff]
    %v154 = vld [vmem:[#allocation2 + $0x68] sm:$0xff]
    %v155 = vld [vmem:[#allocation2 + $0x70] sm:$0xff]
    %v156 = vld [vmem:[#allocation2 + $0x78] sm:$0xff]
    %v157 = vld [vmem:[#allocation2 + $0x80] sm:$0xff]
    %v158 = vld [vmem:[#allocation2 + $0x88] sm:$0xff]
    %v159 = vld [vmem:[#allocation2 + $0x90] sm:$0xff]
    %v160 = vld [vmem:[#allocation2 + $0x98] sm:$0xff]
    %v161 = vld [vmem:[#allocation2 + $0xa0] sm:$0xff]
    %v162 = vld [vmem:[#allocation2 + $0xa8] sm:$0xff]
    %v163 = vld [vmem:[#allocation2 + $0xb0] sm:$0xff]
    %v164 = vld [vmem:[#allocation2 + $0xb8] sm:$0xff]
    %v165 = vld [vmem:[#allocation2 + $0xc0] sm:$0xff]
    %v166 = vld [vmem:[#allocation2 + $0xc8] sm:$0xff]
    %v167 = vld [vmem:[#allocation2 + $0xd0] sm:$0xff]
    %v168 = vld [vmem:[#allocation2 + $0xd8] sm:$0xff]
    %v169 = vld [vmem:[#allocation2 + $0xe0] sm:$0xff]
    %v170 = vld [vmem:[#allocation2 + $0xe8] sm:$0xff]
    %v171 = vld [vmem:[#allocation2 + $0xf0] sm:$0xff]
    %v172 = vld [vmem:[#allocation2 + $0xf8] sm:$0xff]
    %v173 = vld [vmem:[#allocation2 + $0x100] sm:$0xff]
    %v174 = vld [vmem:[#allocation2 + $0x108] sm:$0xff]
    %v175 = vld [vmem:[#allocation2 + $0x110] sm:$0xff]
    %v176 = vld [vmem:[#allocation2 + $0x118] sm:$0xff]
    %v177 = vld [vmem:[#allocation2 + $0x120] sm:$0xff]
    %v178 = vld [vmem:[#allocation2 + $0x128] sm:$0xff]
    %v179 = vld [vmem:[#allocation2 + $0x130] sm:$0xff]
    %v180 = vld [vmem:[#allocation2 + $0x138] sm:$0xff]
    %v181 = vld [vmem:[#allocation2 + $0x140] sm:$0xff]
    %v182 = vld [vmem:[#allocation2 + $0x148] sm:$0xff]
    %v183 = vld [vmem:[#allocation2 + $0x150] sm:$0xff]
    %v184 = vld [vmem:[#allocation2 + $0x158] sm:$0xff]
    %v185 = vld [vmem:[#allocation2 + $0x160] sm:$0xff]
    %v186 = vld [vmem:[#allocation2 + $0x168] sm:$0xff]
    %v187 = vld [vmem:[#allocation2 + $0x170] sm:$0xff]
    %v188 = vld [vmem:[#allocation2 + $0x178] sm:$0xff]
    %v189 = vld [vmem:[#allocation2 + $0x180] sm:$0xff]
    %v190 = vld [vmem:[#allocation2 + $0x188] sm:$0xff]
    %v191 = vld [vmem:[#allocation2 + $0x190] sm:$0xff]
    %v192 = vld [vmem:[#allocation2 + $0x198] sm:$0xff]
    %v193 = vld [vmem:[#allocation2 + $0x1a0] sm:$0xff]
    %v194 = vld [vmem:[#allocation2 + $0x1a8] sm:$0xff]
    %v195 = vld [vmem:[#allocation2 + $0x1b0] sm:$0xff]
    %v196 = vld [vmem:[#allocation2 + $0x1b8] sm:$0xff]
    %v197 = vld [vmem:[#allocation2 + $0x1c0] sm:$0xff]
    %v198 = vld [vmem:[#allocation2 + $0x1c8] sm:$0xff]
    %v199 = vld [vmem:[#allocation2 + $0x1d0] sm:$0xff]
    %v200 = vld [vmem:[#allocation2 + $0x1d8] sm:$0xff]
    %v201 = vld [vmem:[#allocation2 + $0x1e0] sm:$0xff]
    %v202 = vld [vmem:[#allocation2 + $0x1e8] sm:$0xff]
    %v203 = vld [vmem:[#allocation2 + $0x1f0] sm:$0xff]
    %v204 = vld [vmem:[#allocation2 + $0x1f8] sm:$0xff]
    %v205 = vld [vmem:[#allocation2 + $0x200] sm:$0xff]
    %v206 = vld [vmem:[#allocation2 + $0x208] sm:$0xff]
    %v207 = vld [vmem:[#allocation2 + $0x210] sm:$0xff]
    %v208 = vld [vmem:[#allocation2 + $0x218] sm:$0xff]
    %v209 = vld [vmem:[#allocation2 + $0x220] sm:$0xff]
    %v210 = vld [vmem:[#allocation2 + $0x228] sm:$0xff]
    %v211 = vld [vmem:[#allocation2 + $0x230] sm:$0xff]
    %v212 = vld [vmem:[#allocation2 + $0x238] sm:$0xff]
    %v213 = vld [vmem:[#allocation2 + $0x240] sm:$0xff]
    %v214 = vld [vmem:[#allocation2 + $0x248] sm:$0xff]
    %v215 = vld [vmem:[#allocation2 + $0x250] sm:$0xff]
    %v216 = vld [vmem:[#allocation2 + $0x258] sm:$0xff]
    %v217 = vld [vmem:[#allocation2 + $0x260] sm:$0xff]
    %v218 = vld [vmem:[#allocation2 + $0x268] sm:$0xff]
    %v219 = vld [vmem:[#allocation2 + $0x270] sm:$0xff]
    %v220 = vld [vmem:[#allocation2 + $0x278] sm:$0xff]
    %v221 = vld [vmem:[#allocation2 + $0x280] sm:$0xff]
    %v222 = vld [vmem:[#allocation2 + $0x288] sm:$0xff]
    %v223 = vld [vmem:[#allocation2 + $0x290] sm:$0xff]
    %v224 = vld [vmem:[#allocation2 + $0x298] sm:$0xff]
    %v225 = vld [vmem:[#allocation2 + $0x2a0] sm:$0xff]
    %v226 = vld [vmem:[#allocation2 + $0x2a8] sm:$0xff]
    %v227 = vld [vmem:[#allocation2 + $0x2b0] sm:$0xff]
    %v228 = vld [vmem:[#allocation2 + $0x2b8] sm:$0xff]
    %v229 = vld [vmem:[#allocation2 + $0x2c0] sm:$0xff]
    %v230 = vld [vmem:[#allocation2 + $0x2c8] sm:$0xff]
    %v231 = vld [vmem:[#allocation2 + $0x2d0] sm:$0xff]
    %v232 = vld [vmem:[#allocation2 + $0x2d8] sm:$0xff]
    %v233 = vld [vmem:[#allocation2 + $0x2e0] sm:$0xff]
    %v234 = vld [vmem:[#allocation2 + $0x2e8] sm:$0xff]
    %v235 = vld [vmem:[#allocation2 + $0x2f0] sm:$0xff]
    %v236 = vld [vmem:[#allocation2 + $0x2f8] sm:$0xff]
    %v237 = vld [vmem:[#allocation2 + $0x300] sm:$0xff]
    %v238 = vld [vmem:[#allocation2 + $0x308] sm:$0xff]
    %v239 = vld [vmem:[#allocation2 + $0x310] sm:$0xff]
    %v240 = vld [vmem:[#allocation2 + $0x318] sm:$0xff]
    %v241 = vld [vmem:[#allocation2 + $0x320] sm:$0xff]
    %v242 = vld [vmem:[#allocation2 + $0x328] sm:$0xff]
    %v243 = vld [vmem:[#allocation2 + $0x330] sm:$0xff]
    %v244 = vld [vmem:[#allocation2 + $0x338] sm:$0xff]
    %v245 = vld [vmem:[#allocation2 + $0x340] sm:$0xff]
    %v246 = vld [vmem:[#allocation2 + $0x348] sm:$0xff]
    %v247 = vld [vmem:[#allocation2 + $0x350] sm:$0xff]
    %v248 = vld [vmem:[#allocation2 + $0x358] sm:$0xff]
    %v249 = vld [vmem:[#allocation2 + $0x360] sm:$0xff]
    %v250 = vld [vmem:[#allocation2 + $0x368] sm:$0xff]
    %v251 = vld [vmem:[#allocation2 + $0x370] sm:$0xff]
    %v252 = vld [vmem:[#allocation2 + $0x378] sm:$0xff]
    %v253 = vld [vmem:[#allocation2 + $0x380] sm:$0xff]
    %v254 = vld [vmem:[#allocation2 + $0x388] sm:$0xff]
    %v255 = vld [vmem:[#allocation2 + $0x390] sm:$0xff]
    %v256 = vld [vmem:[#allocation2 + $0x398] sm:$0xff]
    %v257 = vld [vmem:[#allocation2 + $0x3a0] sm:$0xff]
    %v258 = vld [vmem:[#allocation2 + $0x3a8] sm:$0xff]
    %v259 = vld [vmem:[#allocation2 + $0x3b0] sm:$0xff]
    %v260 = vld [vmem:[#allocation2 + $0x3b8] sm:$0xff]
    %v261 = vld [vmem:[#allocation2 + $0x3c0] sm:$0xff]
    %v262 = vld [vmem:[#allocation2 + $0x3c8] sm:$0xff]
    %v263 = vld [vmem:[#allocation2 + $0x3d0] sm:$0xff]
    %v264 = vld [vmem:[#allocation2 + $0x3d8] sm:$0xff]
    %v265 = vld [vmem:[#allocation2 + $0x3e0] sm:$0xff]
    %v266 = vld [vmem:[#allocation2 + $0x3e8] sm:$0xff]
    %v267 = vld [vmem:[#allocation2 + $0x3f0] sm:$0xff]
    %v268 = vld [vmem:[#allocation2 + $0x3f8] sm:$0xff]
    %v269 = vld [vmem:[#allocation2 + $0x400] sm:$0xff]
    %v270 = vld [vmem:[#allocation2 + $0x408] sm:$0xff]
    %v271 = vld [vmem:[#allocation2 + $0x410] sm:$0xff]
    %v272 = vld [vmem:[#allocation2 + $0x418] sm:$0xff]
    %v273 = vld [vmem:[#allocation2 + $0x420] sm:$0xff]
    %v274 = vld [vmem:[#allocation2 + $0x428] sm:$0xff]
    %v275 = vld [vmem:[#allocation2 + $0x430] sm:$0xff]
    %v276 = vld [vmem:[#allocation2 + $0x438] sm:$0xff]
    %v277 = vld [vmem:[#allocation2 + $0x440] sm:$0xff]
    %v278 = vld [vmem:[#allocation2 + $0x448] sm:$0xff]
    %v279 = vld [vmem:[#allocation2 + $0x450] sm:$0xff]
    %v280 = vld [vmem:[#allocation2 + $0x458] sm:$0xff]
    %v281 = vld [vmem:[#allocation2 + $0x460] sm:$0xff]
    %v282 = vld [vmem:[#allocation2 + $0x468] sm:$0xff]
    %v283 = vld [vmem:[#allocation2 + $0x470] sm:$0xff]
    %v284 = vld [vmem:[#allocation2 + $0x478] sm:$0xff]
    %v285 = vld [vmem:[#allocation2 + $0x480] sm:$0xff]
    %v286 = vld [vmem:[#allocation2 + $0x488] sm:$0xff]
    %v287 = vld [vmem:[#allocation2 + $0x490] sm:$0xff]
    %v288 = vld [vmem:[#allocation2 + $0x498] sm:$0xff]
    %v289 = vld [vmem:[#allocation2 + $0x4a0] sm:$0xff]
    %v290 = vld [vmem:[#allocation2 + $0x4a8] sm:$0xff]
    %v291 = vld [vmem:[#allocation2 + $0x4b0] sm:$0xff]
    %v292 = vld [vmem:[#allocation2 + $0x4b8] sm:$0xff]
    %v293 = vld [vmem:[#allocation2 + $0x4c0] sm:$0xff]
    %v294 = vld [vmem:[#allocation2 + $0x4c8] sm:$0xff]
    %v295 = vld [vmem:[#allocation2 + $0x4d0] sm:$0xff]
    %v296 = vld [vmem:[#allocation2 + $0x4d8] sm:$0xff]
    %v297 = vld [vmem:[#allocation2 + $0x4e0] sm:$0xff]
    %v298 = vld [vmem:[#allocation2 + $0x4e8] sm:$0xff]
    %v299 = vld [vmem:[#allocation2 + $0x4f0] sm:$0xff]
    %v300 = vld [vmem:[#allocation2 + $0x4f8] sm:$0xff]
    %v301 = vld [vmem:[#allocation2 + $0x500] sm:$0xff]
    %v302 = vld [vmem:[#allocation2 + $0x508] sm:$0xff]
    %v303 = vld [vmem:[#allocation2 + $0x510] sm:$0xff]
    %v304 = vld [vmem:[#allocation2 + $0x518] sm:$0xff]
    %v305 = vld [vmem:[#allocation2 + $0x520] sm:$0xff]
    %v306 = vld [vmem:[#allocation2 + $0x528] sm:$0xff]
    %v307 = vld [vmem:[#allocation2 + $0x530] sm:$0xff]
    %v308 = vld [vmem:[#allocation2 + $0x538] sm:$0xff]
    %v309 = vld [vmem:[#allocation2 + $0x540] sm:$0xff]
    %v310 = vld [vmem:[#allocation2 + $0x548] sm:$0xff]
    %v311 = vld [vmem:[#allocation2 + $0x550] sm:$0xff]
    %v312 = vld [vmem:[#allocation2 + $0x558] sm:$0xff]
    %v313 = vld [vmem:[#allocation2 + $0x560] sm:$0xff]
    %v314 = vld [vmem:[#allocation2 + $0x568] sm:$0xff]
    %v315 = vld [vmem:[#allocation2 + $0x570] sm:$0xff]
    %v316 = vld [vmem:[#allocation2 + $0x578] sm:$0xff]
    %v317 = vld [vmem:[#allocation2 + $0x580] sm:$0xff]
    %v318 = vld [vmem:[#allocation2 + $0x588] sm:$0xff]
    %v319 = vld [vmem:[#allocation2 + $0x590] sm:$0xff]
    %v320 = vld [vmem:[#allocation2 + $0x598] sm:$0xff]
    %v321 = vld [vmem:[#allocation2 + $0x5a0] sm:$0xff]
    %v322 = vld [vmem:[#allocation2 + $0x5a8] sm:$0xff]
    %v323 = vld [vmem:[#allocation2 + $0x5b0] sm:$0xff]
    %v324 = vld [vmem:[#allocation2 + $0x5b8] sm:$0xff]
    %v325 = vld [vmem:[#allocation2 + $0x5c0] sm:$0xff]
    %v326 = vld [vmem:[#allocation2 + $0x5c8] sm:$0xff]
    %v327 = vld [vmem:[#allocation2 + $0x5d0] sm:$0xff]
    %v328 = vld [vmem:[#allocation2 + $0x5d8] sm:$0xff]
    %v329 = vld [vmem:[#allocation2 + $0x5e0] sm:$0xff]
    %v330 = vld [vmem:[#allocation2 + $0x5e8] sm:$0xff]
    %v331 = vld [vmem:[#allocation2 + $0x5f0] sm:$0xff]
    %v332 = vld [vmem:[#allocation2 + $0x5f8] sm:$0xff]
    %v333 = vld [vmem:[#allocation2 + $0x600] sm:$0xff]
    %v334 = vld [vmem:[#allocation2 + $0x608] sm:$0xff]
    %v335 = vld [vmem:[#allocation2 + $0x610] sm:$0xff]
    %v336 = vld [vmem:[#allocation2 + $0x618] sm:$0xff]
    %v337 = vld [vmem:[#allocation2 + $0x620] sm:$0xff]
    %v338 = vld [vmem:[#allocation2 + $0x628] sm:$0xff]
    %v339 = vld [vmem:[#allocation2 + $0x630] sm:$0xff]
    %v340 = vld [vmem:[#allocation2 + $0x638] sm:$0xff]
    %v341 = vld [vmem:[#allocation2 + $0x640] sm:$0xff]
    %v342 = vld [vmem:[#allocation2 + $0x648] sm:$0xff]
    %v343 = vld [vmem:[#allocation2 + $0x650] sm:$0xff]
    %v344 = vld [vmem:[#allocation2 + $0x658] sm:$0xff]
    %v345 = vld [vmem:[#allocation2 + $0x660] sm:$0xff]
    %v346 = vld [vmem:[#allocation2 + $0x668] sm:$0xff]
    %v347 = vld [vmem:[#allocation2 + $0x670] sm:$0xff]
    %v348 = vld [vmem:[#allocation2 + $0x678] sm:$0xff]
    %v349 = vld [vmem:[#allocation2 + $0x680] sm:$0xff]
    %v350 = vld [vmem:[#allocation2 + $0x688] sm:$0xff]
    %v351 = vld [vmem:[#allocation2 + $0x690] sm:$0xff]
    %v352 = vld [vmem:[#allocation2 + $0x698] sm:$0xff]
    %v353 = vld [vmem:[#allocation2 + $0x6a0] sm:$0xff]
    %v354 = vld [vmem:[#allocation2 + $0x6a8] sm:$0xff]
    %v355 = vld [vmem:[#allocation2 + $0x6b0] sm:$0xff]
    %v356 = vld [vmem:[#allocation2 + $0x6b8] sm:$0xff]
    %v357 = vld [vmem:[#allocation2 + $0x6c0] sm:$0xff]
    %v358 = vld [vmem:[#allocation2 + $0x6c8] sm:$0xff]
    %v359 = vld [vmem:[#allocation2 + $0x6d0] sm:$0xff]
    %v360 = vld [vmem:[#allocation2 + $0x6d8] sm:$0xff]
    %v361 = vld [vmem:[#allocation2 + $0x6e0] sm:$0xff]
    %v362 = vld [vmem:[#allocation2 + $0x6e8] sm:$0xff]
    %v363 = vld [vmem:[#allocation2 + $0x6f0] sm:$0xff]
    %v364 = vld [vmem:[#allocation2 + $0x6f8] sm:$0xff]
    %v365 = vld [vmem:[#allocation2 + $0x700] sm:$0xff]
    %v366 = vld [vmem:[#allocation2 + $0x708] sm:$0xff]
    %v367 = vld [vmem:[#allocation2 + $0x710] sm:$0xff]
    %v368 = vld [vmem:[#allocation2 + $0x718] sm:$0xff]
    %v369 = vld [vmem:[#allocation2 + $0x720] sm:$0xff]
    %v370 = vld [vmem:[#allocation2 + $0x728] sm:$0xff]
    %v371 = vld [vmem:[#allocation2 + $0x730] sm:$0xff]
    %v372 = vld [vmem:[#allocation2 + $0x738] sm:$0xff]
    %v373 = vld [vmem:[#allocation2 + $0x740] sm:$0xff]
    %v374 = vld [vmem:[#allocation2 + $0x748] sm:$0xff]
    %v375 = vld [vmem:[#allocation2 + $0x750] sm:$0xff]
    %v376 = vld [vmem:[#allocation2 + $0x758] sm:$0xff]
    %v377 = vld [vmem:[#allocation2 + $0x760] sm:$0xff]
    %v378 = vld [vmem:[#allocation2 + $0x768] sm:$0xff]
    %v379 = vld [vmem:[#allocation2 + $0x770] sm:$0xff]
    %v380 = vld [vmem:[#allocation2 + $0x778] sm:$0xff]
    %v381 = vld [vmem:[#allocation2 + $0x780] sm:$0xff]
    %v382 = vld [vmem:[#allocation2 + $0x788] sm:$0xff]
    %v383 = vld [vmem:[#allocation2 + $0x790] sm:$0xff]
    %v384 = vld [vmem:[#allocation2 + $0x798] sm:$0xff]
    %v385 = vld [vmem:[#allocation2 + $0x7a0] sm:$0xff]
    %v386 = vld [vmem:[#allocation2 + $0x7a8] sm:$0xff]
    %v387 = vld [vmem:[#allocation2 + $0x7b0] sm:$0xff]
    %v388 = vld [vmem:[#allocation2 + $0x7b8] sm:$0xff]
    %v389 = vld [vmem:[#allocation2 + $0x7c0] sm:$0xff]
    %v390 = vld [vmem:[#allocation2 + $0x7c8] sm:$0xff]
    %v391 = vld [vmem:[#allocation2 + $0x7d0] sm:$0xff]
    %v392 = vld [vmem:[#allocation2 + $0x7d8] sm:$0xff]
    %v393 = vld [vmem:[#allocation2 + $0x7e0] sm:$0xff]
    %v394 = vld [vmem:[#allocation2 + $0x7e8] sm:$0xff]
    %v395 = vld [vmem:[#allocation2 + $0x7f0] sm:$0xff]
    %v396 = vld [vmem:[#allocation2 + $0x7f8] sm:$0xff]
    %v397 = vld [vmem:[%s2] sm:$0xf]
    %v399 = vlaneseq
    %v400 = vshrl.u32 %v399, 7
    %v401 = vsub.s32 0, %v400
    %v402 = vrot.slane %v397, %v401
    %v403 = vlaneseq
    %v404 = vshrl.u32 %v403, 7
    %v405 = vsub.s32 1, %v404
    %v406 = vrot.slane %v397, %v405
    %v407 = vlaneseq
    %v408 = vshrl.u32 %v407, 7
    %v409 = vsub.s32 2, %v408
    %v410 = vrot.slane %v397, %v409
    %v411 = vlaneseq
    %v412 = vshrl.u32 %v411, 7
    %v413 = vsub.s32 3, %v412
    %v414 = vrot.slane %v397, %v413
    %v675 = vunpack.c.l.b16 %v141
    %v676 = vunpack.c.h.b16 %v141
    %v677 = vunpack.c.l.b16 %v142
    %v678 = vunpack.c.h.b16 %v142
    %v679 = vunpack.c.l.b16 %v143
    %v680 = vunpack.c.h.b16 %v143
    %v681 = vunpack.c.l.b16 %v144
    %v682 = vunpack.c.h.b16 %v144
    %v683 = vunpack.c.l.b16 %v145
    %v684 = vunpack.c.h.b16 %v145
    %v685 = vunpack.c.l.b16 %v146
    %v686 = vunpack.c.h.b16 %v146
    %v687 = vunpack.c.l.b16 %v147
    %v688 = vunpack.c.h.b16 %v147
    %v689 = vunpack.c.l.b16 %v148
    %v690 = vunpack.c.h.b16 %v148
    %v691 = vunpack.c.l.b16 %v149
    %v692 = vunpack.c.h.b16 %v149
    %v693 = vunpack.c.l.b16 %v150
    %v694 = vunpack.c.h.b16 %v150
    %v695 = vunpack.c.l.b16 %v151
    %v696 = vunpack.c.h.b16 %v151
    %v697 = vunpack.c.l.b16 %v152
    %v698 = vunpack.c.h.b16 %v152
    %v699 = vunpack.c.l.b16 %v153
    %v700 = vunpack.c.h.b16 %v153
    %v701 = vunpack.c.l.b16 %v154
    %v702 = vunpack.c.h.b16 %v154
    %v703 = vunpack.c.l.b16 %v155
    %v704 = vunpack.c.h.b16 %v155
    %v705 = vunpack.c.l.b16 %v156
    %v706 = vunpack.c.h.b16 %v156
    %v707 = vunpack.c.l.b16 %v157
    %v708 = vunpack.c.h.b16 %v157
    %v709 = vunpack.c.l.b16 %v158
    %v710 = vunpack.c.h.b16 %v158
    %v711 = vunpack.c.l.b16 %v159
    %v712 = vunpack.c.h.b16 %v159
    %v713 = vunpack.c.l.b16 %v160
    %v714 = vunpack.c.h.b16 %v160
    %v715 = vunpack.c.l.b16 %v161
    %v716 = vunpack.c.h.b16 %v161
    %v717 = vunpack.c.l.b16 %v162
    %v718 = vunpack.c.h.b16 %v162
    %v719 = vunpack.c.l.b16 %v163
    %v720 = vunpack.c.h.b16 %v163
    %v721 = vunpack.c.l.b16 %v164
    %v722 = vunpack.c.h.b16 %v164
    %v723 = vunpack.c.l.b16 %v165
    %v724 = vunpack.c.h.b16 %v165
    %v725 = vunpack.c.l.b16 %v166
    %v726 = vunpack.c.h.b16 %v166
    %v727 = vunpack.c.l.b16 %v167
    %v728 = vunpack.c.h.b16 %v167
    %v729 = vunpack.c.l.b16 %v168
    %v730 = vunpack.c.h.b16 %v168
    %v731 = vunpack.c.l.b16 %v169
    %v732 = vunpack.c.h.b16 %v169
    %v733 = vunpack.c.l.b16 %v170
    %v734 = vunpack.c.h.b16 %v170
    %v735 = vunpack.c.l.b16 %v171
    %v736 = vunpack.c.h.b16 %v171
    %v737 = vunpack.c.l.b16 %v172
    %v738 = vunpack.c.h.b16 %v172
    %v739 = vunpack.c.l.b16 %v173
    %v740 = vunpack.c.h.b16 %v173
    %v741 = vunpack.c.l.b16 %v174
    %v742 = vunpack.c.h.b16 %v174
    %v743 = vunpack.c.l.b16 %v175
    %v744 = vunpack.c.h.b16 %v175
    %v745 = vunpack.c.l.b16 %v176
    %v746 = vunpack.c.h.b16 %v176
    %v747 = vunpack.c.l.b16 %v177
    %v748 = vunpack.c.h.b16 %v177
    %v749 = vunpack.c.l.b16 %v178
    %v750 = vunpack.c.h.b16 %v178
    %v751 = vunpack.c.l.b16 %v179
    %v752 = vunpack.c.h.b16 %v179
    %v753 = vunpack.c.l.b16 %v180
    %v754 = vunpack.c.h.b16 %v180
    %v755 = vunpack.c.l.b16 %v181
    %v756 = vunpack.c.h.b16 %v181
    %v757 = vunpack.c.l.b16 %v182
    %v758 = vunpack.c.h.b16 %v182
    %v759 = vunpack.c.l.b16 %v183
    %v760 = vunpack.c.h.b16 %v183
    %v761 = vunpack.c.l.b16 %v184
    %v762 = vunpack.c.h.b16 %v184
    %v763 = vunpack.c.l.b16 %v185
    %v764 = vunpack.c.h.b16 %v185
    %v765 = vunpack.c.l.b16 %v186
    %v766 = vunpack.c.h.b16 %v186
    %v767 = vunpack.c.l.b16 %v187
    %v768 = vunpack.c.h.b16 %v187
    %v769 = vunpack.c.l.b16 %v188
    %v770 = vunpack.c.h.b16 %v188
    %v771 = vunpack.c.l.b16 %v189
    %v772 = vunpack.c.h.b16 %v189
    %v773 = vunpack.c.l.b16 %v190
    %v774 = vunpack.c.h.b16 %v190
    %v775 = vunpack.c.l.b16 %v191
    %v776 = vunpack.c.h.b16 %v191
    %v777 = vunpack.c.l.b16 %v192
    %v778 = vunpack.c.h.b16 %v192
    %v779 = vunpack.c.l.b16 %v193
    %v780 = vunpack.c.h.b16 %v193
    %v781 = vunpack.c.l.b16 %v194
    %v782 = vunpack.c.h.b16 %v194
    %v783 = vunpack.c.l.b16 %v195
    %v784 = vunpack.c.h.b16 %v195
    %v785 = vunpack.c.l.b16 %v196
    %v786 = vunpack.c.h.b16 %v196
    %v787 = vunpack.c.l.b16 %v197
    %v788 = vunpack.c.h.b16 %v197
    %v789 = vunpack.c.l.b16 %v198
    %v790 = vunpack.c.h.b16 %v198
    %v791 = vunpack.c.l.b16 %v199
    %v792 = vunpack.c.h.b16 %v199
    %v793 = vunpack.c.l.b16 %v200
    %v794 = vunpack.c.h.b16 %v200
    %v795 = vunpack.c.l.b16 %v201
    %v796 = vunpack.c.h.b16 %v201
    %v797 = vunpack.c.l.b16 %v202
    %v798 = vunpack.c.h.b16 %v202
    %v799 = vunpack.c.l.b16 %v203
    %v800 = vunpack.c.h.b16 %v203
    %v801 = vunpack.c.l.b16 %v204
    %v802 = vunpack.c.h.b16 %v204
    %v803 = vunpack.c.l.b16 %v205
    %v804 = vunpack.c.h.b16 %v205
    %v805 = vunpack.c.l.b16 %v206
    %v806 = vunpack.c.h.b16 %v206
    %v807 = vunpack.c.l.b16 %v207
    %v808 = vunpack.c.h.b16 %v207
    %v809 = vunpack.c.l.b16 %v208
    %v810 = vunpack.c.h.b16 %v208
    %v811 = vunpack.c.l.b16 %v209
    %v812 = vunpack.c.h.b16 %v209
    %v813 = vunpack.c.l.b16 %v210
    %v814 = vunpack.c.h.b16 %v210
    %v815 = vunpack.c.l.b16 %v211
    %v816 = vunpack.c.h.b16 %v211
    %v817 = vunpack.c.l.b16 %v212
    %v818 = vunpack.c.h.b16 %v212
    %v819 = vunpack.c.l.b16 %v213
    %v820 = vunpack.c.h.b16 %v213
    %v821 = vunpack.c.l.b16 %v214
    %v822 = vunpack.c.h.b16 %v214
    %v823 = vunpack.c.l.b16 %v215
    %v824 = vunpack.c.h.b16 %v215
    %v825 = vunpack.c.l.b16 %v216
    %v826 = vunpack.c.h.b16 %v216
    %v827 = vunpack.c.l.b16 %v217
    %v828 = vunpack.c.h.b16 %v217
    %v829 = vunpack.c.l.b16 %v218
    %v830 = vunpack.c.h.b16 %v218
    %v831 = vunpack.c.l.b16 %v219
    %v832 = vunpack.c.h.b16 %v219
    %v833 = vunpack.c.l.b16 %v220
    %v834 = vunpack.c.h.b16 %v220
    %v835 = vunpack.c.l.b16 %v221
    %v836 = vunpack.c.h.b16 %v221
    %v837 = vunpack.c.l.b16 %v222
    %v838 = vunpack.c.h.b16 %v222
    %v839 = vunpack.c.l.b16 %v223
    %v840 = vunpack.c.h.b16 %v223
    %v841 = vunpack.c.l.b16 %v224
    %v842 = vunpack.c.h.b16 %v224
    %v843 = vunpack.c.l.b16 %v225
    %v844 = vunpack.c.h.b16 %v225
    %v845 = vunpack.c.l.b16 %v226
    %v846 = vunpack.c.h.b16 %v226
    %v847 = vunpack.c.l.b16 %v227
    %v848 = vunpack.c.h.b16 %v227
    %v849 = vunpack.c.l.b16 %v228
    %v850 = vunpack.c.h.b16 %v228
    %v851 = vunpack.c.l.b16 %v229
    %v852 = vunpack.c.h.b16 %v229
    %v853 = vunpack.c.l.b16 %v230
    %v854 = vunpack.c.h.b16 %v230
    %v855 = vunpack.c.l.b16 %v231
    %v856 = vunpack.c.h.b16 %v231
    %v857 = vunpack.c.l.b16 %v232
    %v858 = vunpack.c.h.b16 %v232
    %v859 = vunpack.c.l.b16 %v233
    %v860 = vunpack.c.h.b16 %v233
    %v861 = vunpack.c.l.b16 %v234
    %v862 = vunpack.c.h.b16 %v234
    %v863 = vunpack.c.l.b16 %v235
    %v864 = vunpack.c.h.b16 %v235
    %v865 = vunpack.c.l.b16 %v236
    %v866 = vunpack.c.h.b16 %v236
    %v867 = vunpack.c.l.b16 %v237
    %v868 = vunpack.c.h.b16 %v237
    %v869 = vunpack.c.l.b16 %v238
    %v870 = vunpack.c.h.b16 %v238
    %v871 = vunpack.c.l.b16 %v239
    %v872 = vunpack.c.h.b16 %v239
    %v873 = vunpack.c.l.b16 %v240
    %v874 = vunpack.c.h.b16 %v240
    %v875 = vunpack.c.l.b16 %v241
    %v876 = vunpack.c.h.b16 %v241
    %v877 = vunpack.c.l.b16 %v242
    %v878 = vunpack.c.h.b16 %v242
    %v879 = vunpack.c.l.b16 %v243
    %v880 = vunpack.c.h.b16 %v243
    %v881 = vunpack.c.l.b16 %v244
    %v882 = vunpack.c.h.b16 %v244
    %v883 = vunpack.c.l.b16 %v245
    %v884 = vunpack.c.h.b16 %v245
    %v885 = vunpack.c.l.b16 %v246
    %v886 = vunpack.c.h.b16 %v246
    %v887 = vunpack.c.l.b16 %v247
    %v888 = vunpack.c.h.b16 %v247
    %v889 = vunpack.c.l.b16 %v248
    %v890 = vunpack.c.h.b16 %v248
    %v891 = vunpack.c.l.b16 %v249
    %v892 = vunpack.c.h.b16 %v249
    %v893 = vunpack.c.l.b16 %v250
    %v894 = vunpack.c.h.b16 %v250
    %v895 = vunpack.c.l.b16 %v251
    %v896 = vunpack.c.h.b16 %v251
    %v897 = vunpack.c.l.b16 %v252
    %v898 = vunpack.c.h.b16 %v252
    %v899 = vunpack.c.l.b16 %v253
    %v900 = vunpack.c.h.b16 %v253
    %v901 = vunpack.c.l.b16 %v254
    %v902 = vunpack.c.h.b16 %v254
    %v903 = vunpack.c.l.b16 %v255
    %v904 = vunpack.c.h.b16 %v255
    %v905 = vunpack.c.l.b16 %v256
    %v906 = vunpack.c.h.b16 %v256
    %v907 = vunpack.c.l.b16 %v257
    %v908 = vunpack.c.h.b16 %v257
    %v909 = vunpack.c.l.b16 %v258
    %v910 = vunpack.c.h.b16 %v258
    %v911 = vunpack.c.l.b16 %v259
    %v912 = vunpack.c.h.b16 %v259
    %v913 = vunpack.c.l.b16 %v260
    %v914 = vunpack.c.h.b16 %v260
    %v915 = vunpack.c.l.b16 %v261
    %v916 = vunpack.c.h.b16 %v261
    %v917 = vunpack.c.l.b16 %v262
    %v918 = vunpack.c.h.b16 %v262
    %v919 = vunpack.c.l.b16 %v263
    %v920 = vunpack.c.h.b16 %v263
    %v921 = vunpack.c.l.b16 %v264
    %v922 = vunpack.c.h.b16 %v264
    %v923 = vunpack.c.l.b16 %v265
    %v924 = vunpack.c.h.b16 %v265
    %v925 = vunpack.c.l.b16 %v266
    %v926 = vunpack.c.h.b16 %v266
    %v927 = vunpack.c.l.b16 %v267
    %v928 = vunpack.c.h.b16 %v267
    %v929 = vunpack.c.l.b16 %v268
    %v930 = vunpack.c.h.b16 %v268
    %v931 = vunpack.c.l.b16 %v269
    %v932 = vunpack.c.h.b16 %v269
    %v933 = vunpack.c.l.b16 %v270
    %v934 = vunpack.c.h.b16 %v270
    %v935 = vunpack.c.l.b16 %v271
    %v936 = vunpack.c.h.b16 %v271
    %v937 = vunpack.c.l.b16 %v272
    %v938 = vunpack.c.h.b16 %v272
    %v939 = vunpack.c.l.b16 %v273
    %v940 = vunpack.c.h.b16 %v273
    %v941 = vunpack.c.l.b16 %v274
    %v942 = vunpack.c.h.b16 %v274
    %v943 = vunpack.c.l.b16 %v275
    %v944 = vunpack.c.h.b16 %v275
    %v945 = vunpack.c.l.b16 %v276
    %v946 = vunpack.c.h.b16 %v276
    %v947 = vunpack.c.l.b16 %v277
    %v948 = vunpack.c.h.b16 %v277
    %v949 = vunpack.c.l.b16 %v278
    %v950 = vunpack.c.h.b16 %v278
    %v951 = vunpack.c.l.b16 %v279
    %v952 = vunpack.c.h.b16 %v279
    %v953 = vunpack.c.l.b16 %v280
    %v954 = vunpack.c.h.b16 %v280
    %v955 = vunpack.c.l.b16 %v281
    %v956 = vunpack.c.h.b16 %v281
    %v957 = vunpack.c.l.b16 %v282
    %v958 = vunpack.c.h.b16 %v282
    %v959 = vunpack.c.l.b16 %v283
    %v960 = vunpack.c.h.b16 %v283
    %v961 = vunpack.c.l.b16 %v284
    %v962 = vunpack.c.h.b16 %v284
    %v963 = vunpack.c.l.b16 %v285
    %v964 = vunpack.c.h.b16 %v285
    %v965 = vunpack.c.l.b16 %v286
    %v966 = vunpack.c.h.b16 %v286
    %v967 = vunpack.c.l.b16 %v287
    %v968 = vunpack.c.h.b16 %v287
    %v969 = vunpack.c.l.b16 %v288
    %v970 = vunpack.c.h.b16 %v288
    %v971 = vunpack.c.l.b16 %v289
    %v972 = vunpack.c.h.b16 %v289
    %v973 = vunpack.c.l.b16 %v290
    %v974 = vunpack.c.h.b16 %v290
    %v975 = vunpack.c.l.b16 %v291
    %v976 = vunpack.c.h.b16 %v291
    %v977 = vunpack.c.l.b16 %v292
    %v978 = vunpack.c.h.b16 %v292
    %v979 = vunpack.c.l.b16 %v293
    %v980 = vunpack.c.h.b16 %v293
    %v981 = vunpack.c.l.b16 %v294
    %v982 = vunpack.c.h.b16 %v294
    %v983 = vunpack.c.l.b16 %v295
    %v984 = vunpack.c.h.b16 %v295
    %v985 = vunpack.c.l.b16 %v296
    %v986 = vunpack.c.h.b16 %v296
    %v987 = vunpack.c.l.b16 %v297
    %v988 = vunpack.c.h.b16 %v297
    %v989 = vunpack.c.l.b16 %v298
    %v990 = vunpack.c.h.b16 %v298
    %v991 = vunpack.c.l.b16 %v299
    %v992 = vunpack.c.h.b16 %v299
    %v993 = vunpack.c.l.b16 %v300
    %v994 = vunpack.c.h.b16 %v300
    %v995 = vunpack.c.l.b16 %v301
    %v996 = vunpack.c.h.b16 %v301
    %v997 = vunpack.c.l.b16 %v302
    %v998 = vunpack.c.h.b16 %v302
    %v999 = vunpack.c.l.b16 %v303
    %v1000 = vunpack.c.h.b16 %v303
    %v1001 = vunpack.c.l.b16 %v304
    %v1002 = vunpack.c.h.b16 %v304
    %v1003 = vunpack.c.l.b16 %v305
    %v1004 = vunpack.c.h.b16 %v305
    %v1005 = vunpack.c.l.b16 %v306
    %v1006 = vunpack.c.h.b16 %v306
    %v1007 = vunpack.c.l.b16 %v307
    %v1008 = vunpack.c.h.b16 %v307
    %v1009 = vunpack.c.l.b16 %v308
    %v1010 = vunpack.c.h.b16 %v308
    %v1011 = vunpack.c.l.b16 %v309
    %v1012 = vunpack.c.h.b16 %v309
    %v1013 = vunpack.c.l.b16 %v310
    %v1014 = vunpack.c.h.b16 %v310
    %v1015 = vunpack.c.l.b16 %v311
    %v1016 = vunpack.c.h.b16 %v311
    %v1017 = vunpack.c.l.b16 %v312
    %v1018 = vunpack.c.h.b16 %v312
    %v1019 = vunpack.c.l.b16 %v313
    %v1020 = vunpack.c.h.b16 %v313
    %v1021 = vunpack.c.l.b16 %v314
    %v1022 = vunpack.c.h.b16 %v314
    %v1023 = vunpack.c.l.b16 %v315
    %v1024 = vunpack.c.h.b16 %v315
    %v1025 = vunpack.c.l.b16 %v316
    %v1026 = vunpack.c.h.b16 %v316
    %v1027 = vunpack.c.l.b16 %v317
    %v1028 = vunpack.c.h.b16 %v317
    %v1029 = vunpack.c.l.b16 %v318
    %v1030 = vunpack.c.h.b16 %v318
    %v1031 = vunpack.c.l.b16 %v319
    %v1032 = vunpack.c.h.b16 %v319
    %v1033 = vunpack.c.l.b16 %v320
    %v1034 = vunpack.c.h.b16 %v320
    %v1035 = vunpack.c.l.b16 %v321
    %v1036 = vunpack.c.h.b16 %v321
    %v1037 = vunpack.c.l.b16 %v322
    %v1038 = vunpack.c.h.b16 %v322
    %v1039 = vunpack.c.l.b16 %v323
    %v1040 = vunpack.c.h.b16 %v323
    %v1041 = vunpack.c.l.b16 %v324
    %v1042 = vunpack.c.h.b16 %v324
    %v1043 = vunpack.c.l.b16 %v325
    %v1044 = vunpack.c.h.b16 %v325
    %v1045 = vunpack.c.l.b16 %v326
    %v1046 = vunpack.c.h.b16 %v326
    %v1047 = vunpack.c.l.b16 %v327
    %v1048 = vunpack.c.h.b16 %v327
    %v1049 = vunpack.c.l.b16 %v328
    %v1050 = vunpack.c.h.b16 %v328
    %v1051 = vunpack.c.l.b16 %v329
    %v1052 = vunpack.c.h.b16 %v329
    %v1053 = vunpack.c.l.b16 %v330
    %v1054 = vunpack.c.h.b16 %v330
    %v1055 = vunpack.c.l.b16 %v331
    %v1056 = vunpack.c.h.b16 %v331
    %v1057 = vunpack.c.l.b16 %v332
    %v1058 = vunpack.c.h.b16 %v332
    %v1059 = vunpack.c.l.b16 %v333
    %v1060 = vunpack.c.h.b16 %v333
    %v1061 = vunpack.c.l.b16 %v334
    %v1062 = vunpack.c.h.b16 %v334
    %v1063 = vunpack.c.l.b16 %v335
    %v1064 = vunpack.c.h.b16 %v335
    %v1065 = vunpack.c.l.b16 %v336
    %v1066 = vunpack.c.h.b16 %v336
    %v1067 = vunpack.c.l.b16 %v337
    %v1068 = vunpack.c.h.b16 %v337
    %v1069 = vunpack.c.l.b16 %v338
    %v1070 = vunpack.c.h.b16 %v338
    %v1071 = vunpack.c.l.b16 %v339
    %v1072 = vunpack.c.h.b16 %v339
    %v1073 = vunpack.c.l.b16 %v340
    %v1074 = vunpack.c.h.b16 %v340
    %v1075 = vunpack.c.l.b16 %v341
    %v1076 = vunpack.c.h.b16 %v341
    %v1077 = vunpack.c.l.b16 %v342
    %v1078 = vunpack.c.h.b16 %v342
    %v1079 = vunpack.c.l.b16 %v343
    %v1080 = vunpack.c.h.b16 %v343
    %v1081 = vunpack.c.l.b16 %v344
    %v1082 = vunpack.c.h.b16 %v344
    %v1083 = vunpack.c.l.b16 %v345
    %v1084 = vunpack.c.h.b16 %v345
    %v1085 = vunpack.c.l.b16 %v346
    %v1086 = vunpack.c.h.b16 %v346
    %v1087 = vunpack.c.l.b16 %v347
    %v1088 = vunpack.c.h.b16 %v347
    %v1089 = vunpack.c.l.b16 %v348
    %v1090 = vunpack.c.h.b16 %v348
    %v1091 = vunpack.c.l.b16 %v349
    %v1092 = vunpack.c.h.b16 %v349
    %v1093 = vunpack.c.l.b16 %v350
    %v1094 = vunpack.c.h.b16 %v350
    %v1095 = vunpack.c.l.b16 %v351
    %v1096 = vunpack.c.h.b16 %v351
    %v1097 = vunpack.c.l.b16 %v352
    %v1098 = vunpack.c.h.b16 %v352
    %v1099 = vunpack.c.l.b16 %v353
    %v1100 = vunpack.c.h.b16 %v353
    %v1101 = vunpack.c.l.b16 %v354
    %v1102 = vunpack.c.h.b16 %v354
    %v1103 = vunpack.c.l.b16 %v355
    %v1104 = vunpack.c.h.b16 %v355
    %v1105 = vunpack.c.l.b16 %v356
    %v1106 = vunpack.c.h.b16 %v356
    %v1107 = vunpack.c.l.b16 %v357
    %v1108 = vunpack.c.h.b16 %v357
    %v1109 = vunpack.c.l.b16 %v358
    %v1110 = vunpack.c.h.b16 %v358
    %v1111 = vunpack.c.l.b16 %v359
    %v1112 = vunpack.c.h.b16 %v359
    %v1113 = vunpack.c.l.b16 %v360
    %v1114 = vunpack.c.h.b16 %v360
    %v1115 = vunpack.c.l.b16 %v361
    %v1116 = vunpack.c.h.b16 %v361
    %v1117 = vunpack.c.l.b16 %v362
    %v1118 = vunpack.c.h.b16 %v362
    %v1119 = vunpack.c.l.b16 %v363
    %v1120 = vunpack.c.h.b16 %v363
    %v1121 = vunpack.c.l.b16 %v364
    %v1122 = vunpack.c.h.b16 %v364
    %v1123 = vunpack.c.l.b16 %v365
    %v1124 = vunpack.c.h.b16 %v365
    %v1125 = vunpack.c.l.b16 %v366
    %v1126 = vunpack.c.h.b16 %v366
    %v1127 = vunpack.c.l.b16 %v367
    %v1128 = vunpack.c.h.b16 %v367
    %v1129 = vunpack.c.l.b16 %v368
    %v1130 = vunpack.c.h.b16 %v368
    %v1131 = vunpack.c.l.b16 %v369
    %v1132 = vunpack.c.h.b16 %v369
    %v1133 = vunpack.c.l.b16 %v370
    %v1134 = vunpack.c.h.b16 %v370
    %v1135 = vunpack.c.l.b16 %v371
    %v1136 = vunpack.c.h.b16 %v371
    %v1137 = vunpack.c.l.b16 %v372
    %v1138 = vunpack.c.h.b16 %v372
    %v1139 = vunpack.c.l.b16 %v373
    %v1140 = vunpack.c.h.b16 %v373
    %v1141 = vunpack.c.l.b16 %v374
    %v1142 = vunpack.c.h.b16 %v374
    %v1143 = vunpack.c.l.b16 %v375
    %v1144 = vunpack.c.h.b16 %v375
    %v1145 = vunpack.c.l.b16 %v376
    %v1146 = vunpack.c.h.b16 %v376
    %v1147 = vunpack.c.l.b16 %v377
    %v1148 = vunpack.c.h.b16 %v377
    %v1149 = vunpack.c.l.b16 %v378
    %v1150 = vunpack.c.h.b16 %v378
    %v1151 = vunpack.c.l.b16 %v379
    %v1152 = vunpack.c.h.b16 %v379
    %v1153 = vunpack.c.l.b16 %v380
    %v1154 = vunpack.c.h.b16 %v380
    %v1155 = vunpack.c.l.b16 %v381
    %v1156 = vunpack.c.h.b16 %v381
    %v1157 = vunpack.c.l.b16 %v382
    %v1158 = vunpack.c.h.b16 %v382
    %v1159 = vunpack.c.l.b16 %v383
    %v1160 = vunpack.c.h.b16 %v383
    %v1161 = vunpack.c.l.b16 %v384
    %v1162 = vunpack.c.h.b16 %v384
    %v1163 = vunpack.c.l.b16 %v385
    %v1164 = vunpack.c.h.b16 %v385
    %v1165 = vunpack.c.l.b16 %v386
    %v1166 = vunpack.c.h.b16 %v386
    %v1167 = vunpack.c.l.b16 %v387
    %v1168 = vunpack.c.h.b16 %v387
    %v1169 = vunpack.c.l.b16 %v388
    %v1170 = vunpack.c.h.b16 %v388
    %v1171 = vunpack.c.l.b16 %v389
    %v1172 = vunpack.c.h.b16 %v389
    %v1173 = vunpack.c.l.b16 %v390
    %v1174 = vunpack.c.h.b16 %v390
    %v1175 = vunpack.c.l.b16 %v391
    %v1176 = vunpack.c.h.b16 %v391
    %v1177 = vunpack.c.l.b16 %v392
    %v1178 = vunpack.c.h.b16 %v392
    %v1179 = vunpack.c.l.b16 %v393
    %v1180 = vunpack.c.h.b16 %v393
    %v1181 = vunpack.c.l.b16 %v394
    %v1182 = vunpack.c.h.b16 %v394
    %v1183 = vunpack.c.l.b16 %v395
    %v1184 = vunpack.c.h.b16 %v395
    %v1185 = vunpack.c.l.b16 %v396
    %v1186 = vunpack.c.h.b16 %v396
    %v1187 = vpack.c.b16 %v679, %v675
    %v1188 = vpack.c.b16 %v680, %v676
    %v1189 = vpack.c.b16 %v681, %v677
    %v1190 = vpack.c.b16 %v682, %v678
    %v1191 = vpack.c.b16 %v687, %v683
    %v1192 = vpack.c.b16 %v688, %v684
    %v1193 = vpack.c.b16 %v689, %v685
    %v1194 = vpack.c.b16 %v690, %v686
    %v1195 = vpack.c.b16 %v695, %v691
    %v1196 = vpack.c.b16 %v696, %v692
    %v1197 = vpack.c.b16 %v697, %v693
    %v1198 = vpack.c.b16 %v698, %v694
    %v1199 = vpack.c.b16 %v703, %v699
    %v1200 = vpack.c.b16 %v704, %v700
    %v1201 = vpack.c.b16 %v705, %v701
    %v1202 = vpack.c.b16 %v706, %v702
    %v1203 = vpack.c.b16 %v711, %v707
    %v1204 = vpack.c.b16 %v712, %v708
    %v1205 = vpack.c.b16 %v713, %v709
    %v1206 = vpack.c.b16 %v714, %v710
    %v1207 = vpack.c.b16 %v719, %v715
    %v1208 = vpack.c.b16 %v720, %v716
    %v1209 = vpack.c.b16 %v721, %v717
    %v1210 = vpack.c.b16 %v722, %v718
    %v1211 = vpack.c.b16 %v727, %v723
    %v1212 = vpack.c.b16 %v728, %v724
    %v1213 = vpack.c.b16 %v729, %v725
    %v1214 = vpack.c.b16 %v730, %v726
    %v1215 = vpack.c.b16 %v735, %v731
    %v1216 = vpack.c.b16 %v736, %v732
    %v1217 = vpack.c.b16 %v737, %v733
    %v1218 = vpack.c.b16 %v738, %v734
    %v1219 = vpack.c.b16 %v743, %v739
    %v1220 = vpack.c.b16 %v744, %v740
    %v1221 = vpack.c.b16 %v745, %v741
    %v1222 = vpack.c.b16 %v746, %v742
    %v1223 = vpack.c.b16 %v751, %v747
    %v1224 = vpack.c.b16 %v752, %v748
    %v1225 = vpack.c.b16 %v753, %v749
    %v1226 = vpack.c.b16 %v754, %v750
    %v1227 = vpack.c.b16 %v759, %v755
    %v1228 = vpack.c.b16 %v760, %v756
    %v1229 = vpack.c.b16 %v761, %v757
    %v1230 = vpack.c.b16 %v762, %v758
    %v1231 = vpack.c.b16 %v767, %v763
    %v1232 = vpack.c.b16 %v768, %v764
    %v1233 = vpack.c.b16 %v769, %v765
    %v1234 = vpack.c.b16 %v770, %v766
    %v1235 = vpack.c.b16 %v775, %v771
    %v1236 = vpack.c.b16 %v776, %v772
    %v1237 = vpack.c.b16 %v777, %v773
    %v1238 = vpack.c.b16 %v778, %v774
    %v1239 = vpack.c.b16 %v783, %v779
    %v1240 = vpack.c.b16 %v784, %v780
    %v1241 = vpack.c.b16 %v785, %v781
    %v1242 = vpack.c.b16 %v786, %v782
    %v1243 = vpack.c.b16 %v791, %v787
    %v1244 = vpack.c.b16 %v792, %v788
    %v1245 = vpack.c.b16 %v793, %v789
    %v1246 = vpack.c.b16 %v794, %v790
    %v1247 = vpack.c.b16 %v799, %v795
    %v1248 = vpack.c.b16 %v800, %v796
    %v1249 = vpack.c.b16 %v801, %v797
    %v1250 = vpack.c.b16 %v802, %v798
    %v1251 = vpack.c.b16 %v807, %v803
    %v1252 = vpack.c.b16 %v808, %v804
    %v1253 = vpack.c.b16 %v809, %v805
    %v1254 = vpack.c.b16 %v810, %v806
    %v1255 = vpack.c.b16 %v815, %v811
    %v1256 = vpack.c.b16 %v816, %v812
    %v1257 = vpack.c.b16 %v817, %v813
    %v1258 = vpack.c.b16 %v818, %v814
    %v1259 = vpack.c.b16 %v823, %v819
    %v1260 = vpack.c.b16 %v824, %v820
    %v1261 = vpack.c.b16 %v825, %v821
    %v1262 = vpack.c.b16 %v826, %v822
    %v1263 = vpack.c.b16 %v831, %v827
    %v1264 = vpack.c.b16 %v832, %v828
    %v1265 = vpack.c.b16 %v833, %v829
    %v1266 = vpack.c.b16 %v834, %v830
    %v1267 = vpack.c.b16 %v839, %v835
    %v1268 = vpack.c.b16 %v840, %v836
    %v1269 = vpack.c.b16 %v841, %v837
    %v1270 = vpack.c.b16 %v842, %v838
    %v1271 = vpack.c.b16 %v847, %v843
    %v1272 = vpack.c.b16 %v848, %v844
    %v1273 = vpack.c.b16 %v849, %v845
    %v1274 = vpack.c.b16 %v850, %v846
    %v1275 = vpack.c.b16 %v855, %v851
    %v1276 = vpack.c.b16 %v856, %v852
    %v1277 = vpack.c.b16 %v857, %v853
    %v1278 = vpack.c.b16 %v858, %v854
    %v1279 = vpack.c.b16 %v863, %v859
    %v1280 = vpack.c.b16 %v864, %v860
    %v1281 = vpack.c.b16 %v865, %v861
    %v1282 = vpack.c.b16 %v866, %v862
    %v1283 = vpack.c.b16 %v871, %v867
    %v1284 = vpack.c.b16 %v872, %v868
    %v1285 = vpack.c.b16 %v873, %v869
    %v1286 = vpack.c.b16 %v874, %v870
    %v1287 = vpack.c.b16 %v879, %v875
    %v1288 = vpack.c.b16 %v880, %v876
    %v1289 = vpack.c.b16 %v881, %v877
    %v1290 = vpack.c.b16 %v882, %v878
    %v1291 = vpack.c.b16 %v887, %v883
    %v1292 = vpack.c.b16 %v888, %v884
    %v1293 = vpack.c.b16 %v889, %v885
    %v1294 = vpack.c.b16 %v890, %v886
    %v1295 = vpack.c.b16 %v895, %v891
    %v1296 = vpack.c.b16 %v896, %v892
    %v1297 = vpack.c.b16 %v897, %v893
    %v1298 = vpack.c.b16 %v898, %v894
    %v1299 = vpack.c.b16 %v903, %v899
    %v1300 = vpack.c.b16 %v904, %v900
    %v1301 = vpack.c.b16 %v905, %v901
    %v1302 = vpack.c.b16 %v906, %v902
    %v1303 = vpack.c.b16 %v911, %v907
    %v1304 = vpack.c.b16 %v912, %v908
    %v1305 = vpack.c.b16 %v913, %v909
    %v1306 = vpack.c.b16 %v914, %v910
    %v1307 = vpack.c.b16 %v919, %v915
    %v1308 = vpack.c.b16 %v920, %v916
    %v1309 = vpack.c.b16 %v921, %v917
    %v1310 = vpack.c.b16 %v922, %v918
    %v1311 = vpack.c.b16 %v927, %v923
    %v1312 = vpack.c.b16 %v928, %v924
    %v1313 = vpack.c.b16 %v929, %v925
    %v1314 = vpack.c.b16 %v930, %v926
    %v1315 = vpack.c.b16 %v935, %v931
    %v1316 = vpack.c.b16 %v936, %v932
    %v1317 = vpack.c.b16 %v937, %v933
    %v1318 = vpack.c.b16 %v938, %v934
    %v1319 = vpack.c.b16 %v943, %v939
    %v1320 = vpack.c.b16 %v944, %v940
    %v1321 = vpack.c.b16 %v945, %v941
    %v1322 = vpack.c.b16 %v946, %v942
    %v1323 = vpack.c.b16 %v951, %v947
    %v1324 = vpack.c.b16 %v952, %v948
    %v1325 = vpack.c.b16 %v953, %v949
    %v1326 = vpack.c.b16 %v954, %v950
    %v1327 = vpack.c.b16 %v959, %v955
    %v1328 = vpack.c.b16 %v960, %v956
    %v1329 = vpack.c.b16 %v961, %v957
    %v1330 = vpack.c.b16 %v962, %v958
    %v1331 = vpack.c.b16 %v967, %v963
    %v1332 = vpack.c.b16 %v968, %v964
    %v1333 = vpack.c.b16 %v969, %v965
    %v1334 = vpack.c.b16 %v970, %v966
    %v1335 = vpack.c.b16 %v975, %v971
    %v1336 = vpack.c.b16 %v976, %v972
    %v1337 = vpack.c.b16 %v977, %v973
    %v1338 = vpack.c.b16 %v978, %v974
    %v1339 = vpack.c.b16 %v983, %v979
    %v1340 = vpack.c.b16 %v984, %v980
    %v1341 = vpack.c.b16 %v985, %v981
    %v1342 = vpack.c.b16 %v986, %v982
    %v1343 = vpack.c.b16 %v991, %v987
    %v1344 = vpack.c.b16 %v992, %v988
    %v1345 = vpack.c.b16 %v993, %v989
    %v1346 = vpack.c.b16 %v994, %v990
    %v1347 = vpack.c.b16 %v999, %v995
    %v1348 = vpack.c.b16 %v1000, %v996
    %v1349 = vpack.c.b16 %v1001, %v997
    %v1350 = vpack.c.b16 %v1002, %v998
    %v1351 = vpack.c.b16 %v1007, %v1003
    %v1352 = vpack.c.b16 %v1008, %v1004
    %v1353 = vpack.c.b16 %v1009, %v1005
    %v1354 = vpack.c.b16 %v1010, %v1006
    %v1355 = vpack.c.b16 %v1015, %v1011
    %v1356 = vpack.c.b16 %v1016, %v1012
    %v1357 = vpack.c.b16 %v1017, %v1013
    %v1358 = vpack.c.b16 %v1018, %v1014
    %v1359 = vpack.c.b16 %v1023, %v1019
    %v1360 = vpack.c.b16 %v1024, %v1020
    %v1361 = vpack.c.b16 %v1025, %v1021
    %v1362 = vpack.c.b16 %v1026, %v1022
    %v1363 = vpack.c.b16 %v1031, %v1027
    %v1364 = vpack.c.b16 %v1032, %v1028
    %v1365 = vpack.c.b16 %v1033, %v1029
    %v1366 = vpack.c.b16 %v1034, %v1030
    %v1367 = vpack.c.b16 %v1039, %v1035
    %v1368 = vpack.c.b16 %v1040, %v1036
    %v1369 = vpack.c.b16 %v1041, %v1037
    %v1370 = vpack.c.b16 %v1042, %v1038
    %v1371 = vpack.c.b16 %v1047, %v1043
    %v1372 = vpack.c.b16 %v1048, %v1044
    %v1373 = vpack.c.b16 %v1049, %v1045
    %v1374 = vpack.c.b16 %v1050, %v1046
    %v1375 = vpack.c.b16 %v1055, %v1051
    %v1376 = vpack.c.b16 %v1056, %v1052
    %v1377 = vpack.c.b16 %v1057, %v1053
    %v1378 = vpack.c.b16 %v1058, %v1054
    %v1379 = vpack.c.b16 %v1063, %v1059
    %v1380 = vpack.c.b16 %v1064, %v1060
    %v1381 = vpack.c.b16 %v1065, %v1061
    %v1382 = vpack.c.b16 %v1066, %v1062
    %v1383 = vpack.c.b16 %v1071, %v1067
    %v1384 = vpack.c.b16 %v1072, %v1068
    %v1385 = vpack.c.b16 %v1073, %v1069
    %v1386 = vpack.c.b16 %v1074, %v1070
    %v1387 = vpack.c.b16 %v1079, %v1075
    %v1388 = vpack.c.b16 %v1080, %v1076
    %v1389 = vpack.c.b16 %v1081, %v1077
    %v1390 = vpack.c.b16 %v1082, %v1078
    %v1391 = vpack.c.b16 %v1087, %v1083
    %v1392 = vpack.c.b16 %v1088, %v1084
    %v1393 = vpack.c.b16 %v1089, %v1085
    %v1394 = vpack.c.b16 %v1090, %v1086
    %v1395 = vpack.c.b16 %v1095, %v1091
    %v1396 = vpack.c.b16 %v1096, %v1092
    %v1397 = vpack.c.b16 %v1097, %v1093
    %v1398 = vpack.c.b16 %v1098, %v1094
    %v1399 = vpack.c.b16 %v1103, %v1099
    %v1400 = vpack.c.b16 %v1104, %v1100
    %v1401 = vpack.c.b16 %v1105, %v1101
    %v1402 = vpack.c.b16 %v1106, %v1102
    %v1403 = vpack.c.b16 %v1111, %v1107
    %v1404 = vpack.c.b16 %v1112, %v1108
    %v1405 = vpack.c.b16 %v1113, %v1109
    %v1406 = vpack.c.b16 %v1114, %v1110
    %v1407 = vpack.c.b16 %v1119, %v1115
    %v1408 = vpack.c.b16 %v1120, %v1116
    %v1409 = vpack.c.b16 %v1121, %v1117
    %v1410 = vpack.c.b16 %v1122, %v1118
    %v1411 = vpack.c.b16 %v1127, %v1123
    %v1412 = vpack.c.b16 %v1128, %v1124
    %v1413 = vpack.c.b16 %v1129, %v1125
    %v1414 = vpack.c.b16 %v1130, %v1126
    %v1415 = vpack.c.b16 %v1135, %v1131
    %v1416 = vpack.c.b16 %v1136, %v1132
    %v1417 = vpack.c.b16 %v1137, %v1133
    %v1418 = vpack.c.b16 %v1138, %v1134
    %v1419 = vpack.c.b16 %v1143, %v1139
    %v1420 = vpack.c.b16 %v1144, %v1140
    %v1421 = vpack.c.b16 %v1145, %v1141
    %v1422 = vpack.c.b16 %v1146, %v1142
    %v1423 = vpack.c.b16 %v1151, %v1147
    %v1424 = vpack.c.b16 %v1152, %v1148
    %v1425 = vpack.c.b16 %v1153, %v1149
    %v1426 = vpack.c.b16 %v1154, %v1150
    %v1427 = vpack.c.b16 %v1159, %v1155
    %v1428 = vpack.c.b16 %v1160, %v1156
    %v1429 = vpack.c.b16 %v1161, %v1157
    %v1430 = vpack.c.b16 %v1162, %v1158
    %v1431 = vpack.c.b16 %v1167, %v1163
    %v1432 = vpack.c.b16 %v1168, %v1164
    %v1433 = vpack.c.b16 %v1169, %v1165
    %v1434 = vpack.c.b16 %v1170, %v1166
    %v1435 = vpack.c.b16 %v1175, %v1171
    %v1436 = vpack.c.b16 %v1176, %v1172
    %v1437 = vpack.c.b16 %v1177, %v1173
    %v1438 = vpack.c.b16 %v1178, %v1174
    %v1439 = vpack.c.b16 %v1183, %v1179
    %v1440 = vpack.c.b16 %v1184, %v1180
    %v1441 = vpack.c.b16 %v1185, %v1181
    %v1442 = vpack.c.b16 %v1186, %v1182
    %1699 = vmatprep.subr.bf16.mxu0 %v1216
    %1700 = vmatpush1.bf16.msra.mxu0 %v1215
    %1701 = vmatprep.subr.bf16.mxu0 %v1212
    %1702 = vmatpush1.bf16.msra.mxu0 %v1211
    %1703 = vmatprep.subr.bf16.mxu0 %v1208
    %1704 = vmatpush1.bf16.msra.mxu0 %v1207
    %1705 = vmatprep.subr.bf16.mxu0 %v1204
    %1706 = vmatpush1.bf16.msra.mxu0 %v1203
    %1707 = vmatprep.subr.bf16.mxu0 %v1200
    %1708 = vmatpush1.bf16.msra.mxu0 %v1199
    %1709 = vmatprep.subr.bf16.mxu0 %v1196
    %1710 = vmatpush1.bf16.msra.mxu0 %v1195
    %1711 = vmatprep.subr.bf16.mxu0 %v1192
    %1712 = vmatpush1.bf16.msra.mxu0 %v1191
    %1713 = vmatprep.subr.bf16.mxu0 %v1188
    %1714 = vmatpush1.bf16.msra.mxu0 %v1187
    %1715 = vmatprep.subr.bf16.mxu0 %v1248
    %1716 = vmatpush2.bf16.msra.mxu0 %v1247
    %1717 = vmatprep.subr.bf16.mxu0 %v1244
    %1718 = vmatpush2.bf16.msra.mxu0 %v1243
    %1719 = vmatprep.subr.bf16.mxu0 %v1240
    %1720 = vmatpush2.bf16.msra.mxu0 %v1239
    %1721 = vmatprep.subr.bf16.mxu0 %v1236
    %1722 = vmatpush2.bf16.msra.mxu0 %v1235
    %1723 = vmatprep.subr.bf16.mxu0 %v1232
    %1724 = vmatpush2.bf16.msra.mxu0 %v1231
    %1725 = vmatprep.subr.bf16.mxu0 %v1228
    %1726 = vmatpush2.bf16.msra.mxu0 %v1227
    %1727 = vmatprep.subr.bf16.mxu0 %v1224
    %1728 = vmatpush2.bf16.msra.mxu0 %v1223
    %1729 = vmatprep.subr.bf16.mxu0 %v1220
    %1730 = vmatpush2.bf16.msra.mxu0 %v1219
    %1731 = vmatprep.mubr.bf16.mxu0 %v134
    %1732 = vmatmul.mubr.bf16.gmra.mxu0 %v133
    %v1733 = vpop.f32.mrf.mxu0
    %v1734 = vadd.f32 %v402, %v1733
    %v1735 = vpop.f32.mrf.mxu0
    %v1736 = vadd.f32 %v406, %v1735
    %v1737 = vpop.f32.mrf.mxu0
    %v1738 = vpop.f32.mrf.mxu0
    %1739 = vdwg.mxu0
    %1740 = vmatprep.subr.bf16.mxu0 %v1280
    %1741 = vmatpush1.bf16.msra.mxu0 %v1279
    %1742 = vmatprep.subr.bf16.mxu0 %v1276
    %1743 = vmatpush1.bf16.msra.mxu0 %v1275
    %1744 = vmatprep.subr.bf16.mxu0 %v1272
    %1745 = vmatpush1.bf16.msra.mxu0 %v1271
    %1746 = vmatprep.subr.bf16.mxu0 %v1268
    %1747 = vmatpush1.bf16.msra.mxu0 %v1267
    %1748 = vmatprep.subr.bf16.mxu0 %v1264
    %1749 = vmatpush1.bf16.msra.mxu0 %v1263
    %1750 = vmatprep.subr.bf16.mxu0 %v1260
    %1751 = vmatpush1.bf16.msra.mxu0 %v1259
    %1752 = vmatprep.subr.bf16.mxu0 %v1256
    %1753 = vmatpush1.bf16.msra.mxu0 %v1255
    %1754 = vmatprep.subr.bf16.mxu0 %v1252
    %1755 = vmatpush1.bf16.msra.mxu0 %v1251
    %1756 = vmatprep.subr.bf16.mxu0 %v1312
    %1757 = vmatpush2.bf16.msra.mxu0 %v1311
    %1758 = vmatprep.subr.bf16.mxu0 %v1308
    %1759 = vmatpush2.bf16.msra.mxu0 %v1307
    %1760 = vmatprep.subr.bf16.mxu0 %v1304
    %1761 = vmatpush2.bf16.msra.mxu0 %v1303
    %1762 = vmatprep.subr.bf16.mxu0 %v1300
    %1763 = vmatpush2.bf16.msra.mxu0 %v1299
    %1764 = vmatprep.subr.bf16.mxu0 %v1296
    %1765 = vmatpush2.bf16.msra.mxu0 %v1295
    %1766 = vmatprep.subr.bf16.mxu0 %v1292
    %1767 = vmatpush2.bf16.msra.mxu0 %v1291
    %1768 = vmatprep.subr.bf16.mxu0 %v1288
    %1769 = vmatpush2.bf16.msra.mxu0 %v1287
    %1770 = vmatprep.subr.bf16.mxu0 %v1284
    %1771 = vmatpush2.bf16.msra.mxu0 %v1283
    %1772 = vmatprep.mubr.bf16.mxu0 %v136
    %1773 = vmatmul.mubr.bf16.gmra.mxu0 %v135
    %v1774 = vpop.f32.mrf.mxu0
    %v1775 = vadd.f32 %v1734, %v1774
    %v1776 = vpop.f32.mrf.mxu0
    %v1777 = vadd.f32 %v1736, %v1776
    %v1778 = vpop.f32.mrf.mxu0
    %v1779 = vpop.f32.mrf.mxu0
    %1780 = vdwg.mxu0
    %1781 = vmatprep.subr.bf16.mxu0 %v1344
    %1782 = vmatpush1.bf16.msra.mxu0 %v1343
    %1783 = vmatprep.subr.bf16.mxu0 %v1340
    %1784 = vmatpush1.bf16.msra.mxu0 %v1339
    %1785 = vmatprep.subr.bf16.mxu0 %v1336
    %1786 = vmatpush1.bf16.msra.mxu0 %v1335
    %1787 = vmatprep.subr.bf16.mxu0 %v1332
    %1788 = vmatpush1.bf16.msra.mxu0 %v1331
    %1789 = vmatprep.subr.bf16.mxu0 %v1328
    %1790 = vmatpush1.bf16.msra.mxu0 %v1327
    %1791 = vmatprep.subr.bf16.mxu0 %v1324
    %1792 = vmatpush1.bf16.msra.mxu0 %v1323
    %1793 = vmatprep.subr.bf16.mxu0 %v1320
    %1794 = vmatpush1.bf16.msra.mxu0 %v1319
    %1795 = vmatprep.subr.bf16.mxu0 %v1316
    %1796 = vmatpush1.bf16.msra.mxu0 %v1315
    %1797 = vmatprep.subr.bf16.mxu0 %v1376
    %1798 = vmatpush2.bf16.msra.mxu0 %v1375
    %1799 = vmatprep.subr.bf16.mxu0 %v1372
    %1800 = vmatpush2.bf16.msra.mxu0 %v1371
    %1801 = vmatprep.subr.bf16.mxu0 %v1368
    %1802 = vmatpush2.bf16.msra.mxu0 %v1367
    %1803 = vmatprep.subr.bf16.mxu0 %v1364
    %1804 = vmatpush2.bf16.msra.mxu0 %v1363
    %1805 = vmatprep.subr.bf16.mxu0 %v1360
    %1806 = vmatpush2.bf16.msra.mxu0 %v1359
    %1807 = vmatprep.subr.bf16.mxu0 %v1356
    %1808 = vmatpush2.bf16.msra.mxu0 %v1355
    %1809 = vmatprep.subr.bf16.mxu0 %v1352
    %1810 = vmatpush2.bf16.msra.mxu0 %v1351
    %1811 = vmatprep.subr.bf16.mxu0 %v1348
    %1812 = vmatpush2.bf16.msra.mxu0 %v1347
    %1813 = vmatprep.mubr.bf16.mxu0 %v138
    %1814 = vmatmul.mubr.bf16.gmra.mxu0 %v137
    %v1815 = vpop.f32.mrf.mxu0
    %v1816 = vadd.f32 %v1775, %v1815
    %v1817 = vpop.f32.mrf.mxu0
    %v1818 = vadd.f32 %v1777, %v1817
    %v1819 = vpop.f32.mrf.mxu0
    %v1820 = vpop.f32.mrf.mxu0
    %1821 = vdwg.mxu0
    %1822 = vmatprep.subr.bf16.mxu0 %v1408
    %1823 = vmatpush1.bf16.msra.mxu0 %v1407
    %1824 = vmatprep.subr.bf16.mxu0 %v1404
    %1825 = vmatpush1.bf16.msra.mxu0 %v1403
    %1826 = vmatprep.subr.bf16.mxu0 %v1400
    %1827 = vmatpush1.bf16.msra.mxu0 %v1399
    %1828 = vmatprep.subr.bf16.mxu0 %v1396
    %1829 = vmatpush1.bf16.msra.mxu0 %v1395
    %1830 = vmatprep.subr.bf16.mxu0 %v1392
    %1831 = vmatpush1.bf16.msra.mxu0 %v1391
    %1832 = vmatprep.subr.bf16.mxu0 %v1388
    %1833 = vmatpush1.bf16.msra.mxu0 %v1387
    %1834 = vmatprep.subr.bf16.mxu0 %v1384
    %1835 = vmatpush1.bf16.msra.mxu0 %v1383
    %1836 = vmatprep.subr.bf16.mxu0 %v1380
    %1837 = vmatpush1.bf16.msra.mxu0 %v1379
    %1838 = vmatprep.subr.bf16.mxu0 %v1440
    %1839 = vmatpush2.bf16.msra.mxu0 %v1439
    %1840 = vmatprep.subr.bf16.mxu0 %v1436
    %1841 = vmatpush2.bf16.msra.mxu0 %v1435
    %1842 = vmatprep.subr.bf16.mxu0 %v1432
    %1843 = vmatpush2.bf16.msra.mxu0 %v1431
    %1844 = vmatprep.subr.bf16.mxu0 %v1428
    %1845 = vmatpush2.bf16.msra.mxu0 %v1427
    %1846 = vmatprep.subr.bf16.mxu0 %v1424
    %1847 = vmatpush2.bf16.msra.mxu0 %v1423
    %1848 = vmatprep.subr.bf16.mxu0 %v1420
    %1849 = vmatpush2.bf16.msra.mxu0 %v1419
    %1850 = vmatprep.subr.bf16.mxu0 %v1416
    %1851 = vmatpush2.bf16.msra.mxu0 %v1415
    %1852 = vmatprep.subr.bf16.mxu0 %v1412
    %1853 = vmatpush2.bf16.msra.mxu0 %v1411
    %1854 = vmatprep.mubr.bf16.mxu0 %v140
    %1855 = vmatmul.mubr.bf16.gmra.mxu0 %v139
    %v1856 = vpop.f32.mrf.mxu0
    %v1857 = vadd.f32 %v1816, %v1856
    %v1858 = vpop.f32.mrf.mxu0
    %v1859 = vadd.f32 %v1818, %v1858
    %v1860 = vpop.f32.mrf.mxu0
    %v1861 = vpop.f32.mrf.mxu0
    %1862 = vdwg.mxu0
    %1863 = vmatprep.subr.bf16.mxu0 %v1218
    %1864 = vmatpush1.bf16.msra.mxu0 %v1217
    %1865 = vmatprep.subr.bf16.mxu0 %v1214
    %1866 = vmatpush1.bf16.msra.mxu0 %v1213
    %1867 = vmatprep.subr.bf16.mxu0 %v1210
    %1868 = vmatpush1.bf16.msra.mxu0 %v1209
    %1869 = vmatprep.subr.bf16.mxu0 %v1206
    %1870 = vmatpush1.bf16.msra.mxu0 %v1205
    %1871 = vmatprep.subr.bf16.mxu0 %v1202
    %1872 = vmatpush1.bf16.msra.mxu0 %v1201
    %1873 = vmatprep.subr.bf16.mxu0 %v1198
    %1874 = vmatpush1.bf16.msra.mxu0 %v1197
    %1875 = vmatprep.subr.bf16.mxu0 %v1194
    %1876 = vmatpush1.bf16.msra.mxu0 %v1193
    %1877 = vmatprep.subr.bf16.mxu0 %v1190
    %1878 = vmatpush1.bf16.msra.mxu0 %v1189
    %1879 = vmatprep.subr.bf16.mxu0 %v1250
    %1880 = vmatpush2.bf16.msra.mxu0 %v1249
    %1881 = vmatprep.subr.bf16.mxu0 %v1246
    %1882 = vmatpush2.bf16.msra.mxu0 %v1245
    %1883 = vmatprep.subr.bf16.mxu0 %v1242
    %1884 = vmatpush2.bf16.msra.mxu0 %v1241
    %1885 = vmatprep.subr.bf16.mxu0 %v1238
    %1886 = vmatpush2.bf16.msra.mxu0 %v1237
    %1887 = vmatprep.subr.bf16.mxu0 %v1234
    %1888 = vmatpush2.bf16.msra.mxu0 %v1233
    %1889 = vmatprep.subr.bf16.mxu0 %v1230
    %1890 = vmatpush2.bf16.msra.mxu0 %v1229
    %1891 = vmatprep.subr.bf16.mxu0 %v1226
    %1892 = vmatpush2.bf16.msra.mxu0 %v1225
    %1893 = vmatprep.subr.bf16.mxu0 %v1222
    %1894 = vmatpush2.bf16.msra.mxu0 %v1221
    %1895 = vmatprep.mubr.bf16.mxu0 %v134
    %1896 = vmatmul.mubr.bf16.gmra.mxu0 %v133
    %v1897 = vpop.f32.mrf.mxu0
    %v1898 = vadd.f32 %v410, %v1897
    %v1899 = vpop.f32.mrf.mxu0
    %v1900 = vadd.f32 %v414, %v1899
    %v1901 = vpop.f32.mrf.mxu0
    %v1902 = vpop.f32.mrf.mxu0
    %1903 = vdwg.mxu0
    %1904 = vmatprep.subr.bf16.mxu0 %v1282
    %1905 = vmatpush1.bf16.msra.mxu0 %v1281
    %1906 = vmatprep.subr.bf16.mxu0 %v1278
    %1907 = vmatpush1.bf16.msra.mxu0 %v1277
    %1908 = vmatprep.subr.bf16.mxu0 %v1274
    %1909 = vmatpush1.bf16.msra.mxu0 %v1273
    %1910 = vmatprep.subr.bf16.mxu0 %v1270
    %1911 = vmatpush1.bf16.msra.mxu0 %v1269
    %1912 = vmatprep.subr.bf16.mxu0 %v1266
    %1913 = vmatpush1.bf16.msra.mxu0 %v1265
    %1914 = vmatprep.subr.bf16.mxu0 %v1262
    %1915 = vmatpush1.bf16.msra.mxu0 %v1261
    %1916 = vmatprep.subr.bf16.mxu0 %v1258
    %1917 = vmatpush1.bf16.msra.mxu0 %v1257
    %1918 = vmatprep.subr.bf16.mxu0 %v1254
    %1919 = vmatpush1.bf16.msra.mxu0 %v1253
    %1920 = vmatprep.subr.bf16.mxu0 %v1314
    %1921 = vmatpush2.bf16.msra.mxu0 %v1313
    %1922 = vmatprep.subr.bf16.mxu0 %v1310
    %1923 = vmatpush2.bf16.msra.mxu0 %v1309
    %1924 = vmatprep.subr.bf16.mxu0 %v1306
    %1925 = vmatpush2.bf16.msra.mxu0 %v1305
    %1926 = vmatprep.subr.bf16.mxu0 %v1302
    %1927 = vmatpush2.bf16.msra.mxu0 %v1301
    %1928 = vmatprep.subr.bf16.mxu0 %v1298
    %1929 = vmatpush2.bf16.msra.mxu0 %v1297
    %1930 = vmatprep.subr.bf16.mxu0 %v1294
    %1931 = vmatpush2.bf16.msra.mxu0 %v1293
    %1932 = vmatprep.subr.bf16.mxu0 %v1290
    %1933 = vmatpush2.bf16.msra.mxu0 %v1289
    %1934 = vmatprep.subr.bf16.mxu0 %v1286
    %1935 = vmatpush2.bf16.msra.mxu0 %v1285
    %1936 = vmatprep.mubr.bf16.mxu0 %v136
    %1937 = vmatmul.mubr.bf16.gmra.mxu0 %v135
    %v1938 = vpop.f32.mrf.mxu0
    %v1939 = vadd.f32 %v1898, %v1938
    %v1940 = vpop.f32.mrf.mxu0
    %v1941 = vadd.f32 %v1900, %v1940
    %v1942 = vpop.f32.mrf.mxu0
    %v1943 = vpop.f32.mrf.mxu0
    %1944 = vdwg.mxu0
    %1945 = vmatprep.subr.bf16.mxu0 %v1346
    %1946 = vmatpush1.bf16.msra.mxu0 %v1345
    %1947 = vmatprep.subr.bf16.mxu0 %v1342
    %1948 = vmatpush1.bf16.msra.mxu0 %v1341
    %1949 = vmatprep.subr.bf16.mxu0 %v1338
    %1950 = vmatpush1.bf16.msra.mxu0 %v1337
    %1951 = vmatprep.subr.bf16.mxu0 %v1334
    %1952 = vmatpush1.bf16.msra.mxu0 %v1333
    %1953 = vmatprep.subr.bf16.mxu0 %v1330
    %1954 = vmatpush1.bf16.msra.mxu0 %v1329
    %1955 = vmatprep.subr.bf16.mxu0 %v1326
    %1956 = vmatpush1.bf16.msra.mxu0 %v1325
    %1957 = vmatprep.subr.bf16.mxu0 %v1322
    %1958 = vmatpush1.bf16.msra.mxu0 %v1321
    %1959 = vmatprep.subr.bf16.mxu0 %v1318
    %1960 = vmatpush1.bf16.msra.mxu0 %v1317
    %1961 = vmatprep.subr.bf16.mxu0 %v1378
    %1962 = vmatpush2.bf16.msra.mxu0 %v1377
    %1963 = vmatprep.subr.bf16.mxu0 %v1374
    %1964 = vmatpush2.bf16.msra.mxu0 %v1373
    %1965 = vmatprep.subr.bf16.mxu0 %v1370
    %1966 = vmatpush2.bf16.msra.mxu0 %v1369
    %1967 = vmatprep.subr.bf16.mxu0 %v1366
    %1968 = vmatpush2.bf16.msra.mxu0 %v1365
    %1969 = vmatprep.subr.bf16.mxu0 %v1362
    %1970 = vmatpush2.bf16.msra.mxu0 %v1361
    %1971 = vmatprep.subr.bf16.mxu0 %v1358
    %1972 = vmatpush2.bf16.msra.mxu0 %v1357
    %1973 = vmatprep.subr.bf16.mxu0 %v1354
    %1974 = vmatpush2.bf16.msra.mxu0 %v1353
    %1975 = vmatprep.subr.bf16.mxu0 %v1350
    %1976 = vmatpush2.bf16.msra.mxu0 %v1349
    %1977 = vmatprep.mubr.bf16.mxu0 %v138
    %1978 = vmatmul.mubr.bf16.gmra.mxu0 %v137
    %v1979 = vpop.f32.mrf.mxu0
    %v1980 = vadd.f32 %v1939, %v1979
    %v1981 = vpop.f32.mrf.mxu0
    %v1982 = vadd.f32 %v1941, %v1981
    %v1983 = vpop.f32.mrf.mxu0
    %v1984 = vpop.f32.mrf.mxu0
    %1985 = vdwg.mxu0
    %1986 = vmatprep.subr.bf16.mxu0 %v1410
    %1987 = vmatpush1.bf16.msra.mxu0 %v1409
    %1988 = vmatprep.subr.bf16.mxu0 %v1406
    %1989 = vmatpush1.bf16.msra.mxu0 %v1405
    %1990 = vmatprep.subr.bf16.mxu0 %v1402
    %1991 = vmatpush1.bf16.msra.mxu0 %v1401
    %1992 = vmatprep.subr.bf16.mxu0 %v1398
    %1993 = vmatpush1.bf16.msra.mxu0 %v1397
    %1994 = vmatprep.subr.bf16.mxu0 %v1394
    %1995 = vmatpush1.bf16.msra.mxu0 %v1393
    %1996 = vmatprep.subr.bf16.mxu0 %v1390
    %1997 = vmatpush1.bf16.msra.mxu0 %v1389
    %1998 = vmatprep.subr.bf16.mxu0 %v1386
    %1999 = vmatpush1.bf16.msra.mxu0 %v1385
    %2000 = vmatprep.subr.bf16.mxu0 %v1382
    %2001 = vmatpush1.bf16.msra.mxu0 %v1381
    %2002 = vmatprep.subr.bf16.mxu0 %v1442
    %2003 = vmatpush2.bf16.msra.mxu0 %v1441
    %2004 = vmatprep.subr.bf16.mxu0 %v1438
    %2005 = vmatpush2.bf16.msra.mxu0 %v1437
    %2006 = vmatprep.subr.bf16.mxu0 %v1434
    %2007 = vmatpush2.bf16.msra.mxu0 %v1433
    %2008 = vmatprep.subr.bf16.mxu0 %v1430
    %2009 = vmatpush2.bf16.msra.mxu0 %v1429
    %2010 = vmatprep.subr.bf16.mxu0 %v1426
    %2011 = vmatpush2.bf16.msra.mxu0 %v1425
    %2012 = vmatprep.subr.bf16.mxu0 %v1422
    %2013 = vmatpush2.bf16.msra.mxu0 %v1421
    %2014 = vmatprep.subr.bf16.mxu0 %v1418
    %2015 = vmatpush2.bf16.msra.mxu0 %v1417
    %2016 = vmatprep.subr.bf16.mxu0 %v1414
    %2017 = vmatpush2.bf16.msra.mxu0 %v1413
    %2018 = vmatprep.mubr.bf16.mxu0 %v140
    %2019 = vmatmul.mubr.bf16.gmra.mxu0 %v139
    %v2020 = vpop.f32.mrf.mxu0
    %v2021 = vadd.f32 %v1980, %v2020
    %v2022 = vpop.f32.mrf.mxu0
    %v2023 = vadd.f32 %v1982, %v2022
    %v2024 = vpop.f32.mrf.mxu0
    %v2025 = vpop.f32.mrf.mxu0
    %2026 = vdwg.mxu0
    %v2027 = vmax.f32 %v1857, 0.0
    %v2028 = vmax.f32 %v1859, 0.0
    %v2029 = vmax.f32 %v2021, 0.0
    %v2030 = vmax.f32 %v2023, 0.0
    %v2031 = vpack.c.bf16 %v2027, %v2027
    %v2032 = vpack.c.bf16 %v2028, %v2028
    %v2033 = vpack.c.bf16 %v2029, %v2029
    %v2034 = vpack.c.bf16 %v2030, %v2030
    %v2035 = vld [vmem:[#allocation4] sm:$0xff]
    %v2036 = vld [vmem:[#allocation4 + $0x8] sm:$0xff]
    %v2037 = vld [vmem:[#allocation4 + $0x10] sm:$0xff]
    %v2038 = vld [vmem:[#allocation4 + $0x18] sm:$0xff]
    %v2039 = vld [vmem:[#allocation4 + $0x20] sm:$0xff]
    %v2040 = vld [vmem:[#allocation4 + $0x28] sm:$0xff]
    %v2041 = vld [vmem:[#allocation4 + $0x30] sm:$0xff]
    %v2042 = vld [vmem:[#allocation4 + $0x38] sm:$0xff]
    %v2043 = vld [vmem:[#allocation4 + $0x40] sm:$0xff]
    %v2044 = vld [vmem:[#allocation4 + $0x48] sm:$0xff]
    %v2045 = vld [vmem:[#allocation4 + $0x50] sm:$0xff]
    %v2046 = vld [vmem:[#allocation4 + $0x58] sm:$0xff]
    %v2047 = vld [vmem:[#allocation4 + $0x60] sm:$0xff]
    %v2048 = vld [vmem:[#allocation4 + $0x68] sm:$0xff]
    %v2049 = vld [vmem:[#allocation4 + $0x70] sm:$0xff]
    %v2050 = vld [vmem:[#allocation4 + $0x78] sm:$0xff]
    %v2051 = vld [vmem:[#allocation4 + $0x80] sm:$0xff]
    %v2052 = vld [vmem:[#allocation4 + $0x88] sm:$0xff]
    %v2053 = vld [vmem:[#allocation4 + $0x90] sm:$0xff]
    %v2054 = vld [vmem:[#allocation4 + $0x98] sm:$0xff]
    %v2055 = vld [vmem:[#allocation4 + $0xa0] sm:$0xff]
    %v2056 = vld [vmem:[#allocation4 + $0xa8] sm:$0xff]
    %v2057 = vld [vmem:[#allocation4 + $0xb0] sm:$0xff]
    %v2058 = vld [vmem:[#allocation4 + $0xb8] sm:$0xff]
    %v2059 = vld [vmem:[#allocation4 + $0xc0] sm:$0xff]
    %v2060 = vld [vmem:[#allocation4 + $0xc8] sm:$0xff]
    %v2061 = vld [vmem:[#allocation4 + $0xd0] sm:$0xff]
    %v2062 = vld [vmem:[#allocation4 + $0xd8] sm:$0xff]
    %v2063 = vld [vmem:[#allocation4 + $0xe0] sm:$0xff]
    %v2064 = vld [vmem:[#allocation4 + $0xe8] sm:$0xff]
    %v2065 = vld [vmem:[#allocation4 + $0xf0] sm:$0xff]
    %v2066 = vld [vmem:[#allocation4 + $0xf8] sm:$0xff]
    %v2067 = vld [vmem:[#allocation4 + $0x100] sm:$0xff]
    %v2068 = vld [vmem:[#allocation4 + $0x108] sm:$0xff]
    %v2069 = vld [vmem:[#allocation4 + $0x110] sm:$0xff]
    %v2070 = vld [vmem:[#allocation4 + $0x118] sm:$0xff]
    %v2071 = vld [vmem:[#allocation4 + $0x120] sm:$0xff]
    %v2072 = vld [vmem:[#allocation4 + $0x128] sm:$0xff]
    %v2073 = vld [vmem:[#allocation4 + $0x130] sm:$0xff]
    %v2074 = vld [vmem:[#allocation4 + $0x138] sm:$0xff]
    %v2075 = vld [vmem:[#allocation4 + $0x140] sm:$0xff]
    %v2076 = vld [vmem:[#allocation4 + $0x148] sm:$0xff]
    %v2077 = vld [vmem:[#allocation4 + $0x150] sm:$0xff]
    %v2078 = vld [vmem:[#allocation4 + $0x158] sm:$0xff]
    %v2079 = vld [vmem:[#allocation4 + $0x160] sm:$0xff]
    %v2080 = vld [vmem:[#allocation4 + $0x168] sm:$0xff]
    %v2081 = vld [vmem:[#allocation4 + $0x170] sm:$0xff]
    %v2082 = vld [vmem:[#allocation4 + $0x178] sm:$0xff]
    %v2083 = vld [vmem:[#allocation4 + $0x180] sm:$0xff]
    %v2084 = vld [vmem:[#allocation4 + $0x188] sm:$0xff]
    %v2085 = vld [vmem:[#allocation4 + $0x190] sm:$0xff]
    %v2086 = vld [vmem:[#allocation4 + $0x198] sm:$0xff]
    %v2087 = vld [vmem:[#allocation4 + $0x1a0] sm:$0xff]
    %v2088 = vld [vmem:[#allocation4 + $0x1a8] sm:$0xff]
    %v2089 = vld [vmem:[#allocation4 + $0x1b0] sm:$0xff]
    %v2090 = vld [vmem:[#allocation4 + $0x1b8] sm:$0xff]
    %v2091 = vld [vmem:[#allocation4 + $0x1c0] sm:$0xff]
    %v2092 = vld [vmem:[#allocation4 + $0x1c8] sm:$0xff]
    %v2093 = vld [vmem:[#allocation4 + $0x1d0] sm:$0xff]
    %v2094 = vld [vmem:[#allocation4 + $0x1d8] sm:$0xff]
    %v2095 = vld [vmem:[#allocation4 + $0x1e0] sm:$0xff]
    %v2096 = vld [vmem:[#allocation4 + $0x1e8] sm:$0xff]
    %v2097 = vld [vmem:[#allocation4 + $0x1f0] sm:$0xff]
    %v2098 = vld [vmem:[#allocation4 + $0x1f8] sm:$0xff]
    %v2099 = vld [vmem:[%s4] sm:$0x3]
    %v2101 = vlaneseq
    %v2102 = vshrl.u32 %v2101, 7
    %v2103 = vsub.s32 0, %v2102
    %v2104 = vrot.slane %v2099, %v2103
    %v2105 = vlaneseq
    %v2106 = vshrl.u32 %v2105, 7
    %v2107 = vsub.s32 1, %v2106
    %v2108 = vrot.slane %v2099, %v2107
    %v2175 = vunpack.c.l.b16 %v2035
    %v2176 = vunpack.c.h.b16 %v2035
    %v2177 = vunpack.c.l.b16 %v2036
    %v2178 = vunpack.c.h.b16 %v2036
    %v2179 = vunpack.c.l.b16 %v2037
    %v2180 = vunpack.c.h.b16 %v2037
    %v2181 = vunpack.c.l.b16 %v2038
    %v2182 = vunpack.c.h.b16 %v2038
    %v2183 = vunpack.c.l.b16 %v2039
    %v2184 = vunpack.c.h.b16 %v2039
    %v2185 = vunpack.c.l.b16 %v2040
    %v2186 = vunpack.c.h.b16 %v2040
    %v2187 = vunpack.c.l.b16 %v2041
    %v2188 = vunpack.c.h.b16 %v2041
    %v2189 = vunpack.c.l.b16 %v2042
    %v2190 = vunpack.c.h.b16 %v2042
    %v2191 = vunpack.c.l.b16 %v2043
    %v2192 = vunpack.c.h.b16 %v2043
    %v2193 = vunpack.c.l.b16 %v2044
    %v2194 = vunpack.c.h.b16 %v2044
    %v2195 = vunpack.c.l.b16 %v2045
    %v2196 = vunpack.c.h.b16 %v2045
    %v2197 = vunpack.c.l.b16 %v2046
    %v2198 = vunpack.c.h.b16 %v2046
    %v2199 = vunpack.c.l.b16 %v2047
    %v2200 = vunpack.c.h.b16 %v2047
    %v2201 = vunpack.c.l.b16 %v2048
    %v2202 = vunpack.c.h.b16 %v2048
    %v2203 = vunpack.c.l.b16 %v2049
    %v2204 = vunpack.c.h.b16 %v2049
    %v2205 = vunpack.c.l.b16 %v2050
    %v2206 = vunpack.c.h.b16 %v2050
    %v2207 = vunpack.c.l.b16 %v2051
    %v2208 = vunpack.c.h.b16 %v2051
    %v2209 = vunpack.c.l.b16 %v2052
    %v2210 = vunpack.c.h.b16 %v2052
    %v2211 = vunpack.c.l.b16 %v2053
    %v2212 = vunpack.c.h.b16 %v2053
    %v2213 = vunpack.c.l.b16 %v2054
    %v2214 = vunpack.c.h.b16 %v2054
    %v2215 = vunpack.c.l.b16 %v2055
    %v2216 = vunpack.c.h.b16 %v2055
    %v2217 = vunpack.c.l.b16 %v2056
    %v2218 = vunpack.c.h.b16 %v2056
    %v2219 = vunpack.c.l.b16 %v2057
    %v2220 = vunpack.c.h.b16 %v2057
    %v2221 = vunpack.c.l.b16 %v2058
    %v2222 = vunpack.c.h.b16 %v2058
    %v2223 = vunpack.c.l.b16 %v2059
    %v2224 = vunpack.c.h.b16 %v2059
    %v2225 = vunpack.c.l.b16 %v2060
    %v2226 = vunpack.c.h.b16 %v2060
    %v2227 = vunpack.c.l.b16 %v2061
    %v2228 = vunpack.c.h.b16 %v2061
    %v2229 = vunpack.c.l.b16 %v2062
    %v2230 = vunpack.c.h.b16 %v2062
    %v2231 = vunpack.c.l.b16 %v2063
    %v2232 = vunpack.c.h.b16 %v2063
    %v2233 = vunpack.c.l.b16 %v2064
    %v2234 = vunpack.c.h.b16 %v2064
    %v2235 = vunpack.c.l.b16 %v2065
    %v2236 = vunpack.c.h.b16 %v2065
    %v2237 = vunpack.c.l.b16 %v2066
    %v2238 = vunpack.c.h.b16 %v2066
    %v2239 = vunpack.c.l.b16 %v2067
    %v2240 = vunpack.c.h.b16 %v2067
    %v2241 = vunpack.c.l.b16 %v2068
    %v2242 = vunpack.c.h.b16 %v2068
    %v2243 = vunpack.c.l.b16 %v2069
    %v2244 = vunpack.c.h.b16 %v2069
    %v2245 = vunpack.c.l.b16 %v2070
    %v2246 = vunpack.c.h.b16 %v2070
    %v2247 = vunpack.c.l.b16 %v2071
    %v2248 = vunpack.c.h.b16 %v2071
    %v2249 = vunpack.c.l.b16 %v2072
    %v2250 = vunpack.c.h.b16 %v2072
    %v2251 = vunpack.c.l.b16 %v2073
    %v2252 = vunpack.c.h.b16 %v2073
    %v2253 = vunpack.c.l.b16 %v2074
    %v2254 = vunpack.c.h.b16 %v2074
    %v2255 = vunpack.c.l.b16 %v2075
    %v2256 = vunpack.c.h.b16 %v2075
    %v2257 = vunpack.c.l.b16 %v2076
    %v2258 = vunpack.c.h.b16 %v2076
    %v2259 = vunpack.c.l.b16 %v2077
    %v2260 = vunpack.c.h.b16 %v2077
    %v2261 = vunpack.c.l.b16 %v2078
    %v2262 = vunpack.c.h.b16 %v2078
    %v2263 = vunpack.c.l.b16 %v2079
    %v2264 = vunpack.c.h.b16 %v2079
    %v2265 = vunpack.c.l.b16 %v2080
    %v2266 = vunpack.c.h.b16 %v2080
    %v2267 = vunpack.c.l.b16 %v2081
    %v2268 = vunpack.c.h.b16 %v2081
    %v2269 = vunpack.c.l.b16 %v2082
    %v2270 = vunpack.c.h.b16 %v2082
    %v2271 = vunpack.c.l.b16 %v2083
    %v2272 = vunpack.c.h.b16 %v2083
    %v2273 = vunpack.c.l.b16 %v2084
    %v2274 = vunpack.c.h.b16 %v2084
    %v2275 = vunpack.c.l.b16 %v2085
    %v2276 = vunpack.c.h.b16 %v2085
    %v2277 = vunpack.c.l.b16 %v2086
    %v2278 = vunpack.c.h.b16 %v2086
    %v2279 = vunpack.c.l.b16 %v2087
    %v2280 = vunpack.c.h.b16 %v2087
    %v2281 = vunpack.c.l.b16 %v2088
    %v2282 = vunpack.c.h.b16 %v2088
    %v2283 = vunpack.c.l.b16 %v2089
    %v2284 = vunpack.c.h.b16 %v2089
    %v2285 = vunpack.c.l.b16 %v2090
    %v2286 = vunpack.c.h.b16 %v2090
    %v2287 = vunpack.c.l.b16 %v2091
    %v2288 = vunpack.c.h.b16 %v2091
    %v2289 = vunpack.c.l.b16 %v2092
    %v2290 = vunpack.c.h.b16 %v2092
    %v2291 = vunpack.c.l.b16 %v2093
    %v2292 = vunpack.c.h.b16 %v2093
    %v2293 = vunpack.c.l.b16 %v2094
    %v2294 = vunpack.c.h.b16 %v2094
    %v2295 = vunpack.c.l.b16 %v2095
    %v2296 = vunpack.c.h.b16 %v2095
    %v2297 = vunpack.c.l.b16 %v2096
    %v2298 = vunpack.c.h.b16 %v2096
    %v2299 = vunpack.c.l.b16 %v2097
    %v2300 = vunpack.c.h.b16 %v2097
    %v2301 = vunpack.c.l.b16 %v2098
    %v2302 = vunpack.c.h.b16 %v2098
    %v2303 = vpack.c.b16 %v2177, %v2175
    %v2304 = vpack.c.b16 %v2178, %v2176
    %v2305 = vpack.c.b16 %v2181, %v2179
    %v2306 = vpack.c.b16 %v2182, %v2180
    %v2307 = vpack.c.b16 %v2185, %v2183
    %v2308 = vpack.c.b16 %v2186, %v2184
    %v2309 = vpack.c.b16 %v2189, %v2187
    %v2310 = vpack.c.b16 %v2190, %v2188
    %v2311 = vpack.c.b16 %v2193, %v2191
    %v2312 = vpack.c.b16 %v2194, %v2192
    %v2313 = vpack.c.b16 %v2197, %v2195
    %v2314 = vpack.c.b16 %v2198, %v2196
    %v2315 = vpack.c.b16 %v2201, %v2199
    %v2316 = vpack.c.b16 %v2202, %v2200
    %v2317 = vpack.c.b16 %v2205, %v2203
    %v2318 = vpack.c.b16 %v2206, %v2204
    %v2319 = vpack.c.b16 %v2209, %v2207
    %v2320 = vpack.c.b16 %v2210, %v2208
    %v2321 = vpack.c.b16 %v2213, %v2211
    %v2322 = vpack.c.b16 %v2214, %v2212
    %v2323 = vpack.c.b16 %v2217, %v2215
    %v2324 = vpack.c.b16 %v2218, %v2216
    %v2325 = vpack.c.b16 %v2221, %v2219
    %v2326 = vpack.c.b16 %v2222, %v2220
    %v2327 = vpack.c.b16 %v2225, %v2223
    %v2328 = vpack.c.b16 %v2226, %v2224
    %v2329 = vpack.c.b16 %v2229, %v2227
    %v2330 = vpack.c.b16 %v2230, %v2228
    %v2331 = vpack.c.b16 %v2233, %v2231
    %v2332 = vpack.c.b16 %v2234, %v2232
    %v2333 = vpack.c.b16 %v2237, %v2235
    %v2334 = vpack.c.b16 %v2238, %v2236
    %v2335 = vpack.c.b16 %v2241, %v2239
    %v2336 = vpack.c.b16 %v2242, %v2240
    %v2337 = vpack.c.b16 %v2245, %v2243
    %v2338 = vpack.c.b16 %v2246, %v2244
    %v2339 = vpack.c.b16 %v2249, %v2247
    %v2340 = vpack.c.b16 %v2250, %v2248
    %v2341 = vpack.c.b16 %v2253, %v2251
    %v2342 = vpack.c.b16 %v2254, %v2252
    %v2343 = vpack.c.b16 %v2257, %v2255
    %v2344 = vpack.c.b16 %v2258, %v2256
    %v2345 = vpack.c.b16 %v2261, %v2259
    %v2346 = vpack.c.b16 %v2262, %v2260
    %v2347 = vpack.c.b16 %v2265, %v2263
    %v2348 = vpack.c.b16 %v2266, %v2264
    %v2349 = vpack.c.b16 %v2269, %v2267
    %v2350 = vpack.c.b16 %v2270, %v2268
    %v2351 = vpack.c.b16 %v2273, %v2271
    %v2352 = vpack.c.b16 %v2274, %v2272
    %v2353 = vpack.c.b16 %v2277, %v2275
    %v2354 = vpack.c.b16 %v2278, %v2276
    %v2355 = vpack.c.b16 %v2281, %v2279
    %v2356 = vpack.c.b16 %v2282, %v2280
    %v2357 = vpack.c.b16 %v2285, %v2283
    %v2358 = vpack.c.b16 %v2286, %v2284
    %v2359 = vpack.c.b16 %v2289, %v2287
    %v2360 = vpack.c.b16 %v2290, %v2288
    %v2361 = vpack.c.b16 %v2293, %v2291
    %v2362 = vpack.c.b16 %v2294, %v2292
    %v2363 = vpack.c.b16 %v2297, %v2295
    %v2364 = vpack.c.b16 %v2298, %v2296
    %v2365 = vpack.c.b16 %v2301, %v2299
    %v2366 = vpack.c.b16 %v2302, %v2300
    %2431 = vmatprep.subr.bf16.mxu0 %v2318
    %2432 = vmatpush1.bf16.msra.mxu0 %v2317
    %2433 = vmatprep.subr.bf16.mxu0 %v2316
    %2434 = vmatpush1.bf16.msra.mxu0 %v2315
    %2435 = vmatprep.subr.bf16.mxu0 %v2314
    %2436 = vmatpush1.bf16.msra.mxu0 %v2313
    %2437 = vmatprep.subr.bf16.mxu0 %v2312
    %2438 = vmatpush1.bf16.msra.mxu0 %v2311
    %2439 = vmatprep.subr.bf16.mxu0 %v2310
    %2440 = vmatpush1.bf16.msra.mxu0 %v2309
    %2441 = vmatprep.subr.bf16.mxu0 %v2308
    %2442 = vmatpush1.bf16.msra.mxu0 %v2307
    %2443 = vmatprep.subr.bf16.mxu0 %v2306
    %2444 = vmatpush1.bf16.msra.mxu0 %v2305
    %2445 = vmatprep.subr.bf16.mxu0 %v2304
    %2446 = vmatpush1.bf16.msra.mxu0 %v2303
    %2447 = vmatprep.subr.bf16.mxu0 %v2334
    %2448 = vmatpush2.bf16.msra.mxu0 %v2333
    %2449 = vmatprep.subr.bf16.mxu0 %v2332
    %2450 = vmatpush2.bf16.msra.mxu0 %v2331
    %2451 = vmatprep.subr.bf16.mxu0 %v2330
    %2452 = vmatpush2.bf16.msra.mxu0 %v2329
    %2453 = vmatprep.subr.bf16.mxu0 %v2328
    %2454 = vmatpush2.bf16.msra.mxu0 %v2327
    %2455 = vmatprep.subr.bf16.mxu0 %v2326
    %2456 = vmatpush2.bf16.msra.mxu0 %v2325
    %2457 = vmatprep.subr.bf16.mxu0 %v2324
    %2458 = vmatpush2.bf16.msra.mxu0 %v2323
    %2459 = vmatprep.subr.bf16.mxu0 %v2322
    %2460 = vmatpush2.bf16.msra.mxu0 %v2321
    %2461 = vmatprep.subr.bf16.mxu0 %v2320
    %2462 = vmatpush2.bf16.msra.mxu0 %v2319
    %2463 = vmatprep.mubr.bf16.mxu0 %v2032
    %2464 = vmatmul.mubr.bf16.gmra.mxu0 %v2031
    %v2465 = vpop.f32.mrf.mxu0
    %v2466 = vadd.f32 %v2104, %v2465
    %v2467 = vpop.f32.mrf.mxu0
    %v2468 = vadd.f32 %v2108, %v2467
    %v2469 = vpop.f32.mrf.mxu0
    %v2470 = vpop.f32.mrf.mxu0
    %2471 = vdwg.mxu0
    %2472 = vmatprep.subr.bf16.mxu0 %v2350
    %2473 = vmatpush1.bf16.msra.mxu0 %v2349
    %2474 = vmatprep.subr.bf16.mxu0 %v2348
    %2475 = vmatpush1.bf16.msra.mxu0 %v2347
    %2476 = vmatprep.subr.bf16.mxu0 %v2346
    %2477 = vmatpush1.bf16.msra.mxu0 %v2345
    %2478 = vmatprep.subr.bf16.mxu0 %v2344
    %2479 = vmatpush1.bf16.msra.mxu0 %v2343
    %2480 = vmatprep.subr.bf16.mxu0 %v2342
    %2481 = vmatpush1.bf16.msra.mxu0 %v2341
    %2482 = vmatprep.subr.bf16.mxu0 %v2340
    %2483 = vmatpush1.bf16.msra.mxu0 %v2339
    %2484 = vmatprep.subr.bf16.mxu0 %v2338
    %2485 = vmatpush1.bf16.msra.mxu0 %v2337
    %2486 = vmatprep.subr.bf16.mxu0 %v2336
    %2487 = vmatpush1.bf16.msra.mxu0 %v2335
    %2488 = vmatprep.subr.bf16.mxu0 %v2366
    %2489 = vmatpush2.bf16.msra.mxu0 %v2365
    %2490 = vmatprep.subr.bf16.mxu0 %v2364
    %2491 = vmatpush2.bf16.msra.mxu0 %v2363
    %2492 = vmatprep.subr.bf16.mxu0 %v2362
    %2493 = vmatpush2.bf16.msra.mxu0 %v2361
    %2494 = vmatprep.subr.bf16.mxu0 %v2360
    %2495 = vmatpush2.bf16.msra.mxu0 %v2359
    %2496 = vmatprep.subr.bf16.mxu0 %v2358
    %2497 = vmatpush2.bf16.msra.mxu0 %v2357
    %2498 = vmatprep.subr.bf16.mxu0 %v2356
    %2499 = vmatpush2.bf16.msra.mxu0 %v2355
    %2500 = vmatprep.subr.bf16.mxu0 %v2354
    %2501 = vmatpush2.bf16.msra.mxu0 %v2353
    %2502 = vmatprep.subr.bf16.mxu0 %v2352
    %2503 = vmatpush2.bf16.msra.mxu0 %v2351
    %2504 = vmatprep.mubr.bf16.mxu0 %v2034
    %2505 = vmatmul.mubr.bf16.gmra.mxu0 %v2033
    %v2506 = vpop.f32.mrf.mxu0
    %v2507 = vadd.f32 %v2466, %v2506
    %v2508 = vpop.f32.mrf.mxu0
    %v2509 = vadd.f32 %v2468, %v2508
    %v2510 = vpop.f32.mrf.mxu0
    %v2511 = vpop.f32.mrf.mxu0
    %2512 = vdwg.mxu0
    %v2513 = vmax.f32 %v2507, 0.0
    %v2514 = vmax.f32 %v2509, 0.0
    %v2515 = vpack.c.bf16 %v2513, %v2513
    %v2516 = vpack.c.bf16 %v2514, %v2514
    %v2517 = vld [vmem:[#allocation6] sm:$0xff]
    %v2518 = vld [vmem:[#allocation6 + $0x8] sm:$0xff]
    %v2519 = vld [vmem:[#allocation6 + $0x10] sm:$0xff]
    %v2520 = vld [vmem:[#allocation6 + $0x18] sm:$0xff]
    %v2521 = vld [vmem:[#allocation6 + $0x20] sm:$0xff]
    %v2522 = vld [vmem:[#allocation6 + $0x28] sm:$0xff]
    %v2523 = vld [vmem:[#allocation6 + $0x30] sm:$0xff]
    %v2524 = vld [vmem:[#allocation6 + $0x38] sm:$0xff]
    %v2525 = vld [vmem:[#allocation6 + $0x40] sm:$0xff]
    %v2526 = vld [vmem:[#allocation6 + $0x48] sm:$0xff]
    %v2527 = vld [vmem:[#allocation6 + $0x50] sm:$0xff]
    %v2528 = vld [vmem:[#allocation6 + $0x58] sm:$0xff]
    %v2529 = vld [vmem:[#allocation6 + $0x60] sm:$0xff]
    %v2530 = vld [vmem:[#allocation6 + $0x68] sm:$0xff]
    %v2531 = vld [vmem:[#allocation6 + $0x70] sm:$0xff]
    %v2532 = vld [vmem:[#allocation6 + $0x78] sm:$0xff]
    %v2533 = vld [vmem:[#allocation6 + $0x80] sm:$0xff]
    %v2534 = vld [vmem:[#allocation6 + $0x88] sm:$0xff]
    %v2535 = vld [vmem:[#allocation6 + $0x90] sm:$0xff]
    %v2536 = vld [vmem:[#allocation6 + $0x98] sm:$0xff]
    %v2537 = vld [vmem:[#allocation6 + $0xa0] sm:$0xff]
    %v2538 = vld [vmem:[#allocation6 + $0xa8] sm:$0xff]
    %v2539 = vld [vmem:[#allocation6 + $0xb0] sm:$0xff]
    %v2540 = vld [vmem:[#allocation6 + $0xb8] sm:$0xff]
    %v2541 = vld [vmem:[#allocation6 + $0xc0] sm:$0xff]
    %v2542 = vld [vmem:[#allocation6 + $0xc8] sm:$0xff]
    %v2543 = vld [vmem:[#allocation6 + $0xd0] sm:$0xff]
    %v2544 = vld [vmem:[#allocation6 + $0xd8] sm:$0xff]
    %v2545 = vld [vmem:[#allocation6 + $0xe0] sm:$0xff]
    %v2546 = vld [vmem:[#allocation6 + $0xe8] sm:$0xff]
    %v2547 = vld [vmem:[#allocation6 + $0xf0] sm:$0xff]
    %v2548 = vld [vmem:[#allocation6 + $0xf8] sm:$0xff]
    %v2549 = vld [vmem:[#allocation6 + $0x100] sm:$0xff]
    %v2550 = vld [vmem:[#allocation6 + $0x108] sm:$0xff]
    %v2551 = vld [vmem:[#allocation6 + $0x110] sm:$0xff]
    %v2552 = vld [vmem:[#allocation6 + $0x118] sm:$0xff]
    %v2553 = vld [vmem:[#allocation6 + $0x120] sm:$0xff]
    %v2554 = vld [vmem:[#allocation6 + $0x128] sm:$0xff]
    %v2555 = vld [vmem:[#allocation6 + $0x130] sm:$0xff]
    %v2556 = vld [vmem:[#allocation6 + $0x138] sm:$0xff]
    %v2557 = vld [vmem:[#allocation6 + $0x140] sm:$0xff]
    %v2558 = vld [vmem:[#allocation6 + $0x148] sm:$0xff]
    %v2559 = vld [vmem:[#allocation6 + $0x150] sm:$0xff]
    %v2560 = vld [vmem:[#allocation6 + $0x158] sm:$0xff]
    %v2561 = vld [vmem:[#allocation6 + $0x160] sm:$0xff]
    %v2562 = vld [vmem:[#allocation6 + $0x168] sm:$0xff]
    %v2563 = vld [vmem:[#allocation6 + $0x170] sm:$0xff]
    %v2564 = vld [vmem:[#allocation6 + $0x178] sm:$0xff]
    %v2565 = vld [vmem:[#allocation6 + $0x180] sm:$0xff]
    %v2566 = vld [vmem:[#allocation6 + $0x188] sm:$0xff]
    %v2567 = vld [vmem:[#allocation6 + $0x190] sm:$0xff]
    %v2568 = vld [vmem:[#allocation6 + $0x198] sm:$0xff]
    %v2569 = vld [vmem:[#allocation6 + $0x1a0] sm:$0xff]
    %v2570 = vld [vmem:[#allocation6 + $0x1a8] sm:$0xff]
    %v2571 = vld [vmem:[#allocation6 + $0x1b0] sm:$0xff]
    %v2572 = vld [vmem:[#allocation6 + $0x1b8] sm:$0xff]
    %v2573 = vld [vmem:[#allocation6 + $0x1c0] sm:$0xff]
    %v2574 = vld [vmem:[#allocation6 + $0x1c8] sm:$0xff]
    %v2575 = vld [vmem:[#allocation6 + $0x1d0] sm:$0xff]
    %v2576 = vld [vmem:[#allocation6 + $0x1d8] sm:$0xff]
    %v2577 = vld [vmem:[#allocation6 + $0x1e0] sm:$0xff]
    %v2578 = vld [vmem:[#allocation6 + $0x1e8] sm:$0xff]
    %v2579 = vld [vmem:[#allocation6 + $0x1f0] sm:$0xff]
    %v2580 = vld [vmem:[#allocation6 + $0x1f8] sm:$0xff]
    %v2581 = vld [vmem:[%s6] sm:$0xf]
    %v2583 = vlaneseq
    %v2584 = vshrl.u32 %v2583, 7
    %v2585 = vsub.s32 0, %v2584
    %v2586 = vrot.slane %v2581, %v2585
    %v2587 = vlaneseq
    %v2588 = vshrl.u32 %v2587, 7
    %v2589 = vsub.s32 1, %v2588
    %v2590 = vrot.slane %v2581, %v2589
    %v2591 = vlaneseq
    %v2592 = vshrl.u32 %v2591, 7
    %v2593 = vsub.s32 2, %v2592
    %v2594 = vrot.slane %v2581, %v2593
    %v2595 = vlaneseq
    %v2596 = vshrl.u32 %v2595, 7
    %v2597 = vsub.s32 3, %v2596
    %v2598 = vrot.slane %v2581, %v2597
    %v2667 = vunpack.c.l.b16 %v2517
    %v2668 = vunpack.c.h.b16 %v2517
    %v2669 = vunpack.c.l.b16 %v2518
    %v2670 = vunpack.c.h.b16 %v2518
    %v2671 = vunpack.c.l.b16 %v2519
    %v2672 = vunpack.c.h.b16 %v2519
    %v2673 = vunpack.c.l.b16 %v2520
    %v2674 = vunpack.c.h.b16 %v2520
    %v2675 = vunpack.c.l.b16 %v2521
    %v2676 = vunpack.c.h.b16 %v2521
    %v2677 = vunpack.c.l.b16 %v2522
    %v2678 = vunpack.c.h.b16 %v2522
    %v2679 = vunpack.c.l.b16 %v2523
    %v2680 = vunpack.c.h.b16 %v2523
    %v2681 = vunpack.c.l.b16 %v2524
    %v2682 = vunpack.c.h.b16 %v2524
    %v2683 = vunpack.c.l.b16 %v2525
    %v2684 = vunpack.c.h.b16 %v2525
    %v2685 = vunpack.c.l.b16 %v2526
    %v2686 = vunpack.c.h.b16 %v2526
    %v2687 = vunpack.c.l.b16 %v2527
    %v2688 = vunpack.c.h.b16 %v2527
    %v2689 = vunpack.c.l.b16 %v2528
    %v2690 = vunpack.c.h.b16 %v2528
    %v2691 = vunpack.c.l.b16 %v2529
    %v2692 = vunpack.c.h.b16 %v2529
    %v2693 = vunpack.c.l.b16 %v2530
    %v2694 = vunpack.c.h.b16 %v2530
    %v2695 = vunpack.c.l.b16 %v2531
    %v2696 = vunpack.c.h.b16 %v2531
    %v2697 = vunpack.c.l.b16 %v2532
    %v2698 = vunpack.c.h.b16 %v2532
    %v2699 = vunpack.c.l.b16 %v2533
    %v2700 = vunpack.c.h.b16 %v2533
    %v2701 = vunpack.c.l.b16 %v2534
    %v2702 = vunpack.c.h.b16 %v2534
    %v2703 = vunpack.c.l.b16 %v2535
    %v2704 = vunpack.c.h.b16 %v2535
    %v2705 = vunpack.c.l.b16 %v2536
    %v2706 = vunpack.c.h.b16 %v2536
    %v2707 = vunpack.c.l.b16 %v2537
    %v2708 = vunpack.c.h.b16 %v2537
    %v2709 = vunpack.c.l.b16 %v2538
    %v2710 = vunpack.c.h.b16 %v2538
    %v2711 = vunpack.c.l.b16 %v2539
    %v2712 = vunpack.c.h.b16 %v2539
    %v2713 = vunpack.c.l.b16 %v2540
    %v2714 = vunpack.c.h.b16 %v2540
    %v2715 = vunpack.c.l.b16 %v2541
    %v2716 = vunpack.c.h.b16 %v2541
    %v2717 = vunpack.c.l.b16 %v2542
    %v2718 = vunpack.c.h.b16 %v2542
    %v2719 = vunpack.c.l.b16 %v2543
    %v2720 = vunpack.c.h.b16 %v2543
    %v2721 = vunpack.c.l.b16 %v2544
    %v2722 = vunpack.c.h.b16 %v2544
    %v2723 = vunpack.c.l.b16 %v2545
    %v2724 = vunpack.c.h.b16 %v2545
    %v2725 = vunpack.c.l.b16 %v2546
    %v2726 = vunpack.c.h.b16 %v2546
    %v2727 = vunpack.c.l.b16 %v2547
    %v2728 = vunpack.c.h.b16 %v2547
    %v2729 = vunpack.c.l.b16 %v2548
    %v2730 = vunpack.c.h.b16 %v2548
    %v2731 = vunpack.c.l.b16 %v2549
    %v2732 = vunpack.c.h.b16 %v2549
    %v2733 = vunpack.c.l.b16 %v2550
    %v2734 = vunpack.c.h.b16 %v2550
    %v2735 = vunpack.c.l.b16 %v2551
    %v2736 = vunpack.c.h.b16 %v2551
    %v2737 = vunpack.c.l.b16 %v2552
    %v2738 = vunpack.c.h.b16 %v2552
    %v2739 = vunpack.c.l.b16 %v2553
    %v2740 = vunpack.c.h.b16 %v2553
    %v2741 = vunpack.c.l.b16 %v2554
    %v2742 = vunpack.c.h.b16 %v2554
    %v2743 = vunpack.c.l.b16 %v2555
    %v2744 = vunpack.c.h.b16 %v2555
    %v2745 = vunpack.c.l.b16 %v2556
    %v2746 = vunpack.c.h.b16 %v2556
    %v2747 = vunpack.c.l.b16 %v2557
    %v2748 = vunpack.c.h.b16 %v2557
    %v2749 = vunpack.c.l.b16 %v2558
    %v2750 = vunpack.c.h.b16 %v2558
    %v2751 = vunpack.c.l.b16 %v2559
    %v2752 = vunpack.c.h.b16 %v2559
    %v2753 = vunpack.c.l.b16 %v2560
    %v2754 = vunpack.c.h.b16 %v2560
    %v2755 = vunpack.c.l.b16 %v2561
    %v2756 = vunpack.c.h.b16 %v2561
    %v2757 = vunpack.c.l.b16 %v2562
    %v2758 = vunpack.c.h.b16 %v2562
    %v2759 = vunpack.c.l.b16 %v2563
    %v2760 = vunpack.c.h.b16 %v2563
    %v2761 = vunpack.c.l.b16 %v2564
    %v2762 = vunpack.c.h.b16 %v2564
    %v2763 = vunpack.c.l.b16 %v2565
    %v2764 = vunpack.c.h.b16 %v2565
    %v2765 = vunpack.c.l.b16 %v2566
    %v2766 = vunpack.c.h.b16 %v2566
    %v2767 = vunpack.c.l.b16 %v2567
    %v2768 = vunpack.c.h.b16 %v2567
    %v2769 = vunpack.c.l.b16 %v2568
    %v2770 = vunpack.c.h.b16 %v2568
    %v2771 = vunpack.c.l.b16 %v2569
    %v2772 = vunpack.c.h.b16 %v2569
    %v2773 = vunpack.c.l.b16 %v2570
    %v2774 = vunpack.c.h.b16 %v2570
    %v2775 = vunpack.c.l.b16 %v2571
    %v2776 = vunpack.c.h.b16 %v2571
    %v2777 = vunpack.c.l.b16 %v2572
    %v2778 = vunpack.c.h.b16 %v2572
    %v2779 = vunpack.c.l.b16 %v2573
    %v2780 = vunpack.c.h.b16 %v2573
    %v2781 = vunpack.c.l.b16 %v2574
    %v2782 = vunpack.c.h.b16 %v2574
    %v2783 = vunpack.c.l.b16 %v2575
    %v2784 = vunpack.c.h.b16 %v2575
    %v2785 = vunpack.c.l.b16 %v2576
    %v2786 = vunpack.c.h.b16 %v2576
    %v2787 = vunpack.c.l.b16 %v2577
    %v2788 = vunpack.c.h.b16 %v2577
    %v2789 = vunpack.c.l.b16 %v2578
    %v2790 = vunpack.c.h.b16 %v2578
    %v2791 = vunpack.c.l.b16 %v2579
    %v2792 = vunpack.c.h.b16 %v2579
    %v2793 = vunpack.c.l.b16 %v2580
    %v2794 = vunpack.c.h.b16 %v2580
    %v2795 = vpack.c.b16 %v2671, %v2667
    %v2796 = vpack.c.b16 %v2672, %v2668
    %v2797 = vpack.c.b16 %v2673, %v2669
    %v2798 = vpack.c.b16 %v2674, %v2670
    %v2799 = vpack.c.b16 %v2679, %v2675
    %v2800 = vpack.c.b16 %v2680, %v2676
    %v2801 = vpack.c.b16 %v2681, %v2677
    %v2802 = vpack.c.b16 %v2682, %v2678
    %v2803 = vpack.c.b16 %v2687, %v2683
    %v2804 = vpack.c.b16 %v2688, %v2684
    %v2805 = vpack.c.b16 %v2689, %v2685
    %v2806 = vpack.c.b16 %v2690, %v2686
    %v2807 = vpack.c.b16 %v2695, %v2691
    %v2808 = vpack.c.b16 %v2696, %v2692
    %v2809 = vpack.c.b16 %v2697, %v2693
    %v2810 = vpack.c.b16 %v2698, %v2694
    %v2811 = vpack.c.b16 %v2703, %v2699
    %v2812 = vpack.c.b16 %v2704, %v2700
    %v2813 = vpack.c.b16 %v2705, %v2701
    %v2814 = vpack.c.b16 %v2706, %v2702
    %v2815 = vpack.c.b16 %v2711, %v2707
    %v2816 = vpack.c.b16 %v2712, %v2708
    %v2817 = vpack.c.b16 %v2713, %v2709
    %v2818 = vpack.c.b16 %v2714, %v2710
    %v2819 = vpack.c.b16 %v2719, %v2715
    %v2820 = vpack.c.b16 %v2720, %v2716
    %v2821 = vpack.c.b16 %v2721, %v2717
    %v2822 = vpack.c.b16 %v2722, %v2718
    %v2823 = vpack.c.b16 %v2727, %v2723
    %v2824 = vpack.c.b16 %v2728, %v2724
    %v2825 = vpack.c.b16 %v2729, %v2725
    %v2826 = vpack.c.b16 %v2730, %v2726
    %v2827 = vpack.c.b16 %v2735, %v2731
    %v2828 = vpack.c.b16 %v2736, %v2732
    %v2829 = vpack.c.b16 %v2737, %v2733
    %v2830 = vpack.c.b16 %v2738, %v2734
    %v2831 = vpack.c.b16 %v2743, %v2739
    %v2832 = vpack.c.b16 %v2744, %v2740
    %v2833 = vpack.c.b16 %v2745, %v2741
    %v2834 = vpack.c.b16 %v2746, %v2742
    %v2835 = vpack.c.b16 %v2751, %v2747
    %v2836 = vpack.c.b16 %v2752, %v2748
    %v2837 = vpack.c.b16 %v2753, %v2749
    %v2838 = vpack.c.b16 %v2754, %v2750
    %v2839 = vpack.c.b16 %v2759, %v2755
    %v2840 = vpack.c.b16 %v2760, %v2756
    %v2841 = vpack.c.b16 %v2761, %v2757
    %v2842 = vpack.c.b16 %v2762, %v2758
    %v2843 = vpack.c.b16 %v2767, %v2763
    %v2844 = vpack.c.b16 %v2768, %v2764
    %v2845 = vpack.c.b16 %v2769, %v2765
    %v2846 = vpack.c.b16 %v2770, %v2766
    %v2847 = vpack.c.b16 %v2775, %v2771
    %v2848 = vpack.c.b16 %v2776, %v2772
    %v2849 = vpack.c.b16 %v2777, %v2773
    %v2850 = vpack.c.b16 %v2778, %v2774
    %v2851 = vpack.c.b16 %v2783, %v2779
    %v2852 = vpack.c.b16 %v2784, %v2780
    %v2853 = vpack.c.b16 %v2785, %v2781
    %v2854 = vpack.c.b16 %v2786, %v2782
    %v2855 = vpack.c.b16 %v2791, %v2787
    %v2856 = vpack.c.b16 %v2792, %v2788
    %v2857 = vpack.c.b16 %v2793, %v2789
    %v2858 = vpack.c.b16 %v2794, %v2790
    %2923 = vmatprep.subr.bf16.mxu0 %v2824
    %2924 = vmatpush1.bf16.msra.mxu0 %v2823
    %2925 = vmatprep.subr.bf16.mxu0 %v2820
    %2926 = vmatpush1.bf16.msra.mxu0 %v2819
    %2927 = vmatprep.subr.bf16.mxu0 %v2816
    %2928 = vmatpush1.bf16.msra.mxu0 %v2815
    %2929 = vmatprep.subr.bf16.mxu0 %v2812
    %2930 = vmatpush1.bf16.msra.mxu0 %v2811
    %2931 = vmatprep.subr.bf16.mxu0 %v2808
    %2932 = vmatpush1.bf16.msra.mxu0 %v2807
    %2933 = vmatprep.subr.bf16.mxu0 %v2804
    %2934 = vmatpush1.bf16.msra.mxu0 %v2803
    %2935 = vmatprep.subr.bf16.mxu0 %v2800
    %2936 = vmatpush1.bf16.msra.mxu0 %v2799
    %2937 = vmatprep.subr.bf16.mxu0 %v2796
    %2938 = vmatpush1.bf16.msra.mxu0 %v2795
    %2939 = vmatprep.subr.bf16.mxu0 %v2856
    %2940 = vmatpush2.bf16.msra.mxu0 %v2855
    %2941 = vmatprep.subr.bf16.mxu0 %v2852
    %2942 = vmatpush2.bf16.msra.mxu0 %v2851
    %2943 = vmatprep.subr.bf16.mxu0 %v2848
    %2944 = vmatpush2.bf16.msra.mxu0 %v2847
    %2945 = vmatprep.subr.bf16.mxu0 %v2844
    %2946 = vmatpush2.bf16.msra.mxu0 %v2843
    %2947 = vmatprep.subr.bf16.mxu0 %v2840
    %2948 = vmatpush2.bf16.msra.mxu0 %v2839
    %2949 = vmatprep.subr.bf16.mxu0 %v2836
    %2950 = vmatpush2.bf16.msra.mxu0 %v2835
    %2951 = vmatprep.subr.bf16.mxu0 %v2832
    %2952 = vmatpush2.bf16.msra.mxu0 %v2831
    %2953 = vmatprep.subr.bf16.mxu0 %v2828
    %2954 = vmatpush2.bf16.msra.mxu0 %v2827
    %2955 = vmatprep.mubr.bf16.mxu0 %v2516
    %2956 = vmatmul.mubr.bf16.gmra.mxu0 %v2515
    %v2957 = vpop.f32.mrf.mxu0
    %v2958 = vadd.f32 %v2586, %v2957
    %v2959 = vpop.f32.mrf.mxu0
    %v2960 = vadd.f32 %v2590, %v2959
    %v2961 = vpop.f32.mrf.mxu0
    %v2962 = vpop.f32.mrf.mxu0
    %2963 = vdwg.mxu0
    %2964 = vmatprep.subr.bf16.mxu0 %v2826
    %2965 = vmatpush1.bf16.msra.mxu0 %v2825
    %2966 = vmatprep.subr.bf16.mxu0 %v2822
    %2967 = vmatpush1.bf16.msra.mxu0 %v2821
    %2968 = vmatprep.subr.bf16.mxu0 %v2818
    %2969 = vmatpush1.bf16.msra.mxu0 %v2817
    %2970 = vmatprep.subr.bf16.mxu0 %v2814
    %2971 = vmatpush1.bf16.msra.mxu0 %v2813
    %2972 = vmatprep.subr.bf16.mxu0 %v2810
    %2973 = vmatpush1.bf16.msra.mxu0 %v2809
    %2974 = vmatprep.subr.bf16.mxu0 %v2806
    %2975 = vmatpush1.bf16.msra.mxu0 %v2805
    %2976 = vmatprep.subr.bf16.mxu0 %v2802
    %2977 = vmatpush1.bf16.msra.mxu0 %v2801
    %2978 = vmatprep.subr.bf16.mxu0 %v2798
    %2979 = vmatpush1.bf16.msra.mxu0 %v2797
    %2980 = vmatprep.subr.bf16.mxu0 %v2858
    %2981 = vmatpush2.bf16.msra.mxu0 %v2857
    %2982 = vmatprep.subr.bf16.mxu0 %v2854
    %2983 = vmatpush2.bf16.msra.mxu0 %v2853
    %2984 = vmatprep.subr.bf16.mxu0 %v2850
    %2985 = vmatpush2.bf16.msra.mxu0 %v2849
    %2986 = vmatprep.subr.bf16.mxu0 %v2846
    %2987 = vmatpush2.bf16.msra.mxu0 %v2845
    %2988 = vmatprep.subr.bf16.mxu0 %v2842
    %2989 = vmatpush2.bf16.msra.mxu0 %v2841
    %2990 = vmatprep.subr.bf16.mxu0 %v2838
    %2991 = vmatpush2.bf16.msra.mxu0 %v2837
    %2992 = vmatprep.subr.bf16.mxu0 %v2834
    %2993 = vmatpush2.bf16.msra.mxu0 %v2833
    %2994 = vmatprep.subr.bf16.mxu0 %v2830
    %2995 = vmatpush2.bf16.msra.mxu0 %v2829
    %2996 = vmatprep.mubr.bf16.mxu0 %v2516
    %2997 = vmatmul.mubr.bf16.gmra.mxu0 %v2515
    %v2998 = vpop.f32.mrf.mxu0
    %v2999 = vadd.f32 %v2594, %v2998
    %v3000 = vpop.f32.mrf.mxu0
    %v3001 = vadd.f32 %v2598, %v3000
    %v3002 = vpop.f32.mrf.mxu0
    %v3003 = vpop.f32.mrf.mxu0
    %3004 = vdwg.mxu0
    %v3005 = vmax.f32 %v2958, 0.0
    %v3006 = vmax.f32 %v2960, 0.0
    %v3007 = vmax.f32 %v2999, 0.0
    %v3008 = vmax.f32 %v3001, 0.0
    %v3009 = vpack.c.bf16 %v3005, %v3005
    %v3010 = vpack.c.bf16 %v3006, %v3006
    %v3011 = vpack.c.bf16 %v3007, %v3007
    %v3012 = vpack.c.bf16 %v3008, %v3008
    %v3013 = vld [vmem:[#allocation7] sm:$0xff]
    %v3014 = vld [vmem:[#allocation7 + $0x8] sm:$0xff]
    %v3015 = vld [vmem:[#allocation7 + $0x10] sm:$0xff]
    %v3016 = vld [vmem:[#allocation7 + $0x18] sm:$0xff]
    %v3017 = vld [vmem:[#allocation7 + $0x20] sm:$0xff]
    %v3018 = vld [vmem:[#allocation7 + $0x28] sm:$0xff]
    %v3019 = vld [vmem:[#allocation7 + $0x30] sm:$0xff]
    %v3020 = vld [vmem:[#allocation7 + $0x38] sm:$0xff]
    %v3021 = vld [vmem:[#allocation7 + $0x40] sm:$0xff]
    %v3022 = vld [vmem:[#allocation7 + $0x48] sm:$0xff]
    %v3023 = vld [vmem:[#allocation7 + $0x50] sm:$0xff]
    %v3024 = vld [vmem:[#allocation7 + $0x58] sm:$0xff]
    %v3025 = vld [vmem:[#allocation7 + $0x60] sm:$0xff]
    %v3026 = vld [vmem:[#allocation7 + $0x68] sm:$0xff]
    %v3027 = vld [vmem:[#allocation7 + $0x70] sm:$0xff]
    %v3028 = vld [vmem:[#allocation7 + $0x78] sm:$0xff]
    %v3029 = vld [vmem:[#allocation7 + $0x80] sm:$0xff]
    %v3030 = vld [vmem:[#allocation7 + $0x88] sm:$0xff]
    %v3031 = vld [vmem:[#allocation7 + $0x90] sm:$0xff]
    %v3032 = vld [vmem:[#allocation7 + $0x98] sm:$0xff]
    %v3033 = vld [vmem:[#allocation7 + $0xa0] sm:$0xff]
    %v3034 = vld [vmem:[#allocation7 + $0xa8] sm:$0xff]
    %v3035 = vld [vmem:[#allocation7 + $0xb0] sm:$0xff]
    %v3036 = vld [vmem:[#allocation7 + $0xb8] sm:$0xff]
    %v3037 = vld [vmem:[#allocation7 + $0xc0] sm:$0xff]
    %v3038 = vld [vmem:[#allocation7 + $0xc8] sm:$0xff]
    %v3039 = vld [vmem:[#allocation7 + $0xd0] sm:$0xff]
    %v3040 = vld [vmem:[#allocation7 + $0xd8] sm:$0xff]
    %v3041 = vld [vmem:[#allocation7 + $0xe0] sm:$0xff]
    %v3042 = vld [vmem:[#allocation7 + $0xe8] sm:$0xff]
    %v3043 = vld [vmem:[#allocation7 + $0xf0] sm:$0xff]
    %v3044 = vld [vmem:[#allocation7 + $0xf8] sm:$0xff]
    %v3045 = vld [vmem:[#allocation7 + $0x100] sm:$0xff]
    %v3046 = vld [vmem:[#allocation7 + $0x108] sm:$0xff]
    %v3047 = vld [vmem:[#allocation7 + $0x110] sm:$0xff]
    %v3048 = vld [vmem:[#allocation7 + $0x118] sm:$0xff]
    %v3049 = vld [vmem:[#allocation7 + $0x120] sm:$0xff]
    %v3050 = vld [vmem:[#allocation7 + $0x128] sm:$0xff]
    %v3051 = vld [vmem:[#allocation7 + $0x130] sm:$0xff]
    %v3052 = vld [vmem:[#allocation7 + $0x138] sm:$0xff]
    %v3053 = vld [vmem:[#allocation7 + $0x140] sm:$0xff]
    %v3054 = vld [vmem:[#allocation7 + $0x148] sm:$0xff]
    %v3055 = vld [vmem:[#allocation7 + $0x150] sm:$0xff]
    %v3056 = vld [vmem:[#allocation7 + $0x158] sm:$0xff]
    %v3057 = vld [vmem:[#allocation7 + $0x160] sm:$0xff]
    %v3058 = vld [vmem:[#allocation7 + $0x168] sm:$0xff]
    %v3059 = vld [vmem:[#allocation7 + $0x170] sm:$0xff]
    %v3060 = vld [vmem:[#allocation7 + $0x178] sm:$0xff]
    %v3061 = vld [vmem:[#allocation7 + $0x180] sm:$0xff]
    %v3062 = vld [vmem:[#allocation7 + $0x188] sm:$0xff]
    %v3063 = vld [vmem:[#allocation7 + $0x190] sm:$0xff]
    %v3064 = vld [vmem:[#allocation7 + $0x198] sm:$0xff]
    %v3065 = vld [vmem:[#allocation7 + $0x1a0] sm:$0xff]
    %v3066 = vld [vmem:[#allocation7 + $0x1a8] sm:$0xff]
    %v3067 = vld [vmem:[#allocation7 + $0x1b0] sm:$0xff]
    %v3068 = vld [vmem:[#allocation7 + $0x1b8] sm:$0xff]
    %v3069 = vld [vmem:[#allocation7 + $0x1c0] sm:$0xff]
    %v3070 = vld [vmem:[#allocation7 + $0x1c8] sm:$0xff]
    %v3071 = vld [vmem:[#allocation7 + $0x1d0] sm:$0xff]
    %v3072 = vld [vmem:[#allocation7 + $0x1d8] sm:$0xff]
    %v3073 = vld [vmem:[#allocation7 + $0x1e0] sm:$0xff]
    %v3074 = vld [vmem:[#allocation7 + $0x1e8] sm:$0xff]
    %v3075 = vld [vmem:[#allocation7 + $0x1f0] sm:$0xff]
    %v3076 = vld [vmem:[#allocation7 + $0x1f8] sm:$0xff]
    %v3077 = vld [vmem:[#allocation7 + $0x200] sm:$0xff]
    %v3078 = vld [vmem:[#allocation7 + $0x208] sm:$0xff]
    %v3079 = vld [vmem:[#allocation7 + $0x210] sm:$0xff]
    %v3080 = vld [vmem:[#allocation7 + $0x218] sm:$0xff]
    %v3081 = vld [vmem:[#allocation7 + $0x220] sm:$0xff]
    %v3082 = vld [vmem:[#allocation7 + $0x228] sm:$0xff]
    %v3083 = vld [vmem:[#allocation7 + $0x230] sm:$0xff]
    %v3084 = vld [vmem:[#allocation7 + $0x238] sm:$0xff]
    %v3085 = vld [vmem:[#allocation7 + $0x240] sm:$0xff]
    %v3086 = vld [vmem:[#allocation7 + $0x248] sm:$0xff]
    %v3087 = vld [vmem:[#allocation7 + $0x250] sm:$0xff]
    %v3088 = vld [vmem:[#allocation7 + $0x258] sm:$0xff]
    %v3089 = vld [vmem:[#allocation7 + $0x260] sm:$0xff]
    %v3090 = vld [vmem:[#allocation7 + $0x268] sm:$0xff]
    %v3091 = vld [vmem:[#allocation7 + $0x270] sm:$0xff]
    %v3092 = vld [vmem:[#allocation7 + $0x278] sm:$0xff]
    %v3093 = vld [vmem:[#allocation7 + $0x280] sm:$0xff]
    %v3094 = vld [vmem:[#allocation7 + $0x288] sm:$0xff]
    %v3095 = vld [vmem:[#allocation7 + $0x290] sm:$0xff]
    %v3096 = vld [vmem:[#allocation7 + $0x298] sm:$0xff]
    %v3097 = vld [vmem:[#allocation7 + $0x2a0] sm:$0xff]
    %v3098 = vld [vmem:[#allocation7 + $0x2a8] sm:$0xff]
    %v3099 = vld [vmem:[#allocation7 + $0x2b0] sm:$0xff]
    %v3100 = vld [vmem:[#allocation7 + $0x2b8] sm:$0xff]
    %v3101 = vld [vmem:[#allocation7 + $0x2c0] sm:$0xff]
    %v3102 = vld [vmem:[#allocation7 + $0x2c8] sm:$0xff]
    %v3103 = vld [vmem:[#allocation7 + $0x2d0] sm:$0xff]
    %v3104 = vld [vmem:[#allocation7 + $0x2d8] sm:$0xff]
    %v3105 = vld [vmem:[#allocation7 + $0x2e0] sm:$0xff]
    %v3106 = vld [vmem:[#allocation7 + $0x2e8] sm:$0xff]
    %v3107 = vld [vmem:[#allocation7 + $0x2f0] sm:$0xff]
    %v3108 = vld [vmem:[#allocation7 + $0x2f8] sm:$0xff]
    %v3109 = vld [vmem:[#allocation7 + $0x300] sm:$0xff]
    %v3110 = vld [vmem:[#allocation7 + $0x308] sm:$0xff]
    %v3111 = vld [vmem:[#allocation7 + $0x310] sm:$0xff]
    %v3112 = vld [vmem:[#allocation7 + $0x318] sm:$0xff]
    %v3113 = vld [vmem:[#allocation7 + $0x320] sm:$0xff]
    %v3114 = vld [vmem:[#allocation7 + $0x328] sm:$0xff]
    %v3115 = vld [vmem:[#allocation7 + $0x330] sm:$0xff]
    %v3116 = vld [vmem:[#allocation7 + $0x338] sm:$0xff]
    %v3117 = vld [vmem:[#allocation7 + $0x340] sm:$0xff]
    %v3118 = vld [vmem:[#allocation7 + $0x348] sm:$0xff]
    %v3119 = vld [vmem:[#allocation7 + $0x350] sm:$0xff]
    %v3120 = vld [vmem:[#allocation7 + $0x358] sm:$0xff]
    %v3121 = vld [vmem:[#allocation7 + $0x360] sm:$0xff]
    %v3122 = vld [vmem:[#allocation7 + $0x368] sm:$0xff]
    %v3123 = vld [vmem:[#allocation7 + $0x370] sm:$0xff]
    %v3124 = vld [vmem:[#allocation7 + $0x378] sm:$0xff]
    %v3125 = vld [vmem:[#allocation7 + $0x380] sm:$0xff]
    %v3126 = vld [vmem:[#allocation7 + $0x388] sm:$0xff]
    %v3127 = vld [vmem:[#allocation7 + $0x390] sm:$0xff]
    %v3128 = vld [vmem:[#allocation7 + $0x398] sm:$0xff]
    %v3129 = vld [vmem:[#allocation7 + $0x3a0] sm:$0xff]
    %v3130 = vld [vmem:[#allocation7 + $0x3a8] sm:$0xff]
    %v3131 = vld [vmem:[#allocation7 + $0x3b0] sm:$0xff]
    %v3132 = vld [vmem:[#allocation7 + $0x3b8] sm:$0xff]
    %v3133 = vld [vmem:[#allocation7 + $0x3c0] sm:$0xff]
    %v3134 = vld [vmem:[#allocation7 + $0x3c8] sm:$0xff]
    %v3135 = vld [vmem:[#allocation7 + $0x3d0] sm:$0xff]
    %v3136 = vld [vmem:[#allocation7 + $0x3d8] sm:$0xff]
    %v3137 = vld [vmem:[#allocation7 + $0x3e0] sm:$0xff]
    %v3138 = vld [vmem:[#allocation7 + $0x3e8] sm:$0xff]
    %v3139 = vld [vmem:[#allocation7 + $0x3f0] sm:$0xff]
    %v3140 = vld [vmem:[#allocation7 + $0x3f8] sm:$0xff]
    %v3141 = vld [vmem:[#allocation7 + $0x400] sm:$0xff]
    %v3142 = vld [vmem:[#allocation7 + $0x408] sm:$0xff]
    %v3143 = vld [vmem:[#allocation7 + $0x410] sm:$0xff]
    %v3144 = vld [vmem:[#allocation7 + $0x418] sm:$0xff]
    %v3145 = vld [vmem:[#allocation7 + $0x420] sm:$0xff]
    %v3146 = vld [vmem:[#allocation7 + $0x428] sm:$0xff]
    %v3147 = vld [vmem:[#allocation7 + $0x430] sm:$0xff]
    %v3148 = vld [vmem:[#allocation7 + $0x438] sm:$0xff]
    %v3149 = vld [vmem:[#allocation7 + $0x440] sm:$0xff]
    %v3150 = vld [vmem:[#allocation7 + $0x448] sm:$0xff]
    %v3151 = vld [vmem:[#allocation7 + $0x450] sm:$0xff]
    %v3152 = vld [vmem:[#allocation7 + $0x458] sm:$0xff]
    %v3153 = vld [vmem:[#allocation7 + $0x460] sm:$0xff]
    %v3154 = vld [vmem:[#allocation7 + $0x468] sm:$0xff]
    %v3155 = vld [vmem:[#allocation7 + $0x470] sm:$0xff]
    %v3156 = vld [vmem:[#allocation7 + $0x478] sm:$0xff]
    %v3157 = vld [vmem:[#allocation7 + $0x480] sm:$0xff]
    %v3158 = vld [vmem:[#allocation7 + $0x488] sm:$0xff]
    %v3159 = vld [vmem:[#allocation7 + $0x490] sm:$0xff]
    %v3160 = vld [vmem:[#allocation7 + $0x498] sm:$0xff]
    %v3161 = vld [vmem:[#allocation7 + $0x4a0] sm:$0xff]
    %v3162 = vld [vmem:[#allocation7 + $0x4a8] sm:$0xff]
    %v3163 = vld [vmem:[#allocation7 + $0x4b0] sm:$0xff]
    %v3164 = vld [vmem:[#allocation7 + $0x4b8] sm:$0xff]
    %v3165 = vld [vmem:[#allocation7 + $0x4c0] sm:$0xff]
    %v3166 = vld [vmem:[#allocation7 + $0x4c8] sm:$0xff]
    %v3167 = vld [vmem:[#allocation7 + $0x4d0] sm:$0xff]
    %v3168 = vld [vmem:[#allocation7 + $0x4d8] sm:$0xff]
    %v3169 = vld [vmem:[#allocation7 + $0x4e0] sm:$0xff]
    %v3170 = vld [vmem:[#allocation7 + $0x4e8] sm:$0xff]
    %v3171 = vld [vmem:[#allocation7 + $0x4f0] sm:$0xff]
    %v3172 = vld [vmem:[#allocation7 + $0x4f8] sm:$0xff]
    %v3173 = vld [vmem:[#allocation7 + $0x500] sm:$0xff]
    %v3174 = vld [vmem:[#allocation7 + $0x508] sm:$0xff]
    %v3175 = vld [vmem:[#allocation7 + $0x510] sm:$0xff]
    %v3176 = vld [vmem:[#allocation7 + $0x518] sm:$0xff]
    %v3177 = vld [vmem:[#allocation7 + $0x520] sm:$0xff]
    %v3178 = vld [vmem:[#allocation7 + $0x528] sm:$0xff]
    %v3179 = vld [vmem:[#allocation7 + $0x530] sm:$0xff]
    %v3180 = vld [vmem:[#allocation7 + $0x538] sm:$0xff]
    %v3181 = vld [vmem:[#allocation7 + $0x540] sm:$0xff]
    %v3182 = vld [vmem:[#allocation7 + $0x548] sm:$0xff]
    %v3183 = vld [vmem:[#allocation7 + $0x550] sm:$0xff]
    %v3184 = vld [vmem:[#allocation7 + $0x558] sm:$0xff]
    %v3185 = vld [vmem:[#allocation7 + $0x560] sm:$0xff]
    %v3186 = vld [vmem:[#allocation7 + $0x568] sm:$0xff]
    %v3187 = vld [vmem:[#allocation7 + $0x570] sm:$0xff]
    %v3188 = vld [vmem:[#allocation7 + $0x578] sm:$0xff]
    %v3189 = vld [vmem:[#allocation7 + $0x580] sm:$0xff]
    %v3190 = vld [vmem:[#allocation7 + $0x588] sm:$0xff]
    %v3191 = vld [vmem:[#allocation7 + $0x590] sm:$0xff]
    %v3192 = vld [vmem:[#allocation7 + $0x598] sm:$0xff]
    %v3193 = vld [vmem:[#allocation7 + $0x5a0] sm:$0xff]
    %v3194 = vld [vmem:[#allocation7 + $0x5a8] sm:$0xff]
    %v3195 = vld [vmem:[#allocation7 + $0x5b0] sm:$0xff]
    %v3196 = vld [vmem:[#allocation7 + $0x5b8] sm:$0xff]
    %v3197 = vld [vmem:[#allocation7 + $0x5c0] sm:$0xff]
    %v3198 = vld [vmem:[#allocation7 + $0x5c8] sm:$0xff]
    %v3199 = vld [vmem:[#allocation7 + $0x5d0] sm:$0xff]
    %v3200 = vld [vmem:[#allocation7 + $0x5d8] sm:$0xff]
    %v3201 = vld [vmem:[#allocation7 + $0x5e0] sm:$0xff]
    %v3202 = vld [vmem:[#allocation7 + $0x5e8] sm:$0xff]
    %v3203 = vld [vmem:[#allocation7 + $0x5f0] sm:$0xff]
    %v3204 = vld [vmem:[#allocation7 + $0x5f8] sm:$0xff]
    %v3205 = vld [vmem:[#allocation7 + $0x600] sm:$0xff]
    %v3206 = vld [vmem:[#allocation7 + $0x608] sm:$0xff]
    %v3207 = vld [vmem:[#allocation7 + $0x610] sm:$0xff]
    %v3208 = vld [vmem:[#allocation7 + $0x618] sm:$0xff]
    %v3209 = vld [vmem:[#allocation7 + $0x620] sm:$0xff]
    %v3210 = vld [vmem:[#allocation7 + $0x628] sm:$0xff]
    %v3211 = vld [vmem:[#allocation7 + $0x630] sm:$0xff]
    %v3212 = vld [vmem:[#allocation7 + $0x638] sm:$0xff]
    %v3213 = vld [vmem:[#allocation7 + $0x640] sm:$0xff]
    %v3214 = vld [vmem:[#allocation7 + $0x648] sm:$0xff]
    %v3215 = vld [vmem:[#allocation7 + $0x650] sm:$0xff]
    %v3216 = vld [vmem:[#allocation7 + $0x658] sm:$0xff]
    %v3217 = vld [vmem:[#allocation7 + $0x660] sm:$0xff]
    %v3218 = vld [vmem:[#allocation7 + $0x668] sm:$0xff]
    %v3219 = vld [vmem:[#allocation7 + $0x670] sm:$0xff]
    %v3220 = vld [vmem:[#allocation7 + $0x678] sm:$0xff]
    %v3221 = vld [vmem:[#allocation7 + $0x680] sm:$0xff]
    %v3222 = vld [vmem:[#allocation7 + $0x688] sm:$0xff]
    %v3223 = vld [vmem:[#allocation7 + $0x690] sm:$0xff]
    %v3224 = vld [vmem:[#allocation7 + $0x698] sm:$0xff]
    %v3225 = vld [vmem:[#allocation7 + $0x6a0] sm:$0xff]
    %v3226 = vld [vmem:[#allocation7 + $0x6a8] sm:$0xff]
    %v3227 = vld [vmem:[#allocation7 + $0x6b0] sm:$0xff]
    %v3228 = vld [vmem:[#allocation7 + $0x6b8] sm:$0xff]
    %v3229 = vld [vmem:[#allocation7 + $0x6c0] sm:$0xff]
    %v3230 = vld [vmem:[#allocation7 + $0x6c8] sm:$0xff]
    %v3231 = vld [vmem:[#allocation7 + $0x6d0] sm:$0xff]
    %v3232 = vld [vmem:[#allocation7 + $0x6d8] sm:$0xff]
    %v3233 = vld [vmem:[#allocation7 + $0x6e0] sm:$0xff]
    %v3234 = vld [vmem:[#allocation7 + $0x6e8] sm:$0xff]
    %v3235 = vld [vmem:[#allocation7 + $0x6f0] sm:$0xff]
    %v3236 = vld [vmem:[#allocation7 + $0x6f8] sm:$0xff]
    %v3237 = vld [vmem:[#allocation7 + $0x700] sm:$0xff]
    %v3238 = vld [vmem:[#allocation7 + $0x708] sm:$0xff]
    %v3239 = vld [vmem:[#allocation7 + $0x710] sm:$0xff]
    %v3240 = vld [vmem:[#allocation7 + $0x718] sm:$0xff]
    %v3241 = vld [vmem:[#allocation7 + $0x720] sm:$0xff]
    %v3242 = vld [vmem:[#allocation7 + $0x728] sm:$0xff]
    %v3243 = vld [vmem:[#allocation7 + $0x730] sm:$0xff]
    %v3244 = vld [vmem:[#allocation7 + $0x738] sm:$0xff]
    %v3245 = vld [vmem:[#allocation7 + $0x740] sm:$0xff]
    %v3246 = vld [vmem:[#allocation7 + $0x748] sm:$0xff]
    %v3247 = vld [vmem:[#allocation7 + $0x750] sm:$0xff]
    %v3248 = vld [vmem:[#allocation7 + $0x758] sm:$0xff]
    %v3249 = vld [vmem:[#allocation7 + $0x760] sm:$0xff]
    %v3250 = vld [vmem:[#allocation7 + $0x768] sm:$0xff]
    %v3251 = vld [vmem:[#allocation7 + $0x770] sm:$0xff]
    %v3252 = vld [vmem:[#allocation7 + $0x778] sm:$0xff]
    %v3253 = vld [vmem:[#allocation7 + $0x780] sm:$0xff]
    %v3254 = vld [vmem:[#allocation7 + $0x788] sm:$0xff]
    %v3255 = vld [vmem:[#allocation7 + $0x790] sm:$0xff]
    %v3256 = vld [vmem:[#allocation7 + $0x798] sm:$0xff]
    %v3257 = vld [vmem:[#allocation7 + $0x7a0] sm:$0xff]
    %v3258 = vld [vmem:[#allocation7 + $0x7a8] sm:$0xff]
    %v3259 = vld [vmem:[#allocation7 + $0x7b0] sm:$0xff]
    %v3260 = vld [vmem:[#allocation7 + $0x7b8] sm:$0xff]
    %v3261 = vld [vmem:[#allocation7 + $0x7c0] sm:$0xff]
    %v3262 = vld [vmem:[#allocation7 + $0x7c8] sm:$0xff]
    %v3263 = vld [vmem:[#allocation7 + $0x7d0] sm:$0xff]
    %v3264 = vld [vmem:[#allocation7 + $0x7d8] sm:$0xff]
    %v3265 = vld [vmem:[#allocation7 + $0x7e0] sm:$0xff]
    %v3266 = vld [vmem:[#allocation7 + $0x7e8] sm:$0xff]
    %v3267 = vld [vmem:[#allocation7 + $0x7f0] sm:$0xff]
    %v3268 = vld [vmem:[#allocation7 + $0x7f8] sm:$0xff]
    %v3269 = vld [vmem:[%s8] sm:$0xff]
    %v3271 = vlaneseq
    %v3272 = vshrl.u32 %v3271, 7
    %v3273 = vsub.s32 0, %v3272
    %v3274 = vrot.slane %v3269, %v3273
    %v3275 = vlaneseq
    %v3276 = vshrl.u32 %v3275, 7
    %v3277 = vsub.s32 1, %v3276
    %v3278 = vrot.slane %v3269, %v3277
    %v3279 = vlaneseq
    %v3280 = vshrl.u32 %v3279, 7
    %v3281 = vsub.s32 2, %v3280
    %v3282 = vrot.slane %v3269, %v3281
    %v3283 = vlaneseq
    %v3284 = vshrl.u32 %v3283, 7
    %v3285 = vsub.s32 3, %v3284
    %v3286 = vrot.slane %v3269, %v3285
    %v3287 = vlaneseq
    %v3288 = vshrl.u32 %v3287, 7
    %v3289 = vsub.s32 4, %v3288
    %v3290 = vrot.slane %v3269, %v3289
    %v3291 = vlaneseq
    %v3292 = vshrl.u32 %v3291, 7
    %v3293 = vsub.s32 5, %v3292
    %v3294 = vrot.slane %v3269, %v3293
    %v3295 = vlaneseq
    %v3296 = vshrl.u32 %v3295, 7
    %v3297 = vsub.s32 6, %v3296
    %v3298 = vrot.slane %v3269, %v3297
    %v3299 = vlaneseq
    %v3300 = vshrl.u32 %v3299, 7
    %v3301 = vsub.s32 7, %v3300
    %v3302 = vrot.slane %v3269, %v3301
    %v3567 = vunpack.c.l.b16 %v3013
    %v3568 = vunpack.c.h.b16 %v3013
    %v3569 = vunpack.c.l.b16 %v3014
    %v3570 = vunpack.c.h.b16 %v3014
    %v3571 = vunpack.c.l.b16 %v3015
    %v3572 = vunpack.c.h.b16 %v3015
    %v3573 = vunpack.c.l.b16 %v3016
    %v3574 = vunpack.c.h.b16 %v3016
    %v3575 = vunpack.c.l.b16 %v3017
    %v3576 = vunpack.c.h.b16 %v3017
    %v3577 = vunpack.c.l.b16 %v3018
    %v3578 = vunpack.c.h.b16 %v3018
    %v3579 = vunpack.c.l.b16 %v3019
    %v3580 = vunpack.c.h.b16 %v3019
    %v3581 = vunpack.c.l.b16 %v3020
    %v3582 = vunpack.c.h.b16 %v3020
    %v3583 = vunpack.c.l.b16 %v3021
    %v3584 = vunpack.c.h.b16 %v3021
    %v3585 = vunpack.c.l.b16 %v3022
    %v3586 = vunpack.c.h.b16 %v3022
    %v3587 = vunpack.c.l.b16 %v3023
    %v3588 = vunpack.c.h.b16 %v3023
    %v3589 = vunpack.c.l.b16 %v3024
    %v3590 = vunpack.c.h.b16 %v3024
    %v3591 = vunpack.c.l.b16 %v3025
    %v3592 = vunpack.c.h.b16 %v3025
    %v3593 = vunpack.c.l.b16 %v3026
    %v3594 = vunpack.c.h.b16 %v3026
    %v3595 = vunpack.c.l.b16 %v3027
    %v3596 = vunpack.c.h.b16 %v3027
    %v3597 = vunpack.c.l.b16 %v3028
    %v3598 = vunpack.c.h.b16 %v3028
    %v3599 = vunpack.c.l.b16 %v3029
    %v3600 = vunpack.c.h.b16 %v3029
    %v3601 = vunpack.c.l.b16 %v3030
    %v3602 = vunpack.c.h.b16 %v3030
    %v3603 = vunpack.c.l.b16 %v3031
    %v3604 = vunpack.c.h.b16 %v3031
    %v3605 = vunpack.c.l.b16 %v3032
    %v3606 = vunpack.c.h.b16 %v3032
    %v3607 = vunpack.c.l.b16 %v3033
    %v3608 = vunpack.c.h.b16 %v3033
    %v3609 = vunpack.c.l.b16 %v3034
    %v3610 = vunpack.c.h.b16 %v3034
    %v3611 = vunpack.c.l.b16 %v3035
    %v3612 = vunpack.c.h.b16 %v3035
    %v3613 = vunpack.c.l.b16 %v3036
    %v3614 = vunpack.c.h.b16 %v3036
    %v3615 = vunpack.c.l.b16 %v3037
    %v3616 = vunpack.c.h.b16 %v3037
    %v3617 = vunpack.c.l.b16 %v3038
    %v3618 = vunpack.c.h.b16 %v3038
    %v3619 = vunpack.c.l.b16 %v3039
    %v3620 = vunpack.c.h.b16 %v3039
    %v3621 = vunpack.c.l.b16 %v3040
    %v3622 = vunpack.c.h.b16 %v3040
    %v3623 = vunpack.c.l.b16 %v3041
    %v3624 = vunpack.c.h.b16 %v3041
    %v3625 = vunpack.c.l.b16 %v3042
    %v3626 = vunpack.c.h.b16 %v3042
    %v3627 = vunpack.c.l.b16 %v3043
    %v3628 = vunpack.c.h.b16 %v3043
    %v3629 = vunpack.c.l.b16 %v3044
    %v3630 = vunpack.c.h.b16 %v3044
    %v3631 = vunpack.c.l.b16 %v3045
    %v3632 = vunpack.c.h.b16 %v3045
    %v3633 = vunpack.c.l.b16 %v3046
    %v3634 = vunpack.c.h.b16 %v3046
    %v3635 = vunpack.c.l.b16 %v3047
    %v3636 = vunpack.c.h.b16 %v3047
    %v3637 = vunpack.c.l.b16 %v3048
    %v3638 = vunpack.c.h.b16 %v3048
    %v3639 = vunpack.c.l.b16 %v3049
    %v3640 = vunpack.c.h.b16 %v3049
    %v3641 = vunpack.c.l.b16 %v3050
    %v3642 = vunpack.c.h.b16 %v3050
    %v3643 = vunpack.c.l.b16 %v3051
    %v3644 = vunpack.c.h.b16 %v3051
    %v3645 = vunpack.c.l.b16 %v3052
    %v3646 = vunpack.c.h.b16 %v3052
    %v3647 = vunpack.c.l.b16 %v3053
    %v3648 = vunpack.c.h.b16 %v3053
    %v3649 = vunpack.c.l.b16 %v3054
    %v3650 = vunpack.c.h.b16 %v3054
    %v3651 = vunpack.c.l.b16 %v3055
    %v3652 = vunpack.c.h.b16 %v3055
    %v3653 = vunpack.c.l.b16 %v3056
    %v3654 = vunpack.c.h.b16 %v3056
    %v3655 = vunpack.c.l.b16 %v3057
    %v3656 = vunpack.c.h.b16 %v3057
    %v3657 = vunpack.c.l.b16 %v3058
    %v3658 = vunpack.c.h.b16 %v3058
    %v3659 = vunpack.c.l.b16 %v3059
    %v3660 = vunpack.c.h.b16 %v3059
    %v3661 = vunpack.c.l.b16 %v3060
    %v3662 = vunpack.c.h.b16 %v3060
    %v3663 = vunpack.c.l.b16 %v3061
    %v3664 = vunpack.c.h.b16 %v3061
    %v3665 = vunpack.c.l.b16 %v3062
    %v3666 = vunpack.c.h.b16 %v3062
    %v3667 = vunpack.c.l.b16 %v3063
    %v3668 = vunpack.c.h.b16 %v3063
    %v3669 = vunpack.c.l.b16 %v3064
    %v3670 = vunpack.c.h.b16 %v3064
    %v3671 = vunpack.c.l.b16 %v3065
    %v3672 = vunpack.c.h.b16 %v3065
    %v3673 = vunpack.c.l.b16 %v3066
    %v3674 = vunpack.c.h.b16 %v3066
    %v3675 = vunpack.c.l.b16 %v3067
    %v3676 = vunpack.c.h.b16 %v3067
    %v3677 = vunpack.c.l.b16 %v3068
    %v3678 = vunpack.c.h.b16 %v3068
    %v3679 = vunpack.c.l.b16 %v3069
    %v3680 = vunpack.c.h.b16 %v3069
    %v3681 = vunpack.c.l.b16 %v3070
    %v3682 = vunpack.c.h.b16 %v3070
    %v3683 = vunpack.c.l.b16 %v3071
    %v3684 = vunpack.c.h.b16 %v3071
    %v3685 = vunpack.c.l.b16 %v3072
    %v3686 = vunpack.c.h.b16 %v3072
    %v3687 = vunpack.c.l.b16 %v3073
    %v3688 = vunpack.c.h.b16 %v3073
    %v3689 = vunpack.c.l.b16 %v3074
    %v3690 = vunpack.c.h.b16 %v3074
    %v3691 = vunpack.c.l.b16 %v3075
    %v3692 = vunpack.c.h.b16 %v3075
    %v3693 = vunpack.c.l.b16 %v3076
    %v3694 = vunpack.c.h.b16 %v3076
    %v3695 = vunpack.c.l.b16 %v3077
    %v3696 = vunpack.c.h.b16 %v3077
    %v3697 = vunpack.c.l.b16 %v3078
    %v3698 = vunpack.c.h.b16 %v3078
    %v3699 = vunpack.c.l.b16 %v3079
    %v3700 = vunpack.c.h.b16 %v3079
    %v3701 = vunpack.c.l.b16 %v3080
    %v3702 = vunpack.c.h.b16 %v3080
    %v3703 = vunpack.c.l.b16 %v3081
    %v3704 = vunpack.c.h.b16 %v3081
    %v3705 = vunpack.c.l.b16 %v3082
    %v3706 = vunpack.c.h.b16 %v3082
    %v3707 = vunpack.c.l.b16 %v3083
    %v3708 = vunpack.c.h.b16 %v3083
    %v3709 = vunpack.c.l.b16 %v3084
    %v3710 = vunpack.c.h.b16 %v3084
    %v3711 = vunpack.c.l.b16 %v3085
    %v3712 = vunpack.c.h.b16 %v3085
    %v3713 = vunpack.c.l.b16 %v3086
    %v3714 = vunpack.c.h.b16 %v3086
    %v3715 = vunpack.c.l.b16 %v3087
    %v3716 = vunpack.c.h.b16 %v3087
    %v3717 = vunpack.c.l.b16 %v3088
    %v3718 = vunpack.c.h.b16 %v3088
    %v3719 = vunpack.c.l.b16 %v3089
    %v3720 = vunpack.c.h.b16 %v3089
    %v3721 = vunpack.c.l.b16 %v3090
    %v3722 = vunpack.c.h.b16 %v3090
    %v3723 = vunpack.c.l.b16 %v3091
    %v3724 = vunpack.c.h.b16 %v3091
    %v3725 = vunpack.c.l.b16 %v3092
    %v3726 = vunpack.c.h.b16 %v3092
    %v3727 = vunpack.c.l.b16 %v3093
    %v3728 = vunpack.c.h.b16 %v3093
    %v3729 = vunpack.c.l.b16 %v3094
    %v3730 = vunpack.c.h.b16 %v3094
    %v3731 = vunpack.c.l.b16 %v3095
    %v3732 = vunpack.c.h.b16 %v3095
    %v3733 = vunpack.c.l.b16 %v3096
    %v3734 = vunpack.c.h.b16 %v3096
    %v3735 = vunpack.c.l.b16 %v3097
    %v3736 = vunpack.c.h.b16 %v3097
    %v3737 = vunpack.c.l.b16 %v3098
    %v3738 = vunpack.c.h.b16 %v3098
    %v3739 = vunpack.c.l.b16 %v3099
    %v3740 = vunpack.c.h.b16 %v3099
    %v3741 = vunpack.c.l.b16 %v3100
    %v3742 = vunpack.c.h.b16 %v3100
    %v3743 = vunpack.c.l.b16 %v3101
    %v3744 = vunpack.c.h.b16 %v3101
    %v3745 = vunpack.c.l.b16 %v3102
    %v3746 = vunpack.c.h.b16 %v3102
    %v3747 = vunpack.c.l.b16 %v3103
    %v3748 = vunpack.c.h.b16 %v3103
    %v3749 = vunpack.c.l.b16 %v3104
    %v3750 = vunpack.c.h.b16 %v3104
    %v3751 = vunpack.c.l.b16 %v3105
    %v3752 = vunpack.c.h.b16 %v3105
    %v3753 = vunpack.c.l.b16 %v3106
    %v3754 = vunpack.c.h.b16 %v3106
    %v3755 = vunpack.c.l.b16 %v3107
    %v3756 = vunpack.c.h.b16 %v3107
    %v3757 = vunpack.c.l.b16 %v3108
    %v3758 = vunpack.c.h.b16 %v3108
    %v3759 = vunpack.c.l.b16 %v3109
    %v3760 = vunpack.c.h.b16 %v3109
    %v3761 = vunpack.c.l.b16 %v3110
    %v3762 = vunpack.c.h.b16 %v3110
    %v3763 = vunpack.c.l.b16 %v3111
    %v3764 = vunpack.c.h.b16 %v3111
    %v3765 = vunpack.c.l.b16 %v3112
    %v3766 = vunpack.c.h.b16 %v3112
    %v3767 = vunpack.c.l.b16 %v3113
    %v3768 = vunpack.c.h.b16 %v3113
    %v3769 = vunpack.c.l.b16 %v3114
    %v3770 = vunpack.c.h.b16 %v3114
    %v3771 = vunpack.c.l.b16 %v3115
    %v3772 = vunpack.c.h.b16 %v3115
    %v3773 = vunpack.c.l.b16 %v3116
    %v3774 = vunpack.c.h.b16 %v3116
    %v3775 = vunpack.c.l.b16 %v3117
    %v3776 = vunpack.c.h.b16 %v3117
    %v3777 = vunpack.c.l.b16 %v3118
    %v3778 = vunpack.c.h.b16 %v3118
    %v3779 = vunpack.c.l.b16 %v3119
    %v3780 = vunpack.c.h.b16 %v3119
    %v3781 = vunpack.c.l.b16 %v3120
    %v3782 = vunpack.c.h.b16 %v3120
    %v3783 = vunpack.c.l.b16 %v3121
    %v3784 = vunpack.c.h.b16 %v3121
    %v3785 = vunpack.c.l.b16 %v3122
    %v3786 = vunpack.c.h.b16 %v3122
    %v3787 = vunpack.c.l.b16 %v3123
    %v3788 = vunpack.c.h.b16 %v3123
    %v3789 = vunpack.c.l.b16 %v3124
    %v3790 = vunpack.c.h.b16 %v3124
    %v3791 = vunpack.c.l.b16 %v3125
    %v3792 = vunpack.c.h.b16 %v3125
    %v3793 = vunpack.c.l.b16 %v3126
    %v3794 = vunpack.c.h.b16 %v3126
    %v3795 = vunpack.c.l.b16 %v3127
    %v3796 = vunpack.c.h.b16 %v3127
    %v3797 = vunpack.c.l.b16 %v3128
    %v3798 = vunpack.c.h.b16 %v3128
    %v3799 = vunpack.c.l.b16 %v3129
    %v3800 = vunpack.c.h.b16 %v3129
    %v3801 = vunpack.c.l.b16 %v3130
    %v3802 = vunpack.c.h.b16 %v3130
    %v3803 = vunpack.c.l.b16 %v3131
    %v3804 = vunpack.c.h.b16 %v3131
    %v3805 = vunpack.c.l.b16 %v3132
    %v3806 = vunpack.c.h.b16 %v3132
    %v3807 = vunpack.c.l.b16 %v3133
    %v3808 = vunpack.c.h.b16 %v3133
    %v3809 = vunpack.c.l.b16 %v3134
    %v3810 = vunpack.c.h.b16 %v3134
    %v3811 = vunpack.c.l.b16 %v3135
    %v3812 = vunpack.c.h.b16 %v3135
    %v3813 = vunpack.c.l.b16 %v3136
    %v3814 = vunpack.c.h.b16 %v3136
    %v3815 = vunpack.c.l.b16 %v3137
    %v3816 = vunpack.c.h.b16 %v3137
    %v3817 = vunpack.c.l.b16 %v3138
    %v3818 = vunpack.c.h.b16 %v3138
    %v3819 = vunpack.c.l.b16 %v3139
    %v3820 = vunpack.c.h.b16 %v3139
    %v3821 = vunpack.c.l.b16 %v3140
    %v3822 = vunpack.c.h.b16 %v3140
    %v3823 = vunpack.c.l.b16 %v3141
    %v3824 = vunpack.c.h.b16 %v3141
    %v3825 = vunpack.c.l.b16 %v3142
    %v3826 = vunpack.c.h.b16 %v3142
    %v3827 = vunpack.c.l.b16 %v3143
    %v3828 = vunpack.c.h.b16 %v3143
    %v3829 = vunpack.c.l.b16 %v3144
    %v3830 = vunpack.c.h.b16 %v3144
    %v3831 = vunpack.c.l.b16 %v3145
    %v3832 = vunpack.c.h.b16 %v3145
    %v3833 = vunpack.c.l.b16 %v3146
    %v3834 = vunpack.c.h.b16 %v3146
    %v3835 = vunpack.c.l.b16 %v3147
    %v3836 = vunpack.c.h.b16 %v3147
    %v3837 = vunpack.c.l.b16 %v3148
    %v3838 = vunpack.c.h.b16 %v3148
    %v3839 = vunpack.c.l.b16 %v3149
    %v3840 = vunpack.c.h.b16 %v3149
    %v3841 = vunpack.c.l.b16 %v3150
    %v3842 = vunpack.c.h.b16 %v3150
    %v3843 = vunpack.c.l.b16 %v3151
    %v3844 = vunpack.c.h.b16 %v3151
    %v3845 = vunpack.c.l.b16 %v3152
    %v3846 = vunpack.c.h.b16 %v3152
    %v3847 = vunpack.c.l.b16 %v3153
    %v3848 = vunpack.c.h.b16 %v3153
    %v3849 = vunpack.c.l.b16 %v3154
    %v3850 = vunpack.c.h.b16 %v3154
    %v3851 = vunpack.c.l.b16 %v3155
    %v3852 = vunpack.c.h.b16 %v3155
    %v3853 = vunpack.c.l.b16 %v3156
    %v3854 = vunpack.c.h.b16 %v3156
    %v3855 = vunpack.c.l.b16 %v3157
    %v3856 = vunpack.c.h.b16 %v3157
    %v3857 = vunpack.c.l.b16 %v3158
    %v3858 = vunpack.c.h.b16 %v3158
    %v3859 = vunpack.c.l.b16 %v3159
    %v3860 = vunpack.c.h.b16 %v3159
    %v3861 = vunpack.c.l.b16 %v3160
    %v3862 = vunpack.c.h.b16 %v3160
    %v3863 = vunpack.c.l.b16 %v3161
    %v3864 = vunpack.c.h.b16 %v3161
    %v3865 = vunpack.c.l.b16 %v3162
    %v3866 = vunpack.c.h.b16 %v3162
    %v3867 = vunpack.c.l.b16 %v3163
    %v3868 = vunpack.c.h.b16 %v3163
    %v3869 = vunpack.c.l.b16 %v3164
    %v3870 = vunpack.c.h.b16 %v3164
    %v3871 = vunpack.c.l.b16 %v3165
    %v3872 = vunpack.c.h.b16 %v3165
    %v3873 = vunpack.c.l.b16 %v3166
    %v3874 = vunpack.c.h.b16 %v3166
    %v3875 = vunpack.c.l.b16 %v3167
    %v3876 = vunpack.c.h.b16 %v3167
    %v3877 = vunpack.c.l.b16 %v3168
    %v3878 = vunpack.c.h.b16 %v3168
    %v3879 = vunpack.c.l.b16 %v3169
    %v3880 = vunpack.c.h.b16 %v3169
    %v3881 = vunpack.c.l.b16 %v3170
    %v3882 = vunpack.c.h.b16 %v3170
    %v3883 = vunpack.c.l.b16 %v3171
    %v3884 = vunpack.c.h.b16 %v3171
    %v3885 = vunpack.c.l.b16 %v3172
    %v3886 = vunpack.c.h.b16 %v3172
    %v3887 = vunpack.c.l.b16 %v3173
    %v3888 = vunpack.c.h.b16 %v3173
    %v3889 = vunpack.c.l.b16 %v3174
    %v3890 = vunpack.c.h.b16 %v3174
    %v3891 = vunpack.c.l.b16 %v3175
    %v3892 = vunpack.c.h.b16 %v3175
    %v3893 = vunpack.c.l.b16 %v3176
    %v3894 = vunpack.c.h.b16 %v3176
    %v3895 = vunpack.c.l.b16 %v3177
    %v3896 = vunpack.c.h.b16 %v3177
    %v3897 = vunpack.c.l.b16 %v3178
    %v3898 = vunpack.c.h.b16 %v3178
    %v3899 = vunpack.c.l.b16 %v3179
    %v3900 = vunpack.c.h.b16 %v3179
    %v3901 = vunpack.c.l.b16 %v3180
    %v3902 = vunpack.c.h.b16 %v3180
    %v3903 = vunpack.c.l.b16 %v3181
    %v3904 = vunpack.c.h.b16 %v3181
    %v3905 = vunpack.c.l.b16 %v3182
    %v3906 = vunpack.c.h.b16 %v3182
    %v3907 = vunpack.c.l.b16 %v3183
    %v3908 = vunpack.c.h.b16 %v3183
    %v3909 = vunpack.c.l.b16 %v3184
    %v3910 = vunpack.c.h.b16 %v3184
    %v3911 = vunpack.c.l.b16 %v3185
    %v3912 = vunpack.c.h.b16 %v3185
    %v3913 = vunpack.c.l.b16 %v3186
    %v3914 = vunpack.c.h.b16 %v3186
    %v3915 = vunpack.c.l.b16 %v3187
    %v3916 = vunpack.c.h.b16 %v3187
    %v3917 = vunpack.c.l.b16 %v3188
    %v3918 = vunpack.c.h.b16 %v3188
    %v3919 = vunpack.c.l.b16 %v3189
    %v3920 = vunpack.c.h.b16 %v3189
    %v3921 = vunpack.c.l.b16 %v3190
    %v3922 = vunpack.c.h.b16 %v3190
    %v3923 = vunpack.c.l.b16 %v3191
    %v3924 = vunpack.c.h.b16 %v3191
    %v3925 = vunpack.c.l.b16 %v3192
    %v3926 = vunpack.c.h.b16 %v3192
    %v3927 = vunpack.c.l.b16 %v3193
    %v3928 = vunpack.c.h.b16 %v3193
    %v3929 = vunpack.c.l.b16 %v3194
    %v3930 = vunpack.c.h.b16 %v3194
    %v3931 = vunpack.c.l.b16 %v3195
    %v3932 = vunpack.c.h.b16 %v3195
    %v3933 = vunpack.c.l.b16 %v3196
    %v3934 = vunpack.c.h.b16 %v3196
    %v3935 = vunpack.c.l.b16 %v3197
    %v3936 = vunpack.c.h.b16 %v3197
    %v3937 = vunpack.c.l.b16 %v3198
    %v3938 = vunpack.c.h.b16 %v3198
    %v3939 = vunpack.c.l.b16 %v3199
    %v3940 = vunpack.c.h.b16 %v3199
    %v3941 = vunpack.c.l.b16 %v3200
    %v3942 = vunpack.c.h.b16 %v3200
    %v3943 = vunpack.c.l.b16 %v3201
    %v3944 = vunpack.c.h.b16 %v3201
    %v3945 = vunpack.c.l.b16 %v3202
    %v3946 = vunpack.c.h.b16 %v3202
    %v3947 = vunpack.c.l.b16 %v3203
    %v3948 = vunpack.c.h.b16 %v3203
    %v3949 = vunpack.c.l.b16 %v3204
    %v3950 = vunpack.c.h.b16 %v3204
    %v3951 = vunpack.c.l.b16 %v3205
    %v3952 = vunpack.c.h.b16 %v3205
    %v3953 = vunpack.c.l.b16 %v3206
    %v3954 = vunpack.c.h.b16 %v3206
    %v3955 = vunpack.c.l.b16 %v3207
    %v3956 = vunpack.c.h.b16 %v3207
    %v3957 = vunpack.c.l.b16 %v3208
    %v3958 = vunpack.c.h.b16 %v3208
    %v3959 = vunpack.c.l.b16 %v3209
    %v3960 = vunpack.c.h.b16 %v3209
    %v3961 = vunpack.c.l.b16 %v3210
    %v3962 = vunpack.c.h.b16 %v3210
    %v3963 = vunpack.c.l.b16 %v3211
    %v3964 = vunpack.c.h.b16 %v3211
    %v3965 = vunpack.c.l.b16 %v3212
    %v3966 = vunpack.c.h.b16 %v3212
    %v3967 = vunpack.c.l.b16 %v3213
    %v3968 = vunpack.c.h.b16 %v3213
    %v3969 = vunpack.c.l.b16 %v3214
    %v3970 = vunpack.c.h.b16 %v3214
    %v3971 = vunpack.c.l.b16 %v3215
    %v3972 = vunpack.c.h.b16 %v3215
    %v3973 = vunpack.c.l.b16 %v3216
    %v3974 = vunpack.c.h.b16 %v3216
    %v3975 = vunpack.c.l.b16 %v3217
    %v3976 = vunpack.c.h.b16 %v3217
    %v3977 = vunpack.c.l.b16 %v3218
    %v3978 = vunpack.c.h.b16 %v3218
    %v3979 = vunpack.c.l.b16 %v3219
    %v3980 = vunpack.c.h.b16 %v3219
    %v3981 = vunpack.c.l.b16 %v3220
    %v3982 = vunpack.c.h.b16 %v3220
    %v3983 = vunpack.c.l.b16 %v3221
    %v3984 = vunpack.c.h.b16 %v3221
    %v3985 = vunpack.c.l.b16 %v3222
    %v3986 = vunpack.c.h.b16 %v3222
    %v3987 = vunpack.c.l.b16 %v3223
    %v3988 = vunpack.c.h.b16 %v3223
    %v3989 = vunpack.c.l.b16 %v3224
    %v3990 = vunpack.c.h.b16 %v3224
    %v3991 = vunpack.c.l.b16 %v3225
    %v3992 = vunpack.c.h.b16 %v3225
    %v3993 = vunpack.c.l.b16 %v3226
    %v3994 = vunpack.c.h.b16 %v3226
    %v3995 = vunpack.c.l.b16 %v3227
    %v3996 = vunpack.c.h.b16 %v3227
    %v3997 = vunpack.c.l.b16 %v3228
    %v3998 = vunpack.c.h.b16 %v3228
    %v3999 = vunpack.c.l.b16 %v3229
    %v4000 = vunpack.c.h.b16 %v3229
    %v4001 = vunpack.c.l.b16 %v3230
    %v4002 = vunpack.c.h.b16 %v3230
    %v4003 = vunpack.c.l.b16 %v3231
    %v4004 = vunpack.c.h.b16 %v3231
    %v4005 = vunpack.c.l.b16 %v3232
    %v4006 = vunpack.c.h.b16 %v3232
    %v4007 = vunpack.c.l.b16 %v3233
    %v4008 = vunpack.c.h.b16 %v3233
    %v4009 = vunpack.c.l.b16 %v3234
    %v4010 = vunpack.c.h.b16 %v3234
    %v4011 = vunpack.c.l.b16 %v3235
    %v4012 = vunpack.c.h.b16 %v3235
    %v4013 = vunpack.c.l.b16 %v3236
    %v4014 = vunpack.c.h.b16 %v3236
    %v4015 = vunpack.c.l.b16 %v3237
    %v4016 = vunpack.c.h.b16 %v3237
    %v4017 = vunpack.c.l.b16 %v3238
    %v4018 = vunpack.c.h.b16 %v3238
    %v4019 = vunpack.c.l.b16 %v3239
    %v4020 = vunpack.c.h.b16 %v3239
    %v4021 = vunpack.c.l.b16 %v3240
    %v4022 = vunpack.c.h.b16 %v3240
    %v4023 = vunpack.c.l.b16 %v3241
    %v4024 = vunpack.c.h.b16 %v3241
    %v4025 = vunpack.c.l.b16 %v3242
    %v4026 = vunpack.c.h.b16 %v3242
    %v4027 = vunpack.c.l.b16 %v3243
    %v4028 = vunpack.c.h.b16 %v3243
    %v4029 = vunpack.c.l.b16 %v3244
    %v4030 = vunpack.c.h.b16 %v3244
    %v4031 = vunpack.c.l.b16 %v3245
    %v4032 = vunpack.c.h.b16 %v3245
    %v4033 = vunpack.c.l.b16 %v3246
    %v4034 = vunpack.c.h.b16 %v3246
    %v4035 = vunpack.c.l.b16 %v3247
    %v4036 = vunpack.c.h.b16 %v3247
    %v4037 = vunpack.c.l.b16 %v3248
    %v4038 = vunpack.c.h.b16 %v3248
    %v4039 = vunpack.c.l.b16 %v3249
    %v4040 = vunpack.c.h.b16 %v3249
    %v4041 = vunpack.c.l.b16 %v3250
    %v4042 = vunpack.c.h.b16 %v3250
    %v4043 = vunpack.c.l.b16 %v3251
    %v4044 = vunpack.c.h.b16 %v3251
    %v4045 = vunpack.c.l.b16 %v3252
    %v4046 = vunpack.c.h.b16 %v3252
    %v4047 = vunpack.c.l.b16 %v3253
    %v4048 = vunpack.c.h.b16 %v3253
    %v4049 = vunpack.c.l.b16 %v3254
    %v4050 = vunpack.c.h.b16 %v3254
    %v4051 = vunpack.c.l.b16 %v3255
    %v4052 = vunpack.c.h.b16 %v3255
    %v4053 = vunpack.c.l.b16 %v3256
    %v4054 = vunpack.c.h.b16 %v3256
    %v4055 = vunpack.c.l.b16 %v3257
    %v4056 = vunpack.c.h.b16 %v3257
    %v4057 = vunpack.c.l.b16 %v3258
    %v4058 = vunpack.c.h.b16 %v3258
    %v4059 = vunpack.c.l.b16 %v3259
    %v4060 = vunpack.c.h.b16 %v3259
    %v4061 = vunpack.c.l.b16 %v3260
    %v4062 = vunpack.c.h.b16 %v3260
    %v4063 = vunpack.c.l.b16 %v3261
    %v4064 = vunpack.c.h.b16 %v3261
    %v4065 = vunpack.c.l.b16 %v3262
    %v4066 = vunpack.c.h.b16 %v3262
    %v4067 = vunpack.c.l.b16 %v3263
    %v4068 = vunpack.c.h.b16 %v3263
    %v4069 = vunpack.c.l.b16 %v3264
    %v4070 = vunpack.c.h.b16 %v3264
    %v4071 = vunpack.c.l.b16 %v3265
    %v4072 = vunpack.c.h.b16 %v3265
    %v4073 = vunpack.c.l.b16 %v3266
    %v4074 = vunpack.c.h.b16 %v3266
    %v4075 = vunpack.c.l.b16 %v3267
    %v4076 = vunpack.c.h.b16 %v3267
    %v4077 = vunpack.c.l.b16 %v3268
    %v4078 = vunpack.c.h.b16 %v3268
    %v4079 = vpack.c.b16 %v3575, %v3567
    %v4080 = vpack.c.b16 %v3576, %v3568
    %v4081 = vpack.c.b16 %v3577, %v3569
    %v4082 = vpack.c.b16 %v3578, %v3570
    %v4083 = vpack.c.b16 %v3579, %v3571
    %v4084 = vpack.c.b16 %v3580, %v3572
    %v4085 = vpack.c.b16 %v3581, %v3573
    %v4086 = vpack.c.b16 %v3582, %v3574
    %v4087 = vpack.c.b16 %v3591, %v3583
    %v4088 = vpack.c.b16 %v3592, %v3584
    %v4089 = vpack.c.b16 %v3593, %v3585
    %v4090 = vpack.c.b16 %v3594, %v3586
    %v4091 = vpack.c.b16 %v3595, %v3587
    %v4092 = vpack.c.b16 %v3596, %v3588
    %v4093 = vpack.c.b16 %v3597, %v3589
    %v4094 = vpack.c.b16 %v3598, %v3590
    %v4095 = vpack.c.b16 %v3607, %v3599
    %v4096 = vpack.c.b16 %v3608, %v3600
    %v4097 = vpack.c.b16 %v3609, %v3601
    %v4098 = vpack.c.b16 %v3610, %v3602
    %v4099 = vpack.c.b16 %v3611, %v3603
    %v4100 = vpack.c.b16 %v3612, %v3604
    %v4101 = vpack.c.b16 %v3613, %v3605
    %v4102 = vpack.c.b16 %v3614, %v3606
    %v4103 = vpack.c.b16 %v3623, %v3615
    %v4104 = vpack.c.b16 %v3624, %v3616
    %v4105 = vpack.c.b16 %v3625, %v3617
    %v4106 = vpack.c.b16 %v3626, %v3618
    %v4107 = vpack.c.b16 %v3627, %v3619
    %v4108 = vpack.c.b16 %v3628, %v3620
    %v4109 = vpack.c.b16 %v3629, %v3621
    %v4110 = vpack.c.b16 %v3630, %v3622
    %v4111 = vpack.c.b16 %v3639, %v3631
    %v4112 = vpack.c.b16 %v3640, %v3632
    %v4113 = vpack.c.b16 %v3641, %v3633
    %v4114 = vpack.c.b16 %v3642, %v3634
    %v4115 = vpack.c.b16 %v3643, %v3635
    %v4116 = vpack.c.b16 %v3644, %v3636
    %v4117 = vpack.c.b16 %v3645, %v3637
    %v4118 = vpack.c.b16 %v3646, %v3638
    %v4119 = vpack.c.b16 %v3655, %v3647
    %v4120 = vpack.c.b16 %v3656, %v3648
    %v4121 = vpack.c.b16 %v3657, %v3649
    %v4122 = vpack.c.b16 %v3658, %v3650
    %v4123 = vpack.c.b16 %v3659, %v3651
    %v4124 = vpack.c.b16 %v3660, %v3652
    %v4125 = vpack.c.b16 %v3661, %v3653
    %v4126 = vpack.c.b16 %v3662, %v3654
    %v4127 = vpack.c.b16 %v3671, %v3663
    %v4128 = vpack.c.b16 %v3672, %v3664
    %v4129 = vpack.c.b16 %v3673, %v3665
    %v4130 = vpack.c.b16 %v3674, %v3666
    %v4131 = vpack.c.b16 %v3675, %v3667
    %v4132 = vpack.c.b16 %v3676, %v3668
    %v4133 = vpack.c.b16 %v3677, %v3669
    %v4134 = vpack.c.b16 %v3678, %v3670
    %v4135 = vpack.c.b16 %v3687, %v3679
    %v4136 = vpack.c.b16 %v3688, %v3680
    %v4137 = vpack.c.b16 %v3689, %v3681
    %v4138 = vpack.c.b16 %v3690, %v3682
    %v4139 = vpack.c.b16 %v3691, %v3683
    %v4140 = vpack.c.b16 %v3692, %v3684
    %v4141 = vpack.c.b16 %v3693, %v3685
    %v4142 = vpack.c.b16 %v3694, %v3686
    %v4143 = vpack.c.b16 %v3703, %v3695
    %v4144 = vpack.c.b16 %v3704, %v3696
    %v4145 = vpack.c.b16 %v3705, %v3697
    %v4146 = vpack.c.b16 %v3706, %v3698
    %v4147 = vpack.c.b16 %v3707, %v3699
    %v4148 = vpack.c.b16 %v3708, %v3700
    %v4149 = vpack.c.b16 %v3709, %v3701
    %v4150 = vpack.c.b16 %v3710, %v3702
    %v4151 = vpack.c.b16 %v3719, %v3711
    %v4152 = vpack.c.b16 %v3720, %v3712
    %v4153 = vpack.c.b16 %v3721, %v3713
    %v4154 = vpack.c.b16 %v3722, %v3714
    %v4155 = vpack.c.b16 %v3723, %v3715
    %v4156 = vpack.c.b16 %v3724, %v3716
    %v4157 = vpack.c.b16 %v3725, %v3717
    %v4158 = vpack.c.b16 %v3726, %v3718
    %v4159 = vpack.c.b16 %v3735, %v3727
    %v4160 = vpack.c.b16 %v3736, %v3728
    %v4161 = vpack.c.b16 %v3737, %v3729
    %v4162 = vpack.c.b16 %v3738, %v3730
    %v4163 = vpack.c.b16 %v3739, %v3731
    %v4164 = vpack.c.b16 %v3740, %v3732
    %v4165 = vpack.c.b16 %v3741, %v3733
    %v4166 = vpack.c.b16 %v3742, %v3734
    %v4167 = vpack.c.b16 %v3751, %v3743
    %v4168 = vpack.c.b16 %v3752, %v3744
    %v4169 = vpack.c.b16 %v3753, %v3745
    %v4170 = vpack.c.b16 %v3754, %v3746
    %v4171 = vpack.c.b16 %v3755, %v3747
    %v4172 = vpack.c.b16 %v3756, %v3748
    %v4173 = vpack.c.b16 %v3757, %v3749
    %v4174 = vpack.c.b16 %v3758, %v3750
    %v4175 = vpack.c.b16 %v3767, %v3759
    %v4176 = vpack.c.b16 %v3768, %v3760
    %v4177 = vpack.c.b16 %v3769, %v3761
    %v4178 = vpack.c.b16 %v3770, %v3762
    %v4179 = vpack.c.b16 %v3771, %v3763
    %v4180 = vpack.c.b16 %v3772, %v3764
    %v4181 = vpack.c.b16 %v3773, %v3765
    %v4182 = vpack.c.b16 %v3774, %v3766
    %v4183 = vpack.c.b16 %v3783, %v3775
    %v4184 = vpack.c.b16 %v3784, %v3776
    %v4185 = vpack.c.b16 %v3785, %v3777
    %v4186 = vpack.c.b16 %v3786, %v3778
    %v4187 = vpack.c.b16 %v3787, %v3779
    %v4188 = vpack.c.b16 %v3788, %v3780
    %v4189 = vpack.c.b16 %v3789, %v3781
    %v4190 = vpack.c.b16 %v3790, %v3782
    %v4191 = vpack.c.b16 %v3799, %v3791
    %v4192 = vpack.c.b16 %v3800, %v3792
    %v4193 = vpack.c.b16 %v3801, %v3793
    %v4194 = vpack.c.b16 %v3802, %v3794
    %v4195 = vpack.c.b16 %v3803, %v3795
    %v4196 = vpack.c.b16 %v3804, %v3796
    %v4197 = vpack.c.b16 %v3805, %v3797
    %v4198 = vpack.c.b16 %v3806, %v3798
    %v4199 = vpack.c.b16 %v3815, %v3807
    %v4200 = vpack.c.b16 %v3816, %v3808
    %v4201 = vpack.c.b16 %v3817, %v3809
    %v4202 = vpack.c.b16 %v3818, %v3810
    %v4203 = vpack.c.b16 %v3819, %v3811
    %v4204 = vpack.c.b16 %v3820, %v3812
    %v4205 = vpack.c.b16 %v3821, %v3813
    %v4206 = vpack.c.b16 %v3822, %v3814
    %v4207 = vpack.c.b16 %v3831, %v3823
    %v4208 = vpack.c.b16 %v3832, %v3824
    %v4209 = vpack.c.b16 %v3833, %v3825
    %v4210 = vpack.c.b16 %v3834, %v3826
    %v4211 = vpack.c.b16 %v3835, %v3827
    %v4212 = vpack.c.b16 %v3836, %v3828
    %v4213 = vpack.c.b16 %v3837, %v3829
    %v4214 = vpack.c.b16 %v3838, %v3830
    %v4215 = vpack.c.b16 %v3847, %v3839
    %v4216 = vpack.c.b16 %v3848, %v3840
    %v4217 = vpack.c.b16 %v3849, %v3841
    %v4218 = vpack.c.b16 %v3850, %v3842
    %v4219 = vpack.c.b16 %v3851, %v3843
    %v4220 = vpack.c.b16 %v3852, %v3844
    %v4221 = vpack.c.b16 %v3853, %v3845
    %v4222 = vpack.c.b16 %v3854, %v3846
    %v4223 = vpack.c.b16 %v3863, %v3855
    %v4224 = vpack.c.b16 %v3864, %v3856
    %v4225 = vpack.c.b16 %v3865, %v3857
    %v4226 = vpack.c.b16 %v3866, %v3858
    %v4227 = vpack.c.b16 %v3867, %v3859
    %v4228 = vpack.c.b16 %v3868, %v3860
    %v4229 = vpack.c.b16 %v3869, %v3861
    %v4230 = vpack.c.b16 %v3870, %v3862
    %v4231 = vpack.c.b16 %v3879, %v3871
    %v4232 = vpack.c.b16 %v3880, %v3872
    %v4233 = vpack.c.b16 %v3881, %v3873
    %v4234 = vpack.c.b16 %v3882, %v3874
    %v4235 = vpack.c.b16 %v3883, %v3875
    %v4236 = vpack.c.b16 %v3884, %v3876
    %v4237 = vpack.c.b16 %v3885, %v3877
    %v4238 = vpack.c.b16 %v3886, %v3878
    %v4239 = vpack.c.b16 %v3895, %v3887
    %v4240 = vpack.c.b16 %v3896, %v3888
    %v4241 = vpack.c.b16 %v3897, %v3889
    %v4242 = vpack.c.b16 %v3898, %v3890
    %v4243 = vpack.c.b16 %v3899, %v3891
    %v4244 = vpack.c.b16 %v3900, %v3892
    %v4245 = vpack.c.b16 %v3901, %v3893
    %v4246 = vpack.c.b16 %v3902, %v3894
    %v4247 = vpack.c.b16 %v3911, %v3903
    %v4248 = vpack.c.b16 %v3912, %v3904
    %v4249 = vpack.c.b16 %v3913, %v3905
    %v4250 = vpack.c.b16 %v3914, %v3906
    %v4251 = vpack.c.b16 %v3915, %v3907
    %v4252 = vpack.c.b16 %v3916, %v3908
    %v4253 = vpack.c.b16 %v3917, %v3909
    %v4254 = vpack.c.b16 %v3918, %v3910
    %v4255 = vpack.c.b16 %v3927, %v3919
    %v4256 = vpack.c.b16 %v3928, %v3920
    %v4257 = vpack.c.b16 %v3929, %v3921
    %v4258 = vpack.c.b16 %v3930, %v3922
    %v4259 = vpack.c.b16 %v3931, %v3923
    %v4260 = vpack.c.b16 %v3932, %v3924
    %v4261 = vpack.c.b16 %v3933, %v3925
    %v4262 = vpack.c.b16 %v3934, %v3926
    %v4263 = vpack.c.b16 %v3943, %v3935
    %v4264 = vpack.c.b16 %v3944, %v3936
    %v4265 = vpack.c.b16 %v3945, %v3937
    %v4266 = vpack.c.b16 %v3946, %v3938
    %v4267 = vpack.c.b16 %v3947, %v3939
    %v4268 = vpack.c.b16 %v3948, %v3940
    %v4269 = vpack.c.b16 %v3949, %v3941
    %v4270 = vpack.c.b16 %v3950, %v3942
    %v4271 = vpack.c.b16 %v3959, %v3951
    %v4272 = vpack.c.b16 %v3960, %v3952
    %v4273 = vpack.c.b16 %v3961, %v3953
    %v4274 = vpack.c.b16 %v3962, %v3954
    %v4275 = vpack.c.b16 %v3963, %v3955
    %v4276 = vpack.c.b16 %v3964, %v3956
    %v4277 = vpack.c.b16 %v3965, %v3957
    %v4278 = vpack.c.b16 %v3966, %v3958
    %v4279 = vpack.c.b16 %v3975, %v3967
    %v4280 = vpack.c.b16 %v3976, %v3968
    %v4281 = vpack.c.b16 %v3977, %v3969
    %v4282 = vpack.c.b16 %v3978, %v3970
    %v4283 = vpack.c.b16 %v3979, %v3971
    %v4284 = vpack.c.b16 %v3980, %v3972
    %v4285 = vpack.c.b16 %v3981, %v3973
    %v4286 = vpack.c.b16 %v3982, %v3974
    %v4287 = vpack.c.b16 %v3991, %v3983
    %v4288 = vpack.c.b16 %v3992, %v3984
    %v4289 = vpack.c.b16 %v3993, %v3985
    %v4290 = vpack.c.b16 %v3994, %v3986
    %v4291 = vpack.c.b16 %v3995, %v3987
    %v4292 = vpack.c.b16 %v3996, %v3988
    %v4293 = vpack.c.b16 %v3997, %v3989
    %v4294 = vpack.c.b16 %v3998, %v3990
    %v4295 = vpack.c.b16 %v4007, %v3999
    %v4296 = vpack.c.b16 %v4008, %v4000
    %v4297 = vpack.c.b16 %v4009, %v4001
    %v4298 = vpack.c.b16 %v4010, %v4002
    %v4299 = vpack.c.b16 %v4011, %v4003
    %v4300 = vpack.c.b16 %v4012, %v4004
    %v4301 = vpack.c.b16 %v4013, %v4005
    %v4302 = vpack.c.b16 %v4014, %v4006
    %v4303 = vpack.c.b16 %v4023, %v4015
    %v4304 = vpack.c.b16 %v4024, %v4016
    %v4305 = vpack.c.b16 %v4025, %v4017
    %v4306 = vpack.c.b16 %v4026, %v4018
    %v4307 = vpack.c.b16 %v4027, %v4019
    %v4308 = vpack.c.b16 %v4028, %v4020
    %v4309 = vpack.c.b16 %v4029, %v4021
    %v4310 = vpack.c.b16 %v4030, %v4022
    %v4311 = vpack.c.b16 %v4039, %v4031
    %v4312 = vpack.c.b16 %v4040, %v4032
    %v4313 = vpack.c.b16 %v4041, %v4033
    %v4314 = vpack.c.b16 %v4042, %v4034
    %v4315 = vpack.c.b16 %v4043, %v4035
    %v4316 = vpack.c.b16 %v4044, %v4036
    %v4317 = vpack.c.b16 %v4045, %v4037
    %v4318 = vpack.c.b16 %v4046, %v4038
    %v4319 = vpack.c.b16 %v4055, %v4047
    %v4320 = vpack.c.b16 %v4056, %v4048
    %v4321 = vpack.c.b16 %v4057, %v4049
    %v4322 = vpack.c.b16 %v4058, %v4050
    %v4323 = vpack.c.b16 %v4059, %v4051
    %v4324 = vpack.c.b16 %v4060, %v4052
    %v4325 = vpack.c.b16 %v4061, %v4053
    %v4326 = vpack.c.b16 %v4062, %v4054
    %v4327 = vpack.c.b16 %v4071, %v4063
    %v4328 = vpack.c.b16 %v4072, %v4064
    %v4329 = vpack.c.b16 %v4073, %v4065
    %v4330 = vpack.c.b16 %v4074, %v4066
    %v4331 = vpack.c.b16 %v4075, %v4067
    %v4332 = vpack.c.b16 %v4076, %v4068
    %v4333 = vpack.c.b16 %v4077, %v4069
    %v4334 = vpack.c.b16 %v4078, %v4070
    %4591 = vmatprep.subr.bf16.mxu0 %v4136
    %4592 = vmatpush1.bf16.msra.mxu0 %v4135
    %4593 = vmatprep.subr.bf16.mxu0 %v4128
    %4594 = vmatpush1.bf16.msra.mxu0 %v4127
    %4595 = vmatprep.subr.bf16.mxu0 %v4120
    %4596 = vmatpush1.bf16.msra.mxu0 %v4119
    %4597 = vmatprep.subr.bf16.mxu0 %v4112
    %4598 = vmatpush1.bf16.msra.mxu0 %v4111
    %4599 = vmatprep.subr.bf16.mxu0 %v4104
    %4600 = vmatpush1.bf16.msra.mxu0 %v4103
    %4601 = vmatprep.subr.bf16.mxu0 %v4096
    %4602 = vmatpush1.bf16.msra.mxu0 %v4095
    %4603 = vmatprep.subr.bf16.mxu0 %v4088
    %4604 = vmatpush1.bf16.msra.mxu0 %v4087
    %4605 = vmatprep.subr.bf16.mxu0 %v4080
    %4606 = vmatpush1.bf16.msra.mxu0 %v4079
    %4607 = vmatprep.subr.bf16.mxu0 %v4200
    %4608 = vmatpush2.bf16.msra.mxu0 %v4199
    %4609 = vmatprep.subr.bf16.mxu0 %v4192
    %4610 = vmatpush2.bf16.msra.mxu0 %v4191
    %4611 = vmatprep.subr.bf16.mxu0 %v4184
    %4612 = vmatpush2.bf16.msra.mxu0 %v4183
    %4613 = vmatprep.subr.bf16.mxu0 %v4176
    %4614 = vmatpush2.bf16.msra.mxu0 %v4175
    %4615 = vmatprep.subr.bf16.mxu0 %v4168
    %4616 = vmatpush2.bf16.msra.mxu0 %v4167
    %4617 = vmatprep.subr.bf16.mxu0 %v4160
    %4618 = vmatpush2.bf16.msra.mxu0 %v4159
    %4619 = vmatprep.subr.bf16.mxu0 %v4152
    %4620 = vmatpush2.bf16.msra.mxu0 %v4151
    %4621 = vmatprep.subr.bf16.mxu0 %v4144
    %4622 = vmatpush2.bf16.msra.mxu0 %v4143
    %4623 = vmatprep.mubr.bf16.mxu0 %v3010
    %4624 = vmatmul.mubr.bf16.gmra.mxu0 %v3009
    %v4625 = vpop.f32.mrf.mxu0
    %v4626 = vadd.f32 %v3274, %v4625
    %v4627 = vpop.f32.mrf.mxu0
    %v4628 = vadd.f32 %v3278, %v4627
    %v4629 = vpop.f32.mrf.mxu0
    %v4630 = vpop.f32.mrf.mxu0
    %4631 = vdwg.mxu0
    %4632 = vmatprep.subr.bf16.mxu0 %v4264
    %4633 = vmatpush1.bf16.msra.mxu0 %v4263
    %4634 = vmatprep.subr.bf16.mxu0 %v4256
    %4635 = vmatpush1.bf16.msra.mxu0 %v4255
    %4636 = vmatprep.subr.bf16.mxu0 %v4248
    %4637 = vmatpush1.bf16.msra.mxu0 %v4247
    %4638 = vmatprep.subr.bf16.mxu0 %v4240
    %4639 = vmatpush1.bf16.msra.mxu0 %v4239
    %4640 = vmatprep.subr.bf16.mxu0 %v4232
    %4641 = vmatpush1.bf16.msra.mxu0 %v4231
    %4642 = vmatprep.subr.bf16.mxu0 %v4224
    %4643 = vmatpush1.bf16.msra.mxu0 %v4223
    %4644 = vmatprep.subr.bf16.mxu0 %v4216
    %4645 = vmatpush1.bf16.msra.mxu0 %v4215
    %4646 = vmatprep.subr.bf16.mxu0 %v4208
    %4647 = vmatpush1.bf16.msra.mxu0 %v4207
    %4648 = vmatprep.subr.bf16.mxu0 %v4328
    %4649 = vmatpush2.bf16.msra.mxu0 %v4327
    %4650 = vmatprep.subr.bf16.mxu0 %v4320
    %4651 = vmatpush2.bf16.msra.mxu0 %v4319
    %4652 = vmatprep.subr.bf16.mxu0 %v4312
    %4653 = vmatpush2.bf16.msra.mxu0 %v4311
    %4654 = vmatprep.subr.bf16.mxu0 %v4304
    %4655 = vmatpush2.bf16.msra.mxu0 %v4303
    %4656 = vmatprep.subr.bf16.mxu0 %v4296
    %4657 = vmatpush2.bf16.msra.mxu0 %v4295
    %4658 = vmatprep.subr.bf16.mxu0 %v4288
    %4659 = vmatpush2.bf16.msra.mxu0 %v4287
    %4660 = vmatprep.subr.bf16.mxu0 %v4280
    %4661 = vmatpush2.bf16.msra.mxu0 %v4279
    %4662 = vmatprep.subr.bf16.mxu0 %v4272
    %4663 = vmatpush2.bf16.msra.mxu0 %v4271
    %4664 = vmatprep.mubr.bf16.mxu0 %v3012
    %4665 = vmatmul.mubr.bf16.gmra.mxu0 %v3011
    %v4666 = vpop.f32.mrf.mxu0
    %v4667 = vadd.f32 %v4626, %v4666
    %v4668 = vpop.f32.mrf.mxu0
    %v4669 = vadd.f32 %v4628, %v4668
    %v4670 = vpop.f32.mrf.mxu0
    %v4671 = vpop.f32.mrf.mxu0
    %4672 = vdwg.mxu0
    %4673 = vmatprep.subr.bf16.mxu0 %v4138
    %4674 = vmatpush1.bf16.msra.mxu0 %v4137
    %4675 = vmatprep.subr.bf16.mxu0 %v4130
    %4676 = vmatpush1.bf16.msra.mxu0 %v4129
    %4677 = vmatprep.subr.bf16.mxu0 %v4122
    %4678 = vmatpush1.bf16.msra.mxu0 %v4121
    %4679 = vmatprep.subr.bf16.mxu0 %v4114
    %4680 = vmatpush1.bf16.msra.mxu0 %v4113
    %4681 = vmatprep.subr.bf16.mxu0 %v4106
    %4682 = vmatpush1.bf16.msra.mxu0 %v4105
    %4683 = vmatprep.subr.bf16.mxu0 %v4098
    %4684 = vmatpush1.bf16.msra.mxu0 %v4097
    %4685 = vmatprep.subr.bf16.mxu0 %v4090
    %4686 = vmatpush1.bf16.msra.mxu0 %v4089
    %4687 = vmatprep.subr.bf16.mxu0 %v4082
    %4688 = vmatpush1.bf16.msra.mxu0 %v4081
    %4689 = vmatprep.subr.bf16.mxu0 %v4202
    %4690 = vmatpush2.bf16.msra.mxu0 %v4201
    %4691 = vmatprep.subr.bf16.mxu0 %v4194
    %4692 = vmatpush2.bf16.msra.mxu0 %v4193
    %4693 = vmatprep.subr.bf16.mxu0 %v4186
    %4694 = vmatpush2.bf16.msra.mxu0 %v4185
    %4695 = vmatprep.subr.bf16.mxu0 %v4178
    %4696 = vmatpush2.bf16.msra.mxu0 %v4177
    %4697 = vmatprep.subr.bf16.mxu0 %v4170
    %4698 = vmatpush2.bf16.msra.mxu0 %v4169
    %4699 = vmatprep.subr.bf16.mxu0 %v4162
    %4700 = vmatpush2.bf16.msra.mxu0 %v4161
    %4701 = vmatprep.subr.bf16.mxu0 %v4154
    %4702 = vmatpush2.bf16.msra.mxu0 %v4153
    %4703 = vmatprep.subr.bf16.mxu0 %v4146
    %4704 = vmatpush2.bf16.msra.mxu0 %v4145
    %4705 = vmatprep.mubr.bf16.mxu0 %v3010
    %4706 = vmatmul.mubr.bf16.gmra.mxu0 %v3009
    %v4707 = vpop.f32.mrf.mxu0
    %v4708 = vadd.f32 %v3282, %v4707
    %v4709 = vpop.f32.mrf.mxu0
    %v4710 = vadd.f32 %v3286, %v4709
    %v4711 = vpop.f32.mrf.mxu0
    %v4712 = vpop.f32.mrf.mxu0
    %4713 = vdwg.mxu0
    %4714 = vmatprep.subr.bf16.mxu0 %v4266
    %4715 = vmatpush1.bf16.msra.mxu0 %v4265
    %4716 = vmatprep.subr.bf16.mxu0 %v4258
    %4717 = vmatpush1.bf16.msra.mxu0 %v4257
    %4718 = vmatprep.subr.bf16.mxu0 %v4250
    %4719 = vmatpush1.bf16.msra.mxu0 %v4249
    %4720 = vmatprep.subr.bf16.mxu0 %v4242
    %4721 = vmatpush1.bf16.msra.mxu0 %v4241
    %4722 = vmatprep.subr.bf16.mxu0 %v4234
    %4723 = vmatpush1.bf16.msra.mxu0 %v4233
    %4724 = vmatprep.subr.bf16.mxu0 %v4226
    %4725 = vmatpush1.bf16.msra.mxu0 %v4225
    %4726 = vmatprep.subr.bf16.mxu0 %v4218
    %4727 = vmatpush1.bf16.msra.mxu0 %v4217
    %4728 = vmatprep.subr.bf16.mxu0 %v4210
    %4729 = vmatpush1.bf16.msra.mxu0 %v4209
    %4730 = vmatprep.subr.bf16.mxu0 %v4330
    %4731 = vmatpush2.bf16.msra.mxu0 %v4329
    %4732 = vmatprep.subr.bf16.mxu0 %v4322
    %4733 = vmatpush2.bf16.msra.mxu0 %v4321
    %4734 = vmatprep.subr.bf16.mxu0 %v4314
    %4735 = vmatpush2.bf16.msra.mxu0 %v4313
    %4736 = vmatprep.subr.bf16.mxu0 %v4306
    %4737 = vmatpush2.bf16.msra.mxu0 %v4305
    %4738 = vmatprep.subr.bf16.mxu0 %v4298
    %4739 = vmatpush2.bf16.msra.mxu0 %v4297
    %4740 = vmatprep.subr.bf16.mxu0 %v4290
    %4741 = vmatpush2.bf16.msra.mxu0 %v4289
    %4742 = vmatprep.subr.bf16.mxu0 %v4282
    %4743 = vmatpush2.bf16.msra.mxu0 %v4281
    %4744 = vmatprep.subr.bf16.mxu0 %v4274
    %4745 = vmatpush2.bf16.msra.mxu0 %v4273
    %4746 = vmatprep.mubr.bf16.mxu0 %v3012
    %4747 = vmatmul.mubr.bf16.gmra.mxu0 %v3011
    %v4748 = vpop.f32.mrf.mxu0
    %v4749 = vadd.f32 %v4708, %v4748
    %v4750 = vpop.f32.mrf.mxu0
    %v4751 = vadd.f32 %v4710, %v4750
    %v4752 = vpop.f32.mrf.mxu0
    %v4753 = vpop.f32.mrf.mxu0
    %4754 = vdwg.mxu0
    %4755 = vmatprep.subr.bf16.mxu0 %v4140
    %4756 = vmatpush1.bf16.msra.mxu0 %v4139
    %4757 = vmatprep.subr.bf16.mxu0 %v4132
    %4758 = vmatpush1.bf16.msra.mxu0 %v4131
    %4759 = vmatprep.subr.bf16.mxu0 %v4124
    %4760 = vmatpush1.bf16.msra.mxu0 %v4123
    %4761 = vmatprep.subr.bf16.mxu0 %v4116
    %4762 = vmatpush1.bf16.msra.mxu0 %v4115
    %4763 = vmatprep.subr.bf16.mxu0 %v4108
    %4764 = vmatpush1.bf16.msra.mxu0 %v4107
    %4765 = vmatprep.subr.bf16.mxu0 %v4100
    %4766 = vmatpush1.bf16.msra.mxu0 %v4099
    %4767 = vmatprep.subr.bf16.mxu0 %v4092
    %4768 = vmatpush1.bf16.msra.mxu0 %v4091
    %4769 = vmatprep.subr.bf16.mxu0 %v4084
    %4770 = vmatpush1.bf16.msra.mxu0 %v4083
    %4771 = vmatprep.subr.bf16.mxu0 %v4204
    %4772 = vmatpush2.bf16.msra.mxu0 %v4203
    %4773 = vmatprep.subr.bf16.mxu0 %v4196
    %4774 = vmatpush2.bf16.msra.mxu0 %v4195
    %4775 = vmatprep.subr.bf16.mxu0 %v4188
    %4776 = vmatpush2.bf16.msra.mxu0 %v4187
    %4777 = vmatprep.subr.bf16.mxu0 %v4180
    %4778 = vmatpush2.bf16.msra.mxu0 %v4179
    %4779 = vmatprep.subr.bf16.mxu0 %v4172
    %4780 = vmatpush2.bf16.msra.mxu0 %v4171
    %4781 = vmatprep.subr.bf16.mxu0 %v4164
    %4782 = vmatpush2.bf16.msra.mxu0 %v4163
    %4783 = vmatprep.subr.bf16.mxu0 %v4156
    %4784 = vmatpush2.bf16.msra.mxu0 %v4155
    %4785 = vmatprep.subr.bf16.mxu0 %v4148
    %4786 = vmatpush2.bf16.msra.mxu0 %v4147
    %4787 = vmatprep.mubr.bf16.mxu0 %v3010
    %4788 = vmatmul.mubr.bf16.gmra.mxu0 %v3009
    %v4789 = vpop.f32.mrf.mxu0
    %v4790 = vadd.f32 %v3290, %v4789
    %v4791 = vpop.f32.mrf.mxu0
    %v4792 = vadd.f32 %v3294, %v4791
    %v4793 = vpop.f32.mrf.mxu0
    %v4794 = vpop.f32.mrf.mxu0
    %4795 = vdwg.mxu0
    %4796 = vmatprep.subr.bf16.mxu0 %v4268
    %4797 = vmatpush1.bf16.msra.mxu0 %v4267
    %4798 = vmatprep.subr.bf16.mxu0 %v4260
    %4799 = vmatpush1.bf16.msra.mxu0 %v4259
    %4800 = vmatprep.subr.bf16.mxu0 %v4252
    %4801 = vmatpush1.bf16.msra.mxu0 %v4251
    %4802 = vmatprep.subr.bf16.mxu0 %v4244
    %4803 = vmatpush1.bf16.msra.mxu0 %v4243
    %4804 = vmatprep.subr.bf16.mxu0 %v4236
    %4805 = vmatpush1.bf16.msra.mxu0 %v4235
    %4806 = vmatprep.subr.bf16.mxu0 %v4228
    %4807 = vmatpush1.bf16.msra.mxu0 %v4227
    %4808 = vmatprep.subr.bf16.mxu0 %v4220
    %4809 = vmatpush1.bf16.msra.mxu0 %v4219
    %4810 = vmatprep.subr.bf16.mxu0 %v4212
    %4811 = vmatpush1.bf16.msra.mxu0 %v4211
    %4812 = vmatprep.subr.bf16.mxu0 %v4332
    %4813 = vmatpush2.bf16.msra.mxu0 %v4331
    %4814 = vmatprep.subr.bf16.mxu0 %v4324
    %4815 = vmatpush2.bf16.msra.mxu0 %v4323
    %4816 = vmatprep.subr.bf16.mxu0 %v4316
    %4817 = vmatpush2.bf16.msra.mxu0 %v4315
    %4818 = vmatprep.subr.bf16.mxu0 %v4308
    %4819 = vmatpush2.bf16.msra.mxu0 %v4307
    %4820 = vmatprep.subr.bf16.mxu0 %v4300
    %4821 = vmatpush2.bf16.msra.mxu0 %v4299
    %4822 = vmatprep.subr.bf16.mxu0 %v4292
    %4823 = vmatpush2.bf16.msra.mxu0 %v4291
    %4824 = vmatprep.subr.bf16.mxu0 %v4284
    %4825 = vmatpush2.bf16.msra.mxu0 %v4283
    %4826 = vmatprep.subr.bf16.mxu0 %v4276
    %4827 = vmatpush2.bf16.msra.mxu0 %v4275
    %4828 = vmatprep.mubr.bf16.mxu0 %v3012
    %4829 = vmatmul.mubr.bf16.gmra.mxu0 %v3011
    %v4830 = vpop.f32.mrf.mxu0
    %v4831 = vadd.f32 %v4790, %v4830
    %v4832 = vpop.f32.mrf.mxu0
    %v4833 = vadd.f32 %v4792, %v4832
    %v4834 = vpop.f32.mrf.mxu0
    %v4835 = vpop.f32.mrf.mxu0
    %4836 = vdwg.mxu0
    %4837 = vmatprep.subr.bf16.mxu0 %v4142
    %4838 = vmatpush1.bf16.msra.mxu0 %v4141
    %4839 = vmatprep.subr.bf16.mxu0 %v4134
    %4840 = vmatpush1.bf16.msra.mxu0 %v4133
    %4841 = vmatprep.subr.bf16.mxu0 %v4126
    %4842 = vmatpush1.bf16.msra.mxu0 %v4125
    %4843 = vmatprep.subr.bf16.mxu0 %v4118
    %4844 = vmatpush1.bf16.msra.mxu0 %v4117
    %4845 = vmatprep.subr.bf16.mxu0 %v4110
    %4846 = vmatpush1.bf16.msra.mxu0 %v4109
    %4847 = vmatprep.subr.bf16.mxu0 %v4102
    %4848 = vmatpush1.bf16.msra.mxu0 %v4101
    %4849 = vmatprep.subr.bf16.mxu0 %v4094
    %4850 = vmatpush1.bf16.msra.mxu0 %v4093
    %4851 = vmatprep.subr.bf16.mxu0 %v4086
    %4852 = vmatpush1.bf16.msra.mxu0 %v4085
    %4853 = vmatprep.subr.bf16.mxu0 %v4206
    %4854 = vmatpush2.bf16.msra.mxu0 %v4205
    %4855 = vmatprep.subr.bf16.mxu0 %v4198
    %4856 = vmatpush2.bf16.msra.mxu0 %v4197
    %4857 = vmatprep.subr.bf16.mxu0 %v4190
    %4858 = vmatpush2.bf16.msra.mxu0 %v4189
    %4859 = vmatprep.subr.bf16.mxu0 %v4182
    %4860 = vmatpush2.bf16.msra.mxu0 %v4181
    %4861 = vmatprep.subr.bf16.mxu0 %v4174
    %4862 = vmatpush2.bf16.msra.mxu0 %v4173
    %4863 = vmatprep.subr.bf16.mxu0 %v4166
    %4864 = vmatpush2.bf16.msra.mxu0 %v4165
    %4865 = vmatprep.subr.bf16.mxu0 %v4158
    %4866 = vmatpush2.bf16.msra.mxu0 %v4157
    %4867 = vmatprep.subr.bf16.mxu0 %v4150
    %4868 = vmatpush2.bf16.msra.mxu0 %v4149
    %4869 = vmatprep.mubr.bf16.mxu0 %v3010
    %4870 = vmatmul.mubr.bf16.gmra.mxu0 %v3009
    %v4871 = vpop.f32.mrf.mxu0
    %v4872 = vadd.f32 %v3298, %v4871
    %v4873 = vpop.f32.mrf.mxu0
    %v4874 = vadd.f32 %v3302, %v4873
    %v4875 = vpop.f32.mrf.mxu0
    %v4876 = vpop.f32.mrf.mxu0
    %4877 = vdwg.mxu0
    %4878 = vmatprep.subr.bf16.mxu0 %v4270
    %4879 = vmatpush1.bf16.msra.mxu0 %v4269
    %4880 = vmatprep.subr.bf16.mxu0 %v4262
    %4881 = vmatpush1.bf16.msra.mxu0 %v4261
    %4882 = vmatprep.subr.bf16.mxu0 %v4254
    %4883 = vmatpush1.bf16.msra.mxu0 %v4253
    %4884 = vmatprep.subr.bf16.mxu0 %v4246
    %4885 = vmatpush1.bf16.msra.mxu0 %v4245
    %4886 = vmatprep.subr.bf16.mxu0 %v4238
    %4887 = vmatpush1.bf16.msra.mxu0 %v4237
    %4888 = vmatprep.subr.bf16.mxu0 %v4230
    %4889 = vmatpush1.bf16.msra.mxu0 %v4229
    %4890 = vmatprep.subr.bf16.mxu0 %v4222
    %4891 = vmatpush1.bf16.msra.mxu0 %v4221
    %4892 = vmatprep.subr.bf16.mxu0 %v4214
    %4893 = vmatpush1.bf16.msra.mxu0 %v4213
    %4894 = vmatprep.subr.bf16.mxu0 %v4334
    %4895 = vmatpush2.bf16.msra.mxu0 %v4333
    %4896 = vmatprep.subr.bf16.mxu0 %v4326
    %4897 = vmatpush2.bf16.msra.mxu0 %v4325
    %4898 = vmatprep.subr.bf16.mxu0 %v4318
    %4899 = vmatpush2.bf16.msra.mxu0 %v4317
    %4900 = vmatprep.subr.bf16.mxu0 %v4310
    %4901 = vmatpush2.bf16.msra.mxu0 %v4309
    %4902 = vmatprep.subr.bf16.mxu0 %v4302
    %4903 = vmatpush2.bf16.msra.mxu0 %v4301
    %4904 = vmatprep.subr.bf16.mxu0 %v4294
    %4905 = vmatpush2.bf16.msra.mxu0 %v4293
    %4906 = vmatprep.subr.bf16.mxu0 %v4286
    %4907 = vmatpush2.bf16.msra.mxu0 %v4285
    %4908 = vmatprep.subr.bf16.mxu0 %v4278
    %4909 = vmatpush2.bf16.msra.mxu0 %v4277
    %4910 = vmatprep.mubr.bf16.mxu0 %v3012
    %4911 = vmatmul.mubr.bf16.gmra.mxu0 %v3011
    %v4912 = vpop.f32.mrf.mxu0
    %v4913 = vadd.f32 %v4872, %v4912
    %v4914 = vpop.f32.mrf.mxu0
    %v4915 = vadd.f32 %v4874, %v4914
    %v4916 = vpop.f32.mrf.mxu0
    %v4917 = vpop.f32.mrf.mxu0
    %4918 = vdwg.mxu0
    %v4919 = vsub.f32 0.0, %v4667
    %v4920 = vsub.f32 0.0, %v4669
    %v4921 = vsub.f32 0.0, %v4749
    %v4922 = vsub.f32 0.0, %v4751
    %v4923 = vsub.f32 0.0, %v4831
    %v4924 = vsub.f32 0.0, %v4833
    %v4925 = vsub.f32 0.0, %v4913
    %v4926 = vsub.f32 0.0, %v4915
    %v4927 = vmul.f32 %v4919, 1.442695
    %v4928 = vpow.pop %v4927
    %v4929 = vmul.f32 %v4920, 1.442695
    %v4930 = vpow.pop %v4929
    %v4931 = vmul.f32 %v4921, 1.442695
    %v4932 = vpow.pop %v4931
    %v4933 = vmul.f32 %v4922, 1.442695
    %v4934 = vpow.pop %v4933
    %v4935 = vmul.f32 %v4923, 1.442695
    %v4936 = vpow.pop %v4935
    %v4937 = vmul.f32 %v4924, 1.442695
    %v4938 = vpow.pop %v4937
    %v4939 = vmul.f32 %v4925, 1.442695
    %v4940 = vpow.pop %v4939
    %v4941 = vmul.f32 %v4926, 1.442695
    %v4942 = vpow.pop %v4941
    %v4943 = vadd.f32 %v4928, 1.0
    %v4944 = vadd.f32 %v4930, 1.0
    %v4945 = vadd.f32 %v4932, 1.0
    %v4946 = vadd.f32 %v4934, 1.0
    %v4947 = vadd.f32 %v4936, 1.0
    %v4948 = vadd.f32 %v4938, 1.0
    %v4949 = vadd.f32 %v4940, 1.0
    %v4950 = vadd.f32 %v4942, 1.0
    %v4951 = vrcp.pop %v4943
    %v4952 = vmul.f32 1.0, %v4951
    %v4953 = vrcp.pop %v4944
    %v4954 = vmul.f32 1.0, %v4953
    %v4955 = vrcp.pop %v4945
    %v4956 = vmul.f32 1.0, %v4955
    %v4957 = vrcp.pop %v4946
    %v4958 = vmul.f32 1.0, %v4957
    %v4959 = vrcp.pop %v4947
    %v4960 = vmul.f32 1.0, %v4959
    %v4961 = vrcp.pop %v4948
    %v4962 = vmul.f32 1.0, %v4961
    %v4963 = vrcp.pop %v4949
    %v4964 = vmul.f32 1.0, %v4963
    %v4965 = vrcp.pop %v4950
    %v4966 = vmul.f32 1.0, %v4965
    %v4975 = vcombine.low %v4952, %v4954
    %v4976 = vcombine.low %v4956, %v4958
    %v4978 = vunpack.c.l.s4 1983009808
    %v4979 = vunpack.c.0.s8 %v4978
    %v4980 = vlaneseq
    %v4981 = vshrl.u32 %v4980, 7
    %v4982 = vsub.s32 %v4979, %v4981
    %v4983 = vrot.slane %v4975, %v4982
    %v4985 = vunpack.c.l.s4 1983009808
    %v4986 = vunpack.c.0.s8 %v4985
    %v4987 = vlaneseq
    %v4988 = vshrl.u32 %v4987, 7
    %v4989 = vsub.s32 %v4986, %v4988
    %v4990 = vrot.slane %v4976, %v4989
    %v4991 = vcombine.low %v4983, %v4990
    %v4992 = vcombine.low %v4960, %v4962
    %v4993 = vcombine.low %v4964, %v4966
    %v4995 = vunpack.c.l.s4 1983009808
    %v4996 = vunpack.c.0.s8 %v4995
    %v4997 = vlaneseq
    %v4998 = vshrl.u32 %v4997, 7
    %v4999 = vsub.s32 %v4996, %v4998
    %v5000 = vrot.slane %v4992, %v4999
    %v5002 = vunpack.c.l.s4 1983009808
    %v5003 = vunpack.c.0.s8 %v5002
    %v5004 = vlaneseq
    %v5005 = vshrl.u32 %v5004, 7
    %v5006 = vsub.s32 %v5003, %v5005
    %v5007 = vrot.slane %v4993, %v5006
    %v5008 = vcombine.low %v5000, %v5007
    %5011 = vst [vmem:[%s9] sm:$0xff] %v4991
    %5012 = vst [vmem:[%s9 + $0x8] sm:$0xff] %v5008
    // Predicated region
    $region54: #{conv_autoencoder_forward.1} parent=1 // pred_check
      _
    $region55: #{conv_autoencoder_forward.1} parent=1 // pred_check_branch
      %5014 = sbr.rel (0) target = $region57
    $region56: #{conv_autoencoder_forward.1} parent=1 // pred_region
      _
    $region57: #{conv_autoencoder_forward.1} parent=1 // pred_fallthru
      _
    // Predicated region
    $region58: #{conv_autoencoder_forward.1} parent=1 // pred_check
      _
    $region59: #{conv_autoencoder_forward.1} parent=1 // pred_check_branch
      %5016 = sbr.rel (0) target = $region61
    $region60: #{conv_autoencoder_forward.1} parent=1 // pred_region
      _
    $region61: #{conv_autoencoder_forward.1} parent=1 // pred_fallthru
      _
    %5017 = vsyncpa [#allocation3], 1
    %5018 = vsyncpa [#allocation5], 1
    %5019 = vsyncpa [#allocation8], 1

</llo_original>
